<compile_context>
chip_gen: v5e
topology: v5e:2x2
jax: 0.10.0
libtpu: 0.0.40
codegen_flags: <defaults>
</compile_context>

<pallas_src>
import jax
import jax.numpy as jnp
from jax.experimental import pallas as pl
from jax.experimental.pallas import tpu as pltpu

# Problem constants (from the PyTorch module).
CIN, COUT, K = 3, 6, 3
STRIDE, PAD = 1, 0


def _conv2d_kernel(x_ref, w_ref, b_ref, o_ref):
    # x_ref: (N, CIN, H, W)          VMEM  (W on lanes, H on sublanes)
    # w_ref: (COUT*CIN*K*K,)         SMEM  (flat OIHW scalars)
    # b_ref: (COUT,)                 SMEM
    # o_ref: (N, COUT, OH, OW)       VMEM  (masked store at OW=14 lanes: fine)
    n, cout, oh, ow = o_ref.shape

    for b in range(n):
        # One f32 accumulator slab per output channel; bias folded into init.
        accs = [jnp.zeros((oh, ow), jnp.float32) + b_ref[co]
                for co in range(cout)]

        # 3x3 conv as shifted-window VPU FMAs.  Each window is an offset vld
        # straight from the ref (static slice -> zero-cost view + aligned-ish
        # load), reused across all Cout.  Fully unrolled: 27 loads + 162 FMAs
        # per image.
        for ci in range(CIN):
            for kh in range(K):
                for kw in range(K):
                    win = x_ref[b, ci, kh:kh + oh, kw:kw + ow]   # (OH, OW)
                    win = win.astype(jnp.float32)
                    for co in range(cout):
                        widx = ((co * CIN + ci) * K + kh) * K + kw
                        accs[co] = accs[co] + win * w_ref[widx]

        for co in range(cout):
            o_ref[b, co] = accs[co].astype(o_ref.dtype)


def conv2d_pallas(x_nchw, weight_oihw, bias):
    """Conv2d(stride=1, padding=0) matching torch.nn.Conv2d semantics.

    x_nchw:      (N, Cin, H, W)
    weight_oihw: (Cout, Cin, K, K)   (PyTorch layout)
    bias:        (Cout,)
    returns:     (N, Cout, OH, OW)
    """
    n, cin, h, w = x_nchw.shape
    cout = weight_oihw.shape[0]
    oh = (h - K) // STRIDE + 1
    ow = (w - K) // STRIDE + 1

    # 162 floats: flatten in OIHW order; the kernel indexes with the same order.
    w_flat = weight_oihw.reshape(-1)

    # Advisory cost: 2 flops/MAC * N*Cout*OH*OW*Cin*K*K, plus the tiny I/O.
    flops = 2 * n * cout * oh * ow * cin * K * K
    bytes_accessed = (x_nchw.size + n * cout * oh * ow) * 4 + (w_flat.size + cout) * 4

    return pl.pallas_call(
        _conv2d_kernel,
        out_shape=jax.ShapeDtypeStruct((n, cout, oh, ow), x_nchw.dtype),
        # Single grid step: whole batch in one body (no per-step grid overhead,
        # one input DMA + one output DMA total).
        in_specs=[
            pl.BlockSpec(memory_space=pltpu.MemorySpace.VMEM),   # x (full)
            pl.BlockSpec(memory_space=pltpu.MemorySpace.SMEM),   # weights (flat)
            pl.BlockSpec(memory_space=pltpu.MemorySpace.SMEM),   # bias
        ],
        out_specs=pl.BlockSpec(memory_space=pltpu.MemorySpace.VMEM),
        cost_estimate=pl.CostEstimate(
            flops=flops, transcendentals=0, bytes_accessed=bytes_accessed),
    )(x_nchw, w_flat, bias)


def init_params(key):
    """Deterministic Conv2d parameter init (PyTorch-style uniform bounds)."""
    kw_key, kb_key = jax.random.split(key)
    fan_in = CIN * K * K
    bound = 1.0 / jnp.sqrt(fan_in)
    weight = jax.random.uniform(kw_key, (COUT, CIN, K, K),
                                minval=-bound, maxval=bound, dtype=jnp.float32)
    bias = jax.random.uniform(kb_key, (COUT,),
                              minval=-bound, maxval=bound, dtype=jnp.float32)
    return weight, bias


if __name__ == "__main__":
    key = jax.random.PRNGKey(0)
    k_x, k_p = jax.random.split(key)

    # Small input consistent with Conv2d(in_channels=3): N=2, C=3, H=W=16.
    x = jax.random.normal(k_x, (2, CIN, 16, 16), dtype=jnp.float32)
    weight, bias = init_params(k_p)

    out = conv2d_pallas(x, weight, bias)
    out = jax.block_until_ready(out)

    # Reference check against XLA's conv (same semantics as torch Conv2d).
    ref = jax.lax.conv_general_dilated(
        x, weight, window_strides=(STRIDE, STRIDE), padding="VALID",
        dimension_numbers=("NCHW", "OIHW", "NCHW")) + bias[None, :, None, None]
    assert out.shape == (2, COUT, 14, 14), out.shape
    assert jnp.allclose(out, ref, atol=1e-4, rtol=1e-4)

    print("KERNEL_OK")
</pallas_src>

<mosaic_0001>
module attributes {stable_mosaic.version = 11 : i64} {
  func.func @_conv2d_kernel(%arg0: memref<2x3x16x16xf32, #tpu.memory_space<vmem>>, %arg1: memref<162xf32, #tpu.memory_space<smem>>, %arg2: memref<6xf32, #tpu.memory_space<smem>>, %arg3: memref<2x6x14x14xf32, #tpu.memory_space<vmem>>) attributes {dimension_semantics = [], scalar_prefetch = 0 : i64, scratch_operands = 0 : i64, tpu.core_type = #tpu.core_type<tc>} {
    %cst = arith.constant 0.000000e+00 : f32
    %0 = vector.broadcast %cst : f32 to vector<14x14xf32>
    %c0 = arith.constant 0 : index
    %1 = memref.load %arg2[%c0] : memref<6xf32, #tpu.memory_space<smem>>
    %2 = vector.broadcast %1 : f32 to vector<14x14xf32>
    %3 = arith.addf %0, %2 : vector<14x14xf32>
    %cst_0 = arith.constant 0.000000e+00 : f32
    %4 = vector.broadcast %cst_0 : f32 to vector<14x14xf32>
    %c1 = arith.constant 1 : index
    %5 = memref.load %arg2[%c1] : memref<6xf32, #tpu.memory_space<smem>>
    %6 = vector.broadcast %5 : f32 to vector<14x14xf32>
    %7 = arith.addf %4, %6 : vector<14x14xf32>
    %cst_1 = arith.constant 0.000000e+00 : f32
    %8 = vector.broadcast %cst_1 : f32 to vector<14x14xf32>
    %c2 = arith.constant 2 : index
    %9 = memref.load %arg2[%c2] : memref<6xf32, #tpu.memory_space<smem>>
    %10 = vector.broadcast %9 : f32 to vector<14x14xf32>
    %11 = arith.addf %8, %10 : vector<14x14xf32>
    %cst_2 = arith.constant 0.000000e+00 : f32
    %12 = vector.broadcast %cst_2 : f32 to vector<14x14xf32>
    %c3 = arith.constant 3 : index
    %13 = memref.load %arg2[%c3] : memref<6xf32, #tpu.memory_space<smem>>
    %14 = vector.broadcast %13 : f32 to vector<14x14xf32>
    %15 = arith.addf %12, %14 : vector<14x14xf32>
    %cst_3 = arith.constant 0.000000e+00 : f32
    %16 = vector.broadcast %cst_3 : f32 to vector<14x14xf32>
    %c4 = arith.constant 4 : index
    %17 = memref.load %arg2[%c4] : memref<6xf32, #tpu.memory_space<smem>>
    %18 = vector.broadcast %17 : f32 to vector<14x14xf32>
    %19 = arith.addf %16, %18 : vector<14x14xf32>
    %cst_4 = arith.constant 0.000000e+00 : f32
    %20 = vector.broadcast %cst_4 : f32 to vector<14x14xf32>
    %c5 = arith.constant 5 : index
    %21 = memref.load %arg2[%c5] : memref<6xf32, #tpu.memory_space<smem>>
    %22 = vector.broadcast %21 : f32 to vector<14x14xf32>
    %23 = arith.addf %20, %22 : vector<14x14xf32>
    %c0_5 = arith.constant 0 : index
    %c0_6 = arith.constant 0 : index
    %c0_7 = arith.constant 0 : index
    %c0_8 = arith.constant 0 : index
    %24 = vector.load %arg0[%c0_5, %c0_6, %c0_7, %c0_8] : memref<2x3x16x16xf32, #tpu.memory_space<vmem>>, vector<1x1x14x14xf32>
    %25 = vector.shape_cast %24 : vector<1x1x14x14xf32> to vector<14x14xf32>
    %c0_9 = arith.constant 0 : index
    %26 = memref.load %arg1[%c0_9] : memref<162xf32, #tpu.memory_space<smem>>
    %27 = vector.broadcast %26 : f32 to vector<14x14xf32>
    %28 = arith.mulf %25, %27 : vector<14x14xf32>
    %29 = arith.addf %3, %28 : vector<14x14xf32>
    %c27 = arith.constant 27 : index
    %30 = memref.load %arg1[%c27] : memref<162xf32, #tpu.memory_space<smem>>
    %31 = vector.broadcast %30 : f32 to vector<14x14xf32>
    %32 = arith.mulf %25, %31 : vector<14x14xf32>
    %33 = arith.addf %7, %32 : vector<14x14xf32>
    %c54 = arith.constant 54 : index
    %34 = memref.load %arg1[%c54] : memref<162xf32, #tpu.memory_space<smem>>
    %35 = vector.broadcast %34 : f32 to vector<14x14xf32>
    %36 = arith.mulf %25, %35 : vector<14x14xf32>
    %37 = arith.addf %11, %36 : vector<14x14xf32>
    %c81 = arith.constant 81 : index
    %38 = memref.load %arg1[%c81] : memref<162xf32, #tpu.memory_space<smem>>
    %39 = vector.broadcast %38 : f32 to vector<14x14xf32>
    %40 = arith.mulf %25, %39 : vector<14x14xf32>
    %41 = arith.addf %15, %40 : vector<14x14xf32>
    %c108 = arith.constant 108 : index
    %42 = memref.load %arg1[%c108] : memref<162xf32, #tpu.memory_space<smem>>
    %43 = vector.broadcast %42 : f32 to vector<14x14xf32>
    %44 = arith.mulf %25, %43 : vector<14x14xf32>
    %45 = arith.addf %19, %44 : vector<14x14xf32>
    %c135 = arith.constant 135 : index
    %46 = memref.load %arg1[%c135] : memref<162xf32, #tpu.memory_space<smem>>
    %47 = vector.broadcast %46 : f32 to vector<14x14xf32>
    %48 = arith.mulf %25, %47 : vector<14x14xf32>
    %49 = arith.addf %23, %48 : vector<14x14xf32>
    %c0_10 = arith.constant 0 : index
    %c0_11 = arith.constant 0 : index
    %c0_12 = arith.constant 0 : index
    %c1_13 = arith.constant 1 : index
    %50 = vector.load %arg0[%c0_10, %c0_11, %c0_12, %c1_13] : memref<2x3x16x16xf32, #tpu.memory_space<vmem>>, vector<1x1x14x14xf32>
    %51 = vector.shape_cast %50 : vector<1x1x14x14xf32> to vector<14x14xf32>
    %c1_14 = arith.constant 1 : index
    %52 = memref.load %arg1[%c1_14] : memref<162xf32, #tpu.memory_space<smem>>
    %53 = vector.broadcast %52 : f32 to vector<14x14xf32>
    %54 = arith.mulf %51, %53 : vector<14x14xf32>
    %55 = arith.addf %29, %54 : vector<14x14xf32>
    %c28 = arith.constant 28 : index
    %56 = memref.load %arg1[%c28] : memref<162xf32, #tpu.memory_space<smem>>
    %57 = vector.broadcast %56 : f32 to vector<14x14xf32>
    %58 = arith.mulf %51, %57 : vector<14x14xf32>
    %59 = arith.addf %33, %58 : vector<14x14xf32>
    %c55 = arith.constant 55 : index
    %60 = memref.load %arg1[%c55] : memref<162xf32, #tpu.memory_space<smem>>
    %61 = vector.broadcast %60 : f32 to vector<14x14xf32>
    %62 = arith.mulf %51, %61 : vector<14x14xf32>
    %63 = arith.addf %37, %62 : vector<14x14xf32>
    %c82 = arith.constant 82 : index
    %64 = memref.load %arg1[%c82] : memref<162xf32, #tpu.memory_space<smem>>
    %65 = vector.broadcast %64 : f32 to vector<14x14xf32>
    %66 = arith.mulf %51, %65 : vector<14x14xf32>
    %67 = arith.addf %41, %66 : vector<14x14xf32>
    %c109 = arith.constant 109 : index
    %68 = memref.load %arg1[%c109] : memref<162xf32, #tpu.memory_space<smem>>
    %69 = vector.broadcast %68 : f32 to vector<14x14xf32>
    %70 = arith.mulf %51, %69 : vector<14x14xf32>
    %71 = arith.addf %45, %70 : vector<14x14xf32>
    %c136 = arith.constant 136 : index
    %72 = memref.load %arg1[%c136] : memref<162xf32, #tpu.memory_space<smem>>
    %73 = vector.broadcast %72 : f32 to vector<14x14xf32>
    %74 = arith.mulf %51, %73 : vector<14x14xf32>
    %75 = arith.addf %49, %74 : vector<14x14xf32>
    %c0_15 = arith.constant 0 : index
    %c0_16 = arith.constant 0 : index
    %c0_17 = arith.constant 0 : index
    %c2_18 = arith.constant 2 : index
    %76 = vector.load %arg0[%c0_15, %c0_16, %c0_17, %c2_18] : memref<2x3x16x16xf32, #tpu.memory_space<vmem>>, vector<1x1x14x14xf32>
    %77 = vector.shape_cast %76 : vector<1x1x14x14xf32> to vector<14x14xf32>
    %c2_19 = arith.constant 2 : index
    %78 = memref.load %arg1[%c2_19] : memref<162xf32, #tpu.memory_space<smem>>
    %79 = vector.broadcast %78 : f32 to vector<14x14xf32>
    %80 = arith.mulf %77, %79 : vector<14x14xf32>
    %81 = arith.addf %55, %80 : vector<14x14xf32>
    %c29 = arith.constant 29 : index
    %82 = memref.load %arg1[%c29] : memref<162xf32, #tpu.memory_space<smem>>
    %83 = vector.broadcast %82 : f32 to vector<14x14xf32>
    %84 = arith.mulf %77, %83 : vector<14x14xf32>
    %85 = arith.addf %59, %84 : vector<14x14xf32>
    %c56 = arith.constant 56 : index
    %86 = memref.load %arg1[%c56] : memref<162xf32, #tpu.memory_space<smem>>
    %87 = vector.broadcast %86 : f32 to vector<14x14xf32>
    %88 = arith.mulf %77, %87 : vector<14x14xf32>
    %89 = arith.addf %63, %88 : vector<14x14xf32>
    %c83 = arith.constant 83 : index
    %90 = memref.load %arg1[%c83] : memref<162xf32, #tpu.memory_space<smem>>
    %91 = vector.broadcast %90 : f32 to vector<14x14xf32>
    %92 = arith.mulf %77, %91 : vector<14x14xf32>
    %93 = arith.addf %67, %92 : vector<14x14xf32>
    %c110 = arith.constant 110 : index
    %94 = memref.load %arg1[%c110] : memref<162xf32, #tpu.memory_space<smem>>
    %95 = vector.broadcast %94 : f32 to vector<14x14xf32>
    %96 = arith.mulf %77, %95 : vector<14x14xf32>
    %97 = arith.addf %71, %96 : vector<14x14xf32>
    %c137 = arith.constant 137 : index
    %98 = memref.load %arg1[%c137] : memref<162xf32, #tpu.memory_space<smem>>
    %99 = vector.broadcast %98 : f32 to vector<14x14xf32>
    %100 = arith.mulf %77, %99 : vector<14x14xf32>
    %101 = arith.addf %75, %100 : vector<14x14xf32>
    %c0_20 = arith.constant 0 : index
    %c0_21 = arith.constant 0 : index
    %c1_22 = arith.constant 1 : index
    %c0_23 = arith.constant 0 : index
    %102 = vector.load %arg0[%c0_20, %c0_21, %c1_22, %c0_23] : memref<2x3x16x16xf32, #tpu.memory_space<vmem>>, vector<1x1x14x14xf32>
    %103 = vector.shape_cast %102 : vector<1x1x14x14xf32> to vector<14x14xf32>
    %c3_24 = arith.constant 3 : index
    %104 = memref.load %arg1[%c3_24] : memref<162xf32, #tpu.memory_space<smem>>
    %105 = vector.broadcast %104 : f32 to vector<14x14xf32>
    %106 = arith.mulf %103, %105 : vector<14x14xf32>
    %107 = arith.addf %81, %106 : vector<14x14xf32>
    %c30 = arith.constant 30 : index
    %108 = memref.load %arg1[%c30] : memref<162xf32, #tpu.memory_space<smem>>
    %109 = vector.broadcast %108 : f32 to vector<14x14xf32>
    %110 = arith.mulf %103, %109 : vector<14x14xf32>
    %111 = arith.addf %85, %110 : vector<14x14xf32>
    %c57 = arith.constant 57 : index
    %112 = memref.load %arg1[%c57] : memref<162xf32, #tpu.memory_space<smem>>
    %113 = vector.broadcast %112 : f32 to vector<14x14xf32>
    %114 = arith.mulf %103, %113 : vector<14x14xf32>
    %115 = arith.addf %89, %114 : vector<14x14xf32>
    %c84 = arith.constant 84 : index
    %116 = memref.load %arg1[%c84] : memref<162xf32, #tpu.memory_space<smem>>
    %117 = vector.broadcast %116 : f32 to vector<14x14xf32>
    %118 = arith.mulf %103, %117 : vector<14x14xf32>
    %119 = arith.addf %93, %118 : vector<14x14xf32>
    %c111 = arith.constant 111 : index
    %120 = memref.load %arg1[%c111] : memref<162xf32, #tpu.memory_space<smem>>
    %121 = vector.broadcast %120 : f32 to vector<14x14xf32>
    %122 = arith.mulf %103, %121 : vector<14x14xf32>
    %123 = arith.addf %97, %122 : vector<14x14xf32>
    %c138 = arith.constant 138 : index
    %124 = memref.load %arg1[%c138] : memref<162xf32, #tpu.memory_space<smem>>
    %125 = vector.broadcast %124 : f32 to vector<14x14xf32>
    %126 = arith.mulf %103, %125 : vector<14x14xf32>
    %127 = arith.addf %101, %126 : vector<14x14xf32>
    %c0_25 = arith.constant 0 : index
    %c0_26 = arith.constant 0 : index
    %c1_27 = arith.constant 1 : index
    %c1_28 = arith.constant 1 : index
    %128 = vector.load %arg0[%c0_25, %c0_26, %c1_27, %c1_28] : memref<2x3x16x16xf32, #tpu.memory_space<vmem>>, vector<1x1x14x14xf32>
    %129 = vector.shape_cast %128 : vector<1x1x14x14xf32> to vector<14x14xf32>
    %c4_29 = arith.constant 4 : index
    %130 = memref.load %arg1[%c4_29] : memref<162xf32, #tpu.memory_space<smem>>
    %131 = vector.broadcast %130 : f32 to vector<14x14xf32>
    %132 = arith.mulf %129, %131 : vector<14x14xf32>
    %133 = arith.addf %107, %132 : vector<14x14xf32>
    %c31 = arith.constant 31 : index
    %134 = memref.load %arg1[%c31] : memref<162xf32, #tpu.memory_space<smem>>
    %135 = vector.broadcast %134 : f32 to vector<14x14xf32>
    %136 = arith.mulf %129, %135 : vector<14x14xf32>
    %137 = arith.addf %111, %136 : vector<14x14xf32>
    %c58 = arith.constant 58 : index
    %138 = memref.load %arg1[%c58] : memref<162xf32, #tpu.memory_space<smem>>
    %139 = vector.broadcast %138 : f32 to vector<14x14xf32>
    %140 = arith.mulf %129, %139 : vector<14x14xf32>
    %141 = arith.addf %115, %140 : vector<14x14xf32>
    %c85 = arith.constant 85 : index
    %142 = memref.load %arg1[%c85] : memref<162xf32, #tpu.memory_space<smem>>
    %143 = vector.broadcast %142 : f32 to vector<14x14xf32>
    %144 = arith.mulf %129, %143 : vector<14x14xf32>
    %145 = arith.addf %119, %144 : vector<14x14xf32>
    %c112 = arith.constant 112 : index
    %146 = memref.load %arg1[%c112] : memref<162xf32, #tpu.memory_space<smem>>
    %147 = vector.broadcast %146 : f32 to vector<14x14xf32>
    %148 = arith.mulf %129, %147 : vector<14x14xf32>
    %149 = arith.addf %123, %148 : vector<14x14xf32>
    %c139 = arith.constant 139 : index
    %150 = memref.load %arg1[%c139] : memref<162xf32, #tpu.memory_space<smem>>
    %151 = vector.broadcast %150 : f32 to vector<14x14xf32>
    %152 = arith.mulf %129, %151 : vector<14x14xf32>
    %153 = arith.addf %127, %152 : vector<14x14xf32>
    %c0_30 = arith.constant 0 : index
    %c0_31 = arith.constant 0 : index
    %c1_32 = arith.constant 1 : index
    %c2_33 = arith.constant 2 : index
    %154 = vector.load %arg0[%c0_30, %c0_31, %c1_32, %c2_33] : memref<2x3x16x16xf32, #tpu.memory_space<vmem>>, vector<1x1x14x14xf32>
    %155 = vector.shape_cast %154 : vector<1x1x14x14xf32> to vector<14x14xf32>
    %c5_34 = arith.constant 5 : index
    %156 = memref.load %arg1[%c5_34] : memref<162xf32, #tpu.memory_space<smem>>
    %157 = vector.broadcast %156 : f32 to vector<14x14xf32>
    %158 = arith.mulf %155, %157 : vector<14x14xf32>
    %159 = arith.addf %133, %158 : vector<14x14xf32>
    %c32 = arith.constant 32 : index
    %160 = memref.load %arg1[%c32] : memref<162xf32, #tpu.memory_space<smem>>
    %161 = vector.broadcast %160 : f32 to vector<14x14xf32>
    %162 = arith.mulf %155, %161 : vector<14x14xf32>
    %163 = arith.addf %137, %162 : vector<14x14xf32>
    %c59 = arith.constant 59 : index
    %164 = memref.load %arg1[%c59] : memref<162xf32, #tpu.memory_space<smem>>
    %165 = vector.broadcast %164 : f32 to vector<14x14xf32>
    %166 = arith.mulf %155, %165 : vector<14x14xf32>
    %167 = arith.addf %141, %166 : vector<14x14xf32>
    %c86 = arith.constant 86 : index
    %168 = memref.load %arg1[%c86] : memref<162xf32, #tpu.memory_space<smem>>
    %169 = vector.broadcast %168 : f32 to vector<14x14xf32>
    %170 = arith.mulf %155, %169 : vector<14x14xf32>
    %171 = arith.addf %145, %170 : vector<14x14xf32>
    %c113 = arith.constant 113 : index
    %172 = memref.load %arg1[%c113] : memref<162xf32, #tpu.memory_space<smem>>
    %173 = vector.broadcast %172 : f32 to vector<14x14xf32>
    %174 = arith.mulf %155, %173 : vector<14x14xf32>
    %175 = arith.addf %149, %174 : vector<14x14xf32>
    %c140 = arith.constant 140 : index
    %176 = memref.load %arg1[%c140] : memref<162xf32, #tpu.memory_space<smem>>
    %177 = vector.broadcast %176 : f32 to vector<14x14xf32>
    %178 = arith.mulf %155, %177 : vector<14x14xf32>
    %179 = arith.addf %153, %178 : vector<14x14xf32>
    %c0_35 = arith.constant 0 : index
    %c0_36 = arith.constant 0 : index
    %c2_37 = arith.constant 2 : index
    %c0_38 = arith.constant 0 : index
    %180 = vector.load %arg0[%c0_35, %c0_36, %c2_37, %c0_38] : memref<2x3x16x16xf32, #tpu.memory_space<vmem>>, vector<1x1x14x14xf32>
    %181 = vector.shape_cast %180 : vector<1x1x14x14xf32> to vector<14x14xf32>
    %c6 = arith.constant 6 : index
    %182 = memref.load %arg1[%c6] : memref<162xf32, #tpu.memory_space<smem>>
    %183 = vector.broadcast %182 : f32 to vector<14x14xf32>
    %184 = arith.mulf %181, %183 : vector<14x14xf32>
    %185 = arith.addf %159, %184 : vector<14x14xf32>
    %c33 = arith.constant 33 : index
    %186 = memref.load %arg1[%c33] : memref<162xf32, #tpu.memory_space<smem>>
    %187 = vector.broadcast %186 : f32 to vector<14x14xf32>
    %188 = arith.mulf %181, %187 : vector<14x14xf32>
    %189 = arith.addf %163, %188 : vector<14x14xf32>
    %c60 = arith.constant 60 : index
    %190 = memref.load %arg1[%c60] : memref<162xf32, #tpu.memory_space<smem>>
    %191 = vector.broadcast %190 : f32 to vector<14x14xf32>
    %192 = arith.mulf %181, %191 : vector<14x14xf32>
    %193 = arith.addf %167, %192 : vector<14x14xf32>
    %c87 = arith.constant 87 : index
    %194 = memref.load %arg1[%c87] : memref<162xf32, #tpu.memory_space<smem>>
    %195 = vector.broadcast %194 : f32 to vector<14x14xf32>
    %196 = arith.mulf %181, %195 : vector<14x14xf32>
    %197 = arith.addf %171, %196 : vector<14x14xf32>
    %c114 = arith.constant 114 : index
    %198 = memref.load %arg1[%c114] : memref<162xf32, #tpu.memory_space<smem>>
    %199 = vector.broadcast %198 : f32 to vector<14x14xf32>
    %200 = arith.mulf %181, %199 : vector<14x14xf32>
    %201 = arith.addf %175, %200 : vector<14x14xf32>
    %c141 = arith.constant 141 : index
    %202 = memref.load %arg1[%c141] : memref<162xf32, #tpu.memory_space<smem>>
    %203 = vector.broadcast %202 : f32 to vector<14x14xf32>
    %204 = arith.mulf %181, %203 : vector<14x14xf32>
    %205 = arith.addf %179, %204 : vector<14x14xf32>
    %c0_39 = arith.constant 0 : index
    %c0_40 = arith.constant 0 : index
    %c2_41 = arith.constant 2 : index
    %c1_42 = arith.constant 1 : index
    %206 = vector.load %arg0[%c0_39, %c0_40, %c2_41, %c1_42] : memref<2x3x16x16xf32, #tpu.memory_space<vmem>>, vector<1x1x14x14xf32>
    %207 = vector.shape_cast %206 : vector<1x1x14x14xf32> to vector<14x14xf32>
    %c7 = arith.constant 7 : index
    %208 = memref.load %arg1[%c7] : memref<162xf32, #tpu.memory_space<smem>>
    %209 = vector.broadcast %208 : f32 to vector<14x14xf32>
    %210 = arith.mulf %207, %209 : vector<14x14xf32>
    %211 = arith.addf %185, %210 : vector<14x14xf32>
    %c34 = arith.constant 34 : index
    %212 = memref.load %arg1[%c34] : memref<162xf32, #tpu.memory_space<smem>>
    %213 = vector.broadcast %212 : f32 to vector<14x14xf32>
    %214 = arith.mulf %207, %213 : vector<14x14xf32>
    %215 = arith.addf %189, %214 : vector<14x14xf32>
    %c61 = arith.constant 61 : index
    %216 = memref.load %arg1[%c61] : memref<162xf32, #tpu.memory_space<smem>>
    %217 = vector.broadcast %216 : f32 to vector<14x14xf32>
    %218 = arith.mulf %207, %217 : vector<14x14xf32>
    %219 = arith.addf %193, %218 : vector<14x14xf32>
    %c88 = arith.constant 88 : index
    %220 = memref.load %arg1[%c88] : memref<162xf32, #tpu.memory_space<smem>>
    %221 = vector.broadcast %220 : f32 to vector<14x14xf32>
    %222 = arith.mulf %207, %221 : vector<14x14xf32>
    %223 = arith.addf %197, %222 : vector<14x14xf32>
    %c115 = arith.constant 115 : index
    %224 = memref.load %arg1[%c115] : memref<162xf32, #tpu.memory_space<smem>>
    %225 = vector.broadcast %224 : f32 to vector<14x14xf32>
    %226 = arith.mulf %207, %225 : vector<14x14xf32>
    %227 = arith.addf %201, %226 : vector<14x14xf32>
    %c142 = arith.constant 142 : index
    %228 = memref.load %arg1[%c142] : memref<162xf32, #tpu.memory_space<smem>>
    %229 = vector.broadcast %228 : f32 to vector<14x14xf32>
    %230 = arith.mulf %207, %229 : vector<14x14xf32>
    %231 = arith.addf %205, %230 : vector<14x14xf32>
    %c0_43 = arith.constant 0 : index
    %c0_44 = arith.constant 0 : index
    %c2_45 = arith.constant 2 : index
    %c2_46 = arith.constant 2 : index
    %232 = vector.load %arg0[%c0_43, %c0_44, %c2_45, %c2_46] : memref<2x3x16x16xf32, #tpu.memory_space<vmem>>, vector<1x1x14x14xf32>
    %233 = vector.shape_cast %232 : vector<1x1x14x14xf32> to vector<14x14xf32>
    %c8 = arith.constant 8 : index
    %234 = memref.load %arg1[%c8] : memref<162xf32, #tpu.memory_space<smem>>
    %235 = vector.broadcast %234 : f32 to vector<14x14xf32>
    %236 = arith.mulf %233, %235 : vector<14x14xf32>
    %237 = arith.addf %211, %236 : vector<14x14xf32>
    %c35 = arith.constant 35 : index
    %238 = memref.load %arg1[%c35] : memref<162xf32, #tpu.memory_space<smem>>
    %239 = vector.broadcast %238 : f32 to vector<14x14xf32>
    %240 = arith.mulf %233, %239 : vector<14x14xf32>
    %241 = arith.addf %215, %240 : vector<14x14xf32>
    %c62 = arith.constant 62 : index
    %242 = memref.load %arg1[%c62] : memref<162xf32, #tpu.memory_space<smem>>
    %243 = vector.broadcast %242 : f32 to vector<14x14xf32>
    %244 = arith.mulf %233, %243 : vector<14x14xf32>
    %245 = arith.addf %219, %244 : vector<14x14xf32>
    %c89 = arith.constant 89 : index
    %246 = memref.load %arg1[%c89] : memref<162xf32, #tpu.memory_space<smem>>
    %247 = vector.broadcast %246 : f32 to vector<14x14xf32>
    %248 = arith.mulf %233, %247 : vector<14x14xf32>
    %249 = arith.addf %223, %248 : vector<14x14xf32>
    %c116 = arith.constant 116 : index
    %250 = memref.load %arg1[%c116] : memref<162xf32, #tpu.memory_space<smem>>
    %251 = vector.broadcast %250 : f32 to vector<14x14xf32>
    %252 = arith.mulf %233, %251 : vector<14x14xf32>
    %253 = arith.addf %227, %252 : vector<14x14xf32>
    %c143 = arith.constant 143 : index
    %254 = memref.load %arg1[%c143] : memref<162xf32, #tpu.memory_space<smem>>
    %255 = vector.broadcast %254 : f32 to vector<14x14xf32>
    %256 = arith.mulf %233, %255 : vector<14x14xf32>
    %257 = arith.addf %231, %256 : vector<14x14xf32>
    %c0_47 = arith.constant 0 : index
    %c1_48 = arith.constant 1 : index
    %c0_49 = arith.constant 0 : index
    %c0_50 = arith.constant 0 : index
    %258 = vector.load %arg0[%c0_47, %c1_48, %c0_49, %c0_50] : memref<2x3x16x16xf32, #tpu.memory_space<vmem>>, vector<1x1x14x14xf32>
    %259 = vector.shape_cast %258 : vector<1x1x14x14xf32> to vector<14x14xf32>
    %c9 = arith.constant 9 : index
    %260 = memref.load %arg1[%c9] : memref<162xf32, #tpu.memory_space<smem>>
    %261 = vector.broadcast %260 : f32 to vector<14x14xf32>
    %262 = arith.mulf %259, %261 : vector<14x14xf32>
    %263 = arith.addf %237, %262 : vector<14x14xf32>
    %c36 = arith.constant 36 : index
    %264 = memref.load %arg1[%c36] : memref<162xf32, #tpu.memory_space<smem>>
    %265 = vector.broadcast %264 : f32 to vector<14x14xf32>
    %266 = arith.mulf %259, %265 : vector<14x14xf32>
    %267 = arith.addf %241, %266 : vector<14x14xf32>
    %c63 = arith.constant 63 : index
    %268 = memref.load %arg1[%c63] : memref<162xf32, #tpu.memory_space<smem>>
    %269 = vector.broadcast %268 : f32 to vector<14x14xf32>
    %270 = arith.mulf %259, %269 : vector<14x14xf32>
    %271 = arith.addf %245, %270 : vector<14x14xf32>
    %c90 = arith.constant 90 : index
    %272 = memref.load %arg1[%c90] : memref<162xf32, #tpu.memory_space<smem>>
    %273 = vector.broadcast %272 : f32 to vector<14x14xf32>
    %274 = arith.mulf %259, %273 : vector<14x14xf32>
    %275 = arith.addf %249, %274 : vector<14x14xf32>
    %c117 = arith.constant 117 : index
    %276 = memref.load %arg1[%c117] : memref<162xf32, #tpu.memory_space<smem>>
    %277 = vector.broadcast %276 : f32 to vector<14x14xf32>
    %278 = arith.mulf %259, %277 : vector<14x14xf32>
    %279 = arith.addf %253, %278 : vector<14x14xf32>
    %c144 = arith.constant 144 : index
    %280 = memref.load %arg1[%c144] : memref<162xf32, #tpu.memory_space<smem>>
    %281 = vector.broadcast %280 : f32 to vector<14x14xf32>
    %282 = arith.mulf %259, %281 : vector<14x14xf32>
    %283 = arith.addf %257, %282 : vector<14x14xf32>
    %c0_51 = arith.constant 0 : index
    %c1_52 = arith.constant 1 : index
    %c0_53 = arith.constant 0 : index
    %c1_54 = arith.constant 1 : index
    %284 = vector.load %arg0[%c0_51, %c1_52, %c0_53, %c1_54] : memref<2x3x16x16xf32, #tpu.memory_space<vmem>>, vector<1x1x14x14xf32>
    %285 = vector.shape_cast %284 : vector<1x1x14x14xf32> to vector<14x14xf32>
    %c10 = arith.constant 10 : index
    %286 = memref.load %arg1[%c10] : memref<162xf32, #tpu.memory_space<smem>>
    %287 = vector.broadcast %286 : f32 to vector<14x14xf32>
    %288 = arith.mulf %285, %287 : vector<14x14xf32>
    %289 = arith.addf %263, %288 : vector<14x14xf32>
    %c37 = arith.constant 37 : index
    %290 = memref.load %arg1[%c37] : memref<162xf32, #tpu.memory_space<smem>>
    %291 = vector.broadcast %290 : f32 to vector<14x14xf32>
    %292 = arith.mulf %285, %291 : vector<14x14xf32>
    %293 = arith.addf %267, %292 : vector<14x14xf32>
    %c64 = arith.constant 64 : index
    %294 = memref.load %arg1[%c64] : memref<162xf32, #tpu.memory_space<smem>>
    %295 = vector.broadcast %294 : f32 to vector<14x14xf32>
    %296 = arith.mulf %285, %295 : vector<14x14xf32>
    %297 = arith.addf %271, %296 : vector<14x14xf32>
    %c91 = arith.constant 91 : index
    %298 = memref.load %arg1[%c91] : memref<162xf32, #tpu.memory_space<smem>>
    %299 = vector.broadcast %298 : f32 to vector<14x14xf32>
    %300 = arith.mulf %285, %299 : vector<14x14xf32>
    %301 = arith.addf %275, %300 : vector<14x14xf32>
    %c118 = arith.constant 118 : index
    %302 = memref.load %arg1[%c118] : memref<162xf32, #tpu.memory_space<smem>>
    %303 = vector.broadcast %302 : f32 to vector<14x14xf32>
    %304 = arith.mulf %285, %303 : vector<14x14xf32>
    %305 = arith.addf %279, %304 : vector<14x14xf32>
    %c145 = arith.constant 145 : index
    %306 = memref.load %arg1[%c145] : memref<162xf32, #tpu.memory_space<smem>>
    %307 = vector.broadcast %306 : f32 to vector<14x14xf32>
    %308 = arith.mulf %285, %307 : vector<14x14xf32>
    %309 = arith.addf %283, %308 : vector<14x14xf32>
    %c0_55 = arith.constant 0 : index
    %c1_56 = arith.constant 1 : index
    %c0_57 = arith.constant 0 : index
    %c2_58 = arith.constant 2 : index
    %310 = vector.load %arg0[%c0_55, %c1_56, %c0_57, %c2_58] : memref<2x3x16x16xf32, #tpu.memory_space<vmem>>, vector<1x1x14x14xf32>
    %311 = vector.shape_cast %310 : vector<1x1x14x14xf32> to vector<14x14xf32>
    %c11 = arith.constant 11 : index
    %312 = memref.load %arg1[%c11] : memref<162xf32, #tpu.memory_space<smem>>
    %313 = vector.broadcast %312 : f32 to vector<14x14xf32>
    %314 = arith.mulf %311, %313 : vector<14x14xf32>
    %315 = arith.addf %289, %314 : vector<14x14xf32>
    %c38 = arith.constant 38 : index
    %316 = memref.load %arg1[%c38] : memref<162xf32, #tpu.memory_space<smem>>
    %317 = vector.broadcast %316 : f32 to vector<14x14xf32>
    %318 = arith.mulf %311, %317 : vector<14x14xf32>
    %319 = arith.addf %293, %318 : vector<14x14xf32>
    %c65 = arith.constant 65 : index
    %320 = memref.load %arg1[%c65] : memref<162xf32, #tpu.memory_space<smem>>
    %321 = vector.broadcast %320 : f32 to vector<14x14xf32>
    %322 = arith.mulf %311, %321 : vector<14x14xf32>
    %323 = arith.addf %297, %322 : vector<14x14xf32>
    %c92 = arith.constant 92 : index
    %324 = memref.load %arg1[%c92] : memref<162xf32, #tpu.memory_space<smem>>
    %325 = vector.broadcast %324 : f32 to vector<14x14xf32>
    %326 = arith.mulf %311, %325 : vector<14x14xf32>
    %327 = arith.addf %301, %326 : vector<14x14xf32>
    %c119 = arith.constant 119 : index
    %328 = memref.load %arg1[%c119] : memref<162xf32, #tpu.memory_space<smem>>
    %329 = vector.broadcast %328 : f32 to vector<14x14xf32>
    %330 = arith.mulf %311, %329 : vector<14x14xf32>
    %331 = arith.addf %305, %330 : vector<14x14xf32>
    %c146 = arith.constant 146 : index
    %332 = memref.load %arg1[%c146] : memref<162xf32, #tpu.memory_space<smem>>
    %333 = vector.broadcast %332 : f32 to vector<14x14xf32>
    %334 = arith.mulf %311, %333 : vector<14x14xf32>
    %335 = arith.addf %309, %334 : vector<14x14xf32>
    %c0_59 = arith.constant 0 : index
    %c1_60 = arith.constant 1 : index
    %c1_61 = arith.constant 1 : index
    %c0_62 = arith.constant 0 : index
    %336 = vector.load %arg0[%c0_59, %c1_60, %c1_61, %c0_62] : memref<2x3x16x16xf32, #tpu.memory_space<vmem>>, vector<1x1x14x14xf32>
    %337 = vector.shape_cast %336 : vector<1x1x14x14xf32> to vector<14x14xf32>
    %c12 = arith.constant 12 : index
    %338 = memref.load %arg1[%c12] : memref<162xf32, #tpu.memory_space<smem>>
    %339 = vector.broadcast %338 : f32 to vector<14x14xf32>
    %340 = arith.mulf %337, %339 : vector<14x14xf32>
    %341 = arith.addf %315, %340 : vector<14x14xf32>
    %c39 = arith.constant 39 : index
    %342 = memref.load %arg1[%c39] : memref<162xf32, #tpu.memory_space<smem>>
    %343 = vector.broadcast %342 : f32 to vector<14x14xf32>
    %344 = arith.mulf %337, %343 : vector<14x14xf32>
    %345 = arith.addf %319, %344 : vector<14x14xf32>
    %c66 = arith.constant 66 : index
    %346 = memref.load %arg1[%c66] : memref<162xf32, #tpu.memory_space<smem>>
    %347 = vector.broadcast %346 : f32 to vector<14x14xf32>
    %348 = arith.mulf %337, %347 : vector<14x14xf32>
    %349 = arith.addf %323, %348 : vector<14x14xf32>
    %c93 = arith.constant 93 : index
    %350 = memref.load %arg1[%c93] : memref<162xf32, #tpu.memory_space<smem>>
    %351 = vector.broadcast %350 : f32 to vector<14x14xf32>
    %352 = arith.mulf %337, %351 : vector<14x14xf32>
    %353 = arith.addf %327, %352 : vector<14x14xf32>
    %c120 = arith.constant 120 : index
    %354 = memref.load %arg1[%c120] : memref<162xf32, #tpu.memory_space<smem>>
    %355 = vector.broadcast %354 : f32 to vector<14x14xf32>
    %356 = arith.mulf %337, %355 : vector<14x14xf32>
    %357 = arith.addf %331, %356 : vector<14x14xf32>
    %c147 = arith.constant 147 : index
    %358 = memref.load %arg1[%c147] : memref<162xf32, #tpu.memory_space<smem>>
    %359 = vector.broadcast %358 : f32 to vector<14x14xf32>
    %360 = arith.mulf %337, %359 : vector<14x14xf32>
    %361 = arith.addf %335, %360 : vector<14x14xf32>
    %c0_63 = arith.constant 0 : index
    %c1_64 = arith.constant 1 : index
    %c1_65 = arith.constant 1 : index
    %c1_66 = arith.constant 1 : index
    %362 = vector.load %arg0[%c0_63, %c1_64, %c1_65, %c1_66] : memref<2x3x16x16xf32, #tpu.memory_space<vmem>>, vector<1x1x14x14xf32>
    %363 = vector.shape_cast %362 : vector<1x1x14x14xf32> to vector<14x14xf32>
    %c13 = arith.constant 13 : index
    %364 = memref.load %arg1[%c13] : memref<162xf32, #tpu.memory_space<smem>>
    %365 = vector.broadcast %364 : f32 to vector<14x14xf32>
    %366 = arith.mulf %363, %365 : vector<14x14xf32>
    %367 = arith.addf %341, %366 : vector<14x14xf32>
    %c40 = arith.constant 40 : index
    %368 = memref.load %arg1[%c40] : memref<162xf32, #tpu.memory_space<smem>>
    %369 = vector.broadcast %368 : f32 to vector<14x14xf32>
    %370 = arith.mulf %363, %369 : vector<14x14xf32>
    %371 = arith.addf %345, %370 : vector<14x14xf32>
    %c67 = arith.constant 67 : index
    %372 = memref.load %arg1[%c67] : memref<162xf32, #tpu.memory_space<smem>>
    %373 = vector.broadcast %372 : f32 to vector<14x14xf32>
    %374 = arith.mulf %363, %373 : vector<14x14xf32>
    %375 = arith.addf %349, %374 : vector<14x14xf32>
    %c94 = arith.constant 94 : index
    %376 = memref.load %arg1[%c94] : memref<162xf32, #tpu.memory_space<smem>>
    %377 = vector.broadcast %376 : f32 to vector<14x14xf32>
    %378 = arith.mulf %363, %377 : vector<14x14xf32>
    %379 = arith.addf %353, %378 : vector<14x14xf32>
    %c121 = arith.constant 121 : index
    %380 = memref.load %arg1[%c121] : memref<162xf32, #tpu.memory_space<smem>>
    %381 = vector.broadcast %380 : f32 to vector<14x14xf32>
    %382 = arith.mulf %363, %381 : vector<14x14xf32>
    %383 = arith.addf %357, %382 : vector<14x14xf32>
    %c148 = arith.constant 148 : index
    %384 = memref.load %arg1[%c148] : memref<162xf32, #tpu.memory_space<smem>>
    %385 = vector.broadcast %384 : f32 to vector<14x14xf32>
    %386 = arith.mulf %363, %385 : vector<14x14xf32>
    %387 = arith.addf %361, %386 : vector<14x14xf32>
    %c0_67 = arith.constant 0 : index
    %c1_68 = arith.constant 1 : index
    %c1_69 = arith.constant 1 : index
    %c2_70 = arith.constant 2 : index
    %388 = vector.load %arg0[%c0_67, %c1_68, %c1_69, %c2_70] : memref<2x3x16x16xf32, #tpu.memory_space<vmem>>, vector<1x1x14x14xf32>
    %389 = vector.shape_cast %388 : vector<1x1x14x14xf32> to vector<14x14xf32>
    %c14 = arith.constant 14 : index
    %390 = memref.load %arg1[%c14] : memref<162xf32, #tpu.memory_space<smem>>
    %391 = vector.broadcast %390 : f32 to vector<14x14xf32>
    %392 = arith.mulf %389, %391 : vector<14x14xf32>
    %393 = arith.addf %367, %392 : vector<14x14xf32>
    %c41 = arith.constant 41 : index
    %394 = memref.load %arg1[%c41] : memref<162xf32, #tpu.memory_space<smem>>
    %395 = vector.broadcast %394 : f32 to vector<14x14xf32>
    %396 = arith.mulf %389, %395 : vector<14x14xf32>
    %397 = arith.addf %371, %396 : vector<14x14xf32>
    %c68 = arith.constant 68 : index
    %398 = memref.load %arg1[%c68] : memref<162xf32, #tpu.memory_space<smem>>
    %399 = vector.broadcast %398 : f32 to vector<14x14xf32>
    %400 = arith.mulf %389, %399 : vector<14x14xf32>
    %401 = arith.addf %375, %400 : vector<14x14xf32>
    %c95 = arith.constant 95 : index
    %402 = memref.load %arg1[%c95] : memref<162xf32, #tpu.memory_space<smem>>
    %403 = vector.broadcast %402 : f32 to vector<14x14xf32>
    %404 = arith.mulf %389, %403 : vector<14x14xf32>
    %405 = arith.addf %379, %404 : vector<14x14xf32>
    %c122 = arith.constant 122 : index
    %406 = memref.load %arg1[%c122] : memref<162xf32, #tpu.memory_space<smem>>
    %407 = vector.broadcast %406 : f32 to vector<14x14xf32>
    %408 = arith.mulf %389, %407 : vector<14x14xf32>
    %409 = arith.addf %383, %408 : vector<14x14xf32>
    %c149 = arith.constant 149 : index
    %410 = memref.load %arg1[%c149] : memref<162xf32, #tpu.memory_space<smem>>
    %411 = vector.broadcast %410 : f32 to vector<14x14xf32>
    %412 = arith.mulf %389, %411 : vector<14x14xf32>
    %413 = arith.addf %387, %412 : vector<14x14xf32>
    %c0_71 = arith.constant 0 : index
    %c1_72 = arith.constant 1 : index
    %c2_73 = arith.constant 2 : index
    %c0_74 = arith.constant 0 : index
    %414 = vector.load %arg0[%c0_71, %c1_72, %c2_73, %c0_74] : memref<2x3x16x16xf32, #tpu.memory_space<vmem>>, vector<1x1x14x14xf32>
    %415 = vector.shape_cast %414 : vector<1x1x14x14xf32> to vector<14x14xf32>
    %c15 = arith.constant 15 : index
    %416 = memref.load %arg1[%c15] : memref<162xf32, #tpu.memory_space<smem>>
    %417 = vector.broadcast %416 : f32 to vector<14x14xf32>
    %418 = arith.mulf %415, %417 : vector<14x14xf32>
    %419 = arith.addf %393, %418 : vector<14x14xf32>
    %c42 = arith.constant 42 : index
    %420 = memref.load %arg1[%c42] : memref<162xf32, #tpu.memory_space<smem>>
    %421 = vector.broadcast %420 : f32 to vector<14x14xf32>
    %422 = arith.mulf %415, %421 : vector<14x14xf32>
    %423 = arith.addf %397, %422 : vector<14x14xf32>
    %c69 = arith.constant 69 : index
    %424 = memref.load %arg1[%c69] : memref<162xf32, #tpu.memory_space<smem>>
    %425 = vector.broadcast %424 : f32 to vector<14x14xf32>
    %426 = arith.mulf %415, %425 : vector<14x14xf32>
    %427 = arith.addf %401, %426 : vector<14x14xf32>
    %c96 = arith.constant 96 : index
    %428 = memref.load %arg1[%c96] : memref<162xf32, #tpu.memory_space<smem>>
    %429 = vector.broadcast %428 : f32 to vector<14x14xf32>
    %430 = arith.mulf %415, %429 : vector<14x14xf32>
    %431 = arith.addf %405, %430 : vector<14x14xf32>
    %c123 = arith.constant 123 : index
    %432 = memref.load %arg1[%c123] : memref<162xf32, #tpu.memory_space<smem>>
    %433 = vector.broadcast %432 : f32 to vector<14x14xf32>
    %434 = arith.mulf %415, %433 : vector<14x14xf32>
    %435 = arith.addf %409, %434 : vector<14x14xf32>
    %c150 = arith.constant 150 : index
    %436 = memref.load %arg1[%c150] : memref<162xf32, #tpu.memory_space<smem>>
    %437 = vector.broadcast %436 : f32 to vector<14x14xf32>
    %438 = arith.mulf %415, %437 : vector<14x14xf32>
    %439 = arith.addf %413, %438 : vector<14x14xf32>
    %c0_75 = arith.constant 0 : index
    %c1_76 = arith.constant 1 : index
    %c2_77 = arith.constant 2 : index
    %c1_78 = arith.constant 1 : index
    %440 = vector.load %arg0[%c0_75, %c1_76, %c2_77, %c1_78] : memref<2x3x16x16xf32, #tpu.memory_space<vmem>>, vector<1x1x14x14xf32>
    %441 = vector.shape_cast %440 : vector<1x1x14x14xf32> to vector<14x14xf32>
    %c16 = arith.constant 16 : index
    %442 = memref.load %arg1[%c16] : memref<162xf32, #tpu.memory_space<smem>>
    %443 = vector.broadcast %442 : f32 to vector<14x14xf32>
    %444 = arith.mulf %441, %443 : vector<14x14xf32>
    %445 = arith.addf %419, %444 : vector<14x14xf32>
    %c43 = arith.constant 43 : index
    %446 = memref.load %arg1[%c43] : memref<162xf32, #tpu.memory_space<smem>>
    %447 = vector.broadcast %446 : f32 to vector<14x14xf32>
    %448 = arith.mulf %441, %447 : vector<14x14xf32>
    %449 = arith.addf %423, %448 : vector<14x14xf32>
    %c70 = arith.constant 70 : index
    %450 = memref.load %arg1[%c70] : memref<162xf32, #tpu.memory_space<smem>>
    %451 = vector.broadcast %450 : f32 to vector<14x14xf32>
    %452 = arith.mulf %441, %451 : vector<14x14xf32>
    %453 = arith.addf %427, %452 : vector<14x14xf32>
    %c97 = arith.constant 97 : index
    %454 = memref.load %arg1[%c97] : memref<162xf32, #tpu.memory_space<smem>>
    %455 = vector.broadcast %454 : f32 to vector<14x14xf32>
    %456 = arith.mulf %441, %455 : vector<14x14xf32>
    %457 = arith.addf %431, %456 : vector<14x14xf32>
    %c124 = arith.constant 124 : index
    %458 = memref.load %arg1[%c124] : memref<162xf32, #tpu.memory_space<smem>>
    %459 = vector.broadcast %458 : f32 to vector<14x14xf32>
    %460 = arith.mulf %441, %459 : vector<14x14xf32>
    %461 = arith.addf %435, %460 : vector<14x14xf32>
    %c151 = arith.constant 151 : index
    %462 = memref.load %arg1[%c151] : memref<162xf32, #tpu.memory_space<smem>>
    %463 = vector.broadcast %462 : f32 to vector<14x14xf32>
    %464 = arith.mulf %441, %463 : vector<14x14xf32>
    %465 = arith.addf %439, %464 : vector<14x14xf32>
    %c0_79 = arith.constant 0 : index
    %c1_80 = arith.constant 1 : index
    %c2_81 = arith.constant 2 : index
    %c2_82 = arith.constant 2 : index
    %466 = vector.load %arg0[%c0_79, %c1_80, %c2_81, %c2_82] : memref<2x3x16x16xf32, #tpu.memory_space<vmem>>, vector<1x1x14x14xf32>
    %467 = vector.shape_cast %466 : vector<1x1x14x14xf32> to vector<14x14xf32>
    %c17 = arith.constant 17 : index
    %468 = memref.load %arg1[%c17] : memref<162xf32, #tpu.memory_space<smem>>
    %469 = vector.broadcast %468 : f32 to vector<14x14xf32>
    %470 = arith.mulf %467, %469 : vector<14x14xf32>
    %471 = arith.addf %445, %470 : vector<14x14xf32>
    %c44 = arith.constant 44 : index
    %472 = memref.load %arg1[%c44] : memref<162xf32, #tpu.memory_space<smem>>
    %473 = vector.broadcast %472 : f32 to vector<14x14xf32>
    %474 = arith.mulf %467, %473 : vector<14x14xf32>
    %475 = arith.addf %449, %474 : vector<14x14xf32>
    %c71 = arith.constant 71 : index
    %476 = memref.load %arg1[%c71] : memref<162xf32, #tpu.memory_space<smem>>
    %477 = vector.broadcast %476 : f32 to vector<14x14xf32>
    %478 = arith.mulf %467, %477 : vector<14x14xf32>
    %479 = arith.addf %453, %478 : vector<14x14xf32>
    %c98 = arith.constant 98 : index
    %480 = memref.load %arg1[%c98] : memref<162xf32, #tpu.memory_space<smem>>
    %481 = vector.broadcast %480 : f32 to vector<14x14xf32>
    %482 = arith.mulf %467, %481 : vector<14x14xf32>
    %483 = arith.addf %457, %482 : vector<14x14xf32>
    %c125 = arith.constant 125 : index
    %484 = memref.load %arg1[%c125] : memref<162xf32, #tpu.memory_space<smem>>
    %485 = vector.broadcast %484 : f32 to vector<14x14xf32>
    %486 = arith.mulf %467, %485 : vector<14x14xf32>
    %487 = arith.addf %461, %486 : vector<14x14xf32>
    %c152 = arith.constant 152 : index
    %488 = memref.load %arg1[%c152] : memref<162xf32, #tpu.memory_space<smem>>
    %489 = vector.broadcast %488 : f32 to vector<14x14xf32>
    %490 = arith.mulf %467, %489 : vector<14x14xf32>
    %491 = arith.addf %465, %490 : vector<14x14xf32>
    %c0_83 = arith.constant 0 : index
    %c2_84 = arith.constant 2 : index
    %c0_85 = arith.constant 0 : index
    %c0_86 = arith.constant 0 : index
    %492 = vector.load %arg0[%c0_83, %c2_84, %c0_85, %c0_86] : memref<2x3x16x16xf32, #tpu.memory_space<vmem>>, vector<1x1x14x14xf32>
    %493 = vector.shape_cast %492 : vector<1x1x14x14xf32> to vector<14x14xf32>
    %c18 = arith.constant 18 : index
    %494 = memref.load %arg1[%c18] : memref<162xf32, #tpu.memory_space<smem>>
    %495 = vector.broadcast %494 : f32 to vector<14x14xf32>
    %496 = arith.mulf %493, %495 : vector<14x14xf32>
    %497 = arith.addf %471, %496 : vector<14x14xf32>
    %c45 = arith.constant 45 : index
    %498 = memref.load %arg1[%c45] : memref<162xf32, #tpu.memory_space<smem>>
    %499 = vector.broadcast %498 : f32 to vector<14x14xf32>
    %500 = arith.mulf %493, %499 : vector<14x14xf32>
    %501 = arith.addf %475, %500 : vector<14x14xf32>
    %c72 = arith.constant 72 : index
    %502 = memref.load %arg1[%c72] : memref<162xf32, #tpu.memory_space<smem>>
    %503 = vector.broadcast %502 : f32 to vector<14x14xf32>
    %504 = arith.mulf %493, %503 : vector<14x14xf32>
    %505 = arith.addf %479, %504 : vector<14x14xf32>
    %c99 = arith.constant 99 : index
    %506 = memref.load %arg1[%c99] : memref<162xf32, #tpu.memory_space<smem>>
    %507 = vector.broadcast %506 : f32 to vector<14x14xf32>
    %508 = arith.mulf %493, %507 : vector<14x14xf32>
    %509 = arith.addf %483, %508 : vector<14x14xf32>
    %c126 = arith.constant 126 : index
    %510 = memref.load %arg1[%c126] : memref<162xf32, #tpu.memory_space<smem>>
    %511 = vector.broadcast %510 : f32 to vector<14x14xf32>
    %512 = arith.mulf %493, %511 : vector<14x14xf32>
    %513 = arith.addf %487, %512 : vector<14x14xf32>
    %c153 = arith.constant 153 : index
    %514 = memref.load %arg1[%c153] : memref<162xf32, #tpu.memory_space<smem>>
    %515 = vector.broadcast %514 : f32 to vector<14x14xf32>
    %516 = arith.mulf %493, %515 : vector<14x14xf32>
    %517 = arith.addf %491, %516 : vector<14x14xf32>
    %c0_87 = arith.constant 0 : index
    %c2_88 = arith.constant 2 : index
    %c0_89 = arith.constant 0 : index
    %c1_90 = arith.constant 1 : index
    %518 = vector.load %arg0[%c0_87, %c2_88, %c0_89, %c1_90] : memref<2x3x16x16xf32, #tpu.memory_space<vmem>>, vector<1x1x14x14xf32>
    %519 = vector.shape_cast %518 : vector<1x1x14x14xf32> to vector<14x14xf32>
    %c19 = arith.constant 19 : index
    %520 = memref.load %arg1[%c19] : memref<162xf32, #tpu.memory_space<smem>>
    %521 = vector.broadcast %520 : f32 to vector<14x14xf32>
    %522 = arith.mulf %519, %521 : vector<14x14xf32>
    %523 = arith.addf %497, %522 : vector<14x14xf32>
    %c46 = arith.constant 46 : index
    %524 = memref.load %arg1[%c46] : memref<162xf32, #tpu.memory_space<smem>>
    %525 = vector.broadcast %524 : f32 to vector<14x14xf32>
    %526 = arith.mulf %519, %525 : vector<14x14xf32>
    %527 = arith.addf %501, %526 : vector<14x14xf32>
    %c73 = arith.constant 73 : index
    %528 = memref.load %arg1[%c73] : memref<162xf32, #tpu.memory_space<smem>>
    %529 = vector.broadcast %528 : f32 to vector<14x14xf32>
    %530 = arith.mulf %519, %529 : vector<14x14xf32>
    %531 = arith.addf %505, %530 : vector<14x14xf32>
    %c100 = arith.constant 100 : index
    %532 = memref.load %arg1[%c100] : memref<162xf32, #tpu.memory_space<smem>>
    %533 = vector.broadcast %532 : f32 to vector<14x14xf32>
    %534 = arith.mulf %519, %533 : vector<14x14xf32>
    %535 = arith.addf %509, %534 : vector<14x14xf32>
    %c127 = arith.constant 127 : index
    %536 = memref.load %arg1[%c127] : memref<162xf32, #tpu.memory_space<smem>>
    %537 = vector.broadcast %536 : f32 to vector<14x14xf32>
    %538 = arith.mulf %519, %537 : vector<14x14xf32>
    %539 = arith.addf %513, %538 : vector<14x14xf32>
    %c154 = arith.constant 154 : index
    %540 = memref.load %arg1[%c154] : memref<162xf32, #tpu.memory_space<smem>>
    %541 = vector.broadcast %540 : f32 to vector<14x14xf32>
    %542 = arith.mulf %519, %541 : vector<14x14xf32>
    %543 = arith.addf %517, %542 : vector<14x14xf32>
    %c0_91 = arith.constant 0 : index
    %c2_92 = arith.constant 2 : index
    %c0_93 = arith.constant 0 : index
    %c2_94 = arith.constant 2 : index
    %544 = vector.load %arg0[%c0_91, %c2_92, %c0_93, %c2_94] : memref<2x3x16x16xf32, #tpu.memory_space<vmem>>, vector<1x1x14x14xf32>
    %545 = vector.shape_cast %544 : vector<1x1x14x14xf32> to vector<14x14xf32>
    %c20 = arith.constant 20 : index
    %546 = memref.load %arg1[%c20] : memref<162xf32, #tpu.memory_space<smem>>
    %547 = vector.broadcast %546 : f32 to vector<14x14xf32>
    %548 = arith.mulf %545, %547 : vector<14x14xf32>
    %549 = arith.addf %523, %548 : vector<14x14xf32>
    %c47 = arith.constant 47 : index
    %550 = memref.load %arg1[%c47] : memref<162xf32, #tpu.memory_space<smem>>
    %551 = vector.broadcast %550 : f32 to vector<14x14xf32>
    %552 = arith.mulf %545, %551 : vector<14x14xf32>
    %553 = arith.addf %527, %552 : vector<14x14xf32>
    %c74 = arith.constant 74 : index
    %554 = memref.load %arg1[%c74] : memref<162xf32, #tpu.memory_space<smem>>
    %555 = vector.broadcast %554 : f32 to vector<14x14xf32>
    %556 = arith.mulf %545, %555 : vector<14x14xf32>
    %557 = arith.addf %531, %556 : vector<14x14xf32>
    %c101 = arith.constant 101 : index
    %558 = memref.load %arg1[%c101] : memref<162xf32, #tpu.memory_space<smem>>
    %559 = vector.broadcast %558 : f32 to vector<14x14xf32>
    %560 = arith.mulf %545, %559 : vector<14x14xf32>
    %561 = arith.addf %535, %560 : vector<14x14xf32>
    %c128 = arith.constant 128 : index
    %562 = memref.load %arg1[%c128] : memref<162xf32, #tpu.memory_space<smem>>
    %563 = vector.broadcast %562 : f32 to vector<14x14xf32>
    %564 = arith.mulf %545, %563 : vector<14x14xf32>
    %565 = arith.addf %539, %564 : vector<14x14xf32>
    %c155 = arith.constant 155 : index
    %566 = memref.load %arg1[%c155] : memref<162xf32, #tpu.memory_space<smem>>
    %567 = vector.broadcast %566 : f32 to vector<14x14xf32>
    %568 = arith.mulf %545, %567 : vector<14x14xf32>
    %569 = arith.addf %543, %568 : vector<14x14xf32>
    %c0_95 = arith.constant 0 : index
    %c2_96 = arith.constant 2 : index
    %c1_97 = arith.constant 1 : index
    %c0_98 = arith.constant 0 : index
    %570 = vector.load %arg0[%c0_95, %c2_96, %c1_97, %c0_98] : memref<2x3x16x16xf32, #tpu.memory_space<vmem>>, vector<1x1x14x14xf32>
    %571 = vector.shape_cast %570 : vector<1x1x14x14xf32> to vector<14x14xf32>
    %c21 = arith.constant 21 : index
    %572 = memref.load %arg1[%c21] : memref<162xf32, #tpu.memory_space<smem>>
    %573 = vector.broadcast %572 : f32 to vector<14x14xf32>
    %574 = arith.mulf %571, %573 : vector<14x14xf32>
    %575 = arith.addf %549, %574 : vector<14x14xf32>
    %c48 = arith.constant 48 : index
    %576 = memref.load %arg1[%c48] : memref<162xf32, #tpu.memory_space<smem>>
    %577 = vector.broadcast %576 : f32 to vector<14x14xf32>
    %578 = arith.mulf %571, %577 : vector<14x14xf32>
    %579 = arith.addf %553, %578 : vector<14x14xf32>
    %c75 = arith.constant 75 : index
    %580 = memref.load %arg1[%c75] : memref<162xf32, #tpu.memory_space<smem>>
    %581 = vector.broadcast %580 : f32 to vector<14x14xf32>
    %582 = arith.mulf %571, %581 : vector<14x14xf32>
    %583 = arith.addf %557, %582 : vector<14x14xf32>
    %c102 = arith.constant 102 : index
    %584 = memref.load %arg1[%c102] : memref<162xf32, #tpu.memory_space<smem>>
    %585 = vector.broadcast %584 : f32 to vector<14x14xf32>
    %586 = arith.mulf %571, %585 : vector<14x14xf32>
    %587 = arith.addf %561, %586 : vector<14x14xf32>
    %c129 = arith.constant 129 : index
    %588 = memref.load %arg1[%c129] : memref<162xf32, #tpu.memory_space<smem>>
    %589 = vector.broadcast %588 : f32 to vector<14x14xf32>
    %590 = arith.mulf %571, %589 : vector<14x14xf32>
    %591 = arith.addf %565, %590 : vector<14x14xf32>
    %c156 = arith.constant 156 : index
    %592 = memref.load %arg1[%c156] : memref<162xf32, #tpu.memory_space<smem>>
    %593 = vector.broadcast %592 : f32 to vector<14x14xf32>
    %594 = arith.mulf %571, %593 : vector<14x14xf32>
    %595 = arith.addf %569, %594 : vector<14x14xf32>
    %c0_99 = arith.constant 0 : index
    %c2_100 = arith.constant 2 : index
    %c1_101 = arith.constant 1 : index
    %c1_102 = arith.constant 1 : index
    %596 = vector.load %arg0[%c0_99, %c2_100, %c1_101, %c1_102] : memref<2x3x16x16xf32, #tpu.memory_space<vmem>>, vector<1x1x14x14xf32>
    %597 = vector.shape_cast %596 : vector<1x1x14x14xf32> to vector<14x14xf32>
    %c22 = arith.constant 22 : index
    %598 = memref.load %arg1[%c22] : memref<162xf32, #tpu.memory_space<smem>>
    %599 = vector.broadcast %598 : f32 to vector<14x14xf32>
    %600 = arith.mulf %597, %599 : vector<14x14xf32>
    %601 = arith.addf %575, %600 : vector<14x14xf32>
    %c49 = arith.constant 49 : index
    %602 = memref.load %arg1[%c49] : memref<162xf32, #tpu.memory_space<smem>>
    %603 = vector.broadcast %602 : f32 to vector<14x14xf32>
    %604 = arith.mulf %597, %603 : vector<14x14xf32>
    %605 = arith.addf %579, %604 : vector<14x14xf32>
    %c76 = arith.constant 76 : index
    %606 = memref.load %arg1[%c76] : memref<162xf32, #tpu.memory_space<smem>>
    %607 = vector.broadcast %606 : f32 to vector<14x14xf32>
    %608 = arith.mulf %597, %607 : vector<14x14xf32>
    %609 = arith.addf %583, %608 : vector<14x14xf32>
    %c103 = arith.constant 103 : index
    %610 = memref.load %arg1[%c103] : memref<162xf32, #tpu.memory_space<smem>>
    %611 = vector.broadcast %610 : f32 to vector<14x14xf32>
    %612 = arith.mulf %597, %611 : vector<14x14xf32>
    %613 = arith.addf %587, %612 : vector<14x14xf32>
    %c130 = arith.constant 130 : index
    %614 = memref.load %arg1[%c130] : memref<162xf32, #tpu.memory_space<smem>>
    %615 = vector.broadcast %614 : f32 to vector<14x14xf32>
    %616 = arith.mulf %597, %615 : vector<14x14xf32>
    %617 = arith.addf %591, %616 : vector<14x14xf32>
    %c157 = arith.constant 157 : index
    %618 = memref.load %arg1[%c157] : memref<162xf32, #tpu.memory_space<smem>>
    %619 = vector.broadcast %618 : f32 to vector<14x14xf32>
    %620 = arith.mulf %597, %619 : vector<14x14xf32>
    %621 = arith.addf %595, %620 : vector<14x14xf32>
    %c0_103 = arith.constant 0 : index
    %c2_104 = arith.constant 2 : index
    %c1_105 = arith.constant 1 : index
    %c2_106 = arith.constant 2 : index
    %622 = vector.load %arg0[%c0_103, %c2_104, %c1_105, %c2_106] : memref<2x3x16x16xf32, #tpu.memory_space<vmem>>, vector<1x1x14x14xf32>
    %623 = vector.shape_cast %622 : vector<1x1x14x14xf32> to vector<14x14xf32>
    %c23 = arith.constant 23 : index
    %624 = memref.load %arg1[%c23] : memref<162xf32, #tpu.memory_space<smem>>
    %625 = vector.broadcast %624 : f32 to vector<14x14xf32>
    %626 = arith.mulf %623, %625 : vector<14x14xf32>
    %627 = arith.addf %601, %626 : vector<14x14xf32>
    %c50 = arith.constant 50 : index
    %628 = memref.load %arg1[%c50] : memref<162xf32, #tpu.memory_space<smem>>
    %629 = vector.broadcast %628 : f32 to vector<14x14xf32>
    %630 = arith.mulf %623, %629 : vector<14x14xf32>
    %631 = arith.addf %605, %630 : vector<14x14xf32>
    %c77 = arith.constant 77 : index
    %632 = memref.load %arg1[%c77] : memref<162xf32, #tpu.memory_space<smem>>
    %633 = vector.broadcast %632 : f32 to vector<14x14xf32>
    %634 = arith.mulf %623, %633 : vector<14x14xf32>
    %635 = arith.addf %609, %634 : vector<14x14xf32>
    %c104 = arith.constant 104 : index
    %636 = memref.load %arg1[%c104] : memref<162xf32, #tpu.memory_space<smem>>
    %637 = vector.broadcast %636 : f32 to vector<14x14xf32>
    %638 = arith.mulf %623, %637 : vector<14x14xf32>
    %639 = arith.addf %613, %638 : vector<14x14xf32>
    %c131 = arith.constant 131 : index
    %640 = memref.load %arg1[%c131] : memref<162xf32, #tpu.memory_space<smem>>
    %641 = vector.broadcast %640 : f32 to vector<14x14xf32>
    %642 = arith.mulf %623, %641 : vector<14x14xf32>
    %643 = arith.addf %617, %642 : vector<14x14xf32>
    %c158 = arith.constant 158 : index
    %644 = memref.load %arg1[%c158] : memref<162xf32, #tpu.memory_space<smem>>
    %645 = vector.broadcast %644 : f32 to vector<14x14xf32>
    %646 = arith.mulf %623, %645 : vector<14x14xf32>
    %647 = arith.addf %621, %646 : vector<14x14xf32>
    %c0_107 = arith.constant 0 : index
    %c2_108 = arith.constant 2 : index
    %c2_109 = arith.constant 2 : index
    %c0_110 = arith.constant 0 : index
    %648 = vector.load %arg0[%c0_107, %c2_108, %c2_109, %c0_110] : memref<2x3x16x16xf32, #tpu.memory_space<vmem>>, vector<1x1x14x14xf32>
    %649 = vector.shape_cast %648 : vector<1x1x14x14xf32> to vector<14x14xf32>
    %c24 = arith.constant 24 : index
    %650 = memref.load %arg1[%c24] : memref<162xf32, #tpu.memory_space<smem>>
    %651 = vector.broadcast %650 : f32 to vector<14x14xf32>
    %652 = arith.mulf %649, %651 : vector<14x14xf32>
    %653 = arith.addf %627, %652 : vector<14x14xf32>
    %c51 = arith.constant 51 : index
    %654 = memref.load %arg1[%c51] : memref<162xf32, #tpu.memory_space<smem>>
    %655 = vector.broadcast %654 : f32 to vector<14x14xf32>
    %656 = arith.mulf %649, %655 : vector<14x14xf32>
    %657 = arith.addf %631, %656 : vector<14x14xf32>
    %c78 = arith.constant 78 : index
    %658 = memref.load %arg1[%c78] : memref<162xf32, #tpu.memory_space<smem>>
    %659 = vector.broadcast %658 : f32 to vector<14x14xf32>
    %660 = arith.mulf %649, %659 : vector<14x14xf32>
    %661 = arith.addf %635, %660 : vector<14x14xf32>
    %c105 = arith.constant 105 : index
    %662 = memref.load %arg1[%c105] : memref<162xf32, #tpu.memory_space<smem>>
    %663 = vector.broadcast %662 : f32 to vector<14x14xf32>
    %664 = arith.mulf %649, %663 : vector<14x14xf32>
    %665 = arith.addf %639, %664 : vector<14x14xf32>
    %c132 = arith.constant 132 : index
    %666 = memref.load %arg1[%c132] : memref<162xf32, #tpu.memory_space<smem>>
    %667 = vector.broadcast %666 : f32 to vector<14x14xf32>
    %668 = arith.mulf %649, %667 : vector<14x14xf32>
    %669 = arith.addf %643, %668 : vector<14x14xf32>
    %c159 = arith.constant 159 : index
    %670 = memref.load %arg1[%c159] : memref<162xf32, #tpu.memory_space<smem>>
    %671 = vector.broadcast %670 : f32 to vector<14x14xf32>
    %672 = arith.mulf %649, %671 : vector<14x14xf32>
    %673 = arith.addf %647, %672 : vector<14x14xf32>
    %c0_111 = arith.constant 0 : index
    %c2_112 = arith.constant 2 : index
    %c2_113 = arith.constant 2 : index
    %c1_114 = arith.constant 1 : index
    %674 = vector.load %arg0[%c0_111, %c2_112, %c2_113, %c1_114] : memref<2x3x16x16xf32, #tpu.memory_space<vmem>>, vector<1x1x14x14xf32>
    %675 = vector.shape_cast %674 : vector<1x1x14x14xf32> to vector<14x14xf32>
    %c25 = arith.constant 25 : index
    %676 = memref.load %arg1[%c25] : memref<162xf32, #tpu.memory_space<smem>>
    %677 = vector.broadcast %676 : f32 to vector<14x14xf32>
    %678 = arith.mulf %675, %677 : vector<14x14xf32>
    %679 = arith.addf %653, %678 : vector<14x14xf32>
    %c52 = arith.constant 52 : index
    %680 = memref.load %arg1[%c52] : memref<162xf32, #tpu.memory_space<smem>>
    %681 = vector.broadcast %680 : f32 to vector<14x14xf32>
    %682 = arith.mulf %675, %681 : vector<14x14xf32>
    %683 = arith.addf %657, %682 : vector<14x14xf32>
    %c79 = arith.constant 79 : index
    %684 = memref.load %arg1[%c79] : memref<162xf32, #tpu.memory_space<smem>>
    %685 = vector.broadcast %684 : f32 to vector<14x14xf32>
    %686 = arith.mulf %675, %685 : vector<14x14xf32>
    %687 = arith.addf %661, %686 : vector<14x14xf32>
    %c106 = arith.constant 106 : index
    %688 = memref.load %arg1[%c106] : memref<162xf32, #tpu.memory_space<smem>>
    %689 = vector.broadcast %688 : f32 to vector<14x14xf32>
    %690 = arith.mulf %675, %689 : vector<14x14xf32>
    %691 = arith.addf %665, %690 : vector<14x14xf32>
    %c133 = arith.constant 133 : index
    %692 = memref.load %arg1[%c133] : memref<162xf32, #tpu.memory_space<smem>>
    %693 = vector.broadcast %692 : f32 to vector<14x14xf32>
    %694 = arith.mulf %675, %693 : vector<14x14xf32>
    %695 = arith.addf %669, %694 : vector<14x14xf32>
    %c160 = arith.constant 160 : index
    %696 = memref.load %arg1[%c160] : memref<162xf32, #tpu.memory_space<smem>>
    %697 = vector.broadcast %696 : f32 to vector<14x14xf32>
    %698 = arith.mulf %675, %697 : vector<14x14xf32>
    %699 = arith.addf %673, %698 : vector<14x14xf32>
    %c0_115 = arith.constant 0 : index
    %c2_116 = arith.constant 2 : index
    %c2_117 = arith.constant 2 : index
    %c2_118 = arith.constant 2 : index
    %700 = vector.load %arg0[%c0_115, %c2_116, %c2_117, %c2_118] : memref<2x3x16x16xf32, #tpu.memory_space<vmem>>, vector<1x1x14x14xf32>
    %701 = vector.shape_cast %700 : vector<1x1x14x14xf32> to vector<14x14xf32>
    %c26 = arith.constant 26 : index
    %702 = memref.load %arg1[%c26] : memref<162xf32, #tpu.memory_space<smem>>
    %703 = vector.broadcast %702 : f32 to vector<14x14xf32>
    %704 = arith.mulf %701, %703 : vector<14x14xf32>
    %705 = arith.addf %679, %704 : vector<14x14xf32>
    %c53 = arith.constant 53 : index
    %706 = memref.load %arg1[%c53] : memref<162xf32, #tpu.memory_space<smem>>
    %707 = vector.broadcast %706 : f32 to vector<14x14xf32>
    %708 = arith.mulf %701, %707 : vector<14x14xf32>
    %709 = arith.addf %683, %708 : vector<14x14xf32>
    %c80 = arith.constant 80 : index
    %710 = memref.load %arg1[%c80] : memref<162xf32, #tpu.memory_space<smem>>
    %711 = vector.broadcast %710 : f32 to vector<14x14xf32>
    %712 = arith.mulf %701, %711 : vector<14x14xf32>
    %713 = arith.addf %687, %712 : vector<14x14xf32>
    %c107 = arith.constant 107 : index
    %714 = memref.load %arg1[%c107] : memref<162xf32, #tpu.memory_space<smem>>
    %715 = vector.broadcast %714 : f32 to vector<14x14xf32>
    %716 = arith.mulf %701, %715 : vector<14x14xf32>
    %717 = arith.addf %691, %716 : vector<14x14xf32>
    %c134 = arith.constant 134 : index
    %718 = memref.load %arg1[%c134] : memref<162xf32, #tpu.memory_space<smem>>
    %719 = vector.broadcast %718 : f32 to vector<14x14xf32>
    %720 = arith.mulf %701, %719 : vector<14x14xf32>
    %721 = arith.addf %695, %720 : vector<14x14xf32>
    %c161 = arith.constant 161 : index
    %722 = memref.load %arg1[%c161] : memref<162xf32, #tpu.memory_space<smem>>
    %723 = vector.broadcast %722 : f32 to vector<14x14xf32>
    %724 = arith.mulf %701, %723 : vector<14x14xf32>
    %725 = arith.addf %699, %724 : vector<14x14xf32>
    %c0_119 = arith.constant 0 : index
    %c0_120 = arith.constant 0 : index
    %c0_121 = arith.constant 0 : index
    %c0_122 = arith.constant 0 : index
    %726 = vector.load %arg3[%c0_119, %c0_120, %c0_121, %c0_122] : memref<2x6x14x14xf32, #tpu.memory_space<vmem>>, vector<1x1x14x14xf32>
    %727 = vector.shape_cast %726 : vector<1x1x14x14xf32> to vector<14x14xf32>
    %728 = vector.shape_cast %705 : vector<14x14xf32> to vector<1x1x14x14xf32>
    tpu.vector_store %arg3[%c0_119, %c0_120, %c0_121, %c0_122], %728 {strides = array<i32>} : memref<2x6x14x14xf32, #tpu.memory_space<vmem>>, vector<1x1x14x14xf32>,
    %c0_123 = arith.constant 0 : index
    %c1_124 = arith.constant 1 : index
    %c0_125 = arith.constant 0 : index
    %c0_126 = arith.constant 0 : index
    %729 = vector.load %arg3[%c0_123, %c1_124, %c0_125, %c0_126] : memref<2x6x14x14xf32, #tpu.memory_space<vmem>>, vector<1x1x14x14xf32>
    %730 = vector.shape_cast %729 : vector<1x1x14x14xf32> to vector<14x14xf32>
    %731 = vector.shape_cast %709 : vector<14x14xf32> to vector<1x1x14x14xf32>
    tpu.vector_store %arg3[%c0_123, %c1_124, %c0_125, %c0_126], %731 {strides = array<i32>} : memref<2x6x14x14xf32, #tpu.memory_space<vmem>>, vector<1x1x14x14xf32>,
    %c0_127 = arith.constant 0 : index
    %c2_128 = arith.constant 2 : index
    %c0_129 = arith.constant 0 : index
    %c0_130 = arith.constant 0 : index
    %732 = vector.load %arg3[%c0_127, %c2_128, %c0_129, %c0_130] : memref<2x6x14x14xf32, #tpu.memory_space<vmem>>, vector<1x1x14x14xf32>
    %733 = vector.shape_cast %732 : vector<1x1x14x14xf32> to vector<14x14xf32>
    %734 = vector.shape_cast %713 : vector<14x14xf32> to vector<1x1x14x14xf32>
    tpu.vector_store %arg3[%c0_127, %c2_128, %c0_129, %c0_130], %734 {strides = array<i32>} : memref<2x6x14x14xf32, #tpu.memory_space<vmem>>, vector<1x1x14x14xf32>,
    %c0_131 = arith.constant 0 : index
    %c3_132 = arith.constant 3 : index
    %c0_133 = arith.constant 0 : index
    %c0_134 = arith.constant 0 : index
    %735 = vector.load %arg3[%c0_131, %c3_132, %c0_133, %c0_134] : memref<2x6x14x14xf32, #tpu.memory_space<vmem>>, vector<1x1x14x14xf32>
    %736 = vector.shape_cast %735 : vector<1x1x14x14xf32> to vector<14x14xf32>
    %737 = vector.shape_cast %717 : vector<14x14xf32> to vector<1x1x14x14xf32>
    tpu.vector_store %arg3[%c0_131, %c3_132, %c0_133, %c0_134], %737 {strides = array<i32>} : memref<2x6x14x14xf32, #tpu.memory_space<vmem>>, vector<1x1x14x14xf32>,
    %c0_135 = arith.constant 0 : index
    %c4_136 = arith.constant 4 : index
    %c0_137 = arith.constant 0 : index
    %c0_138 = arith.constant 0 : index
    %738 = vector.load %arg3[%c0_135, %c4_136, %c0_137, %c0_138] : memref<2x6x14x14xf32, #tpu.memory_space<vmem>>, vector<1x1x14x14xf32>
    %739 = vector.shape_cast %738 : vector<1x1x14x14xf32> to vector<14x14xf32>
    %740 = vector.shape_cast %721 : vector<14x14xf32> to vector<1x1x14x14xf32>
    tpu.vector_store %arg3[%c0_135, %c4_136, %c0_137, %c0_138], %740 {strides = array<i32>} : memref<2x6x14x14xf32, #tpu.memory_space<vmem>>, vector<1x1x14x14xf32>,
    %c0_139 = arith.constant 0 : index
    %c5_140 = arith.constant 5 : index
    %c0_141 = arith.constant 0 : index
    %c0_142 = arith.constant 0 : index
    %741 = vector.load %arg3[%c0_139, %c5_140, %c0_141, %c0_142] : memref<2x6x14x14xf32, #tpu.memory_space<vmem>>, vector<1x1x14x14xf32>
    %742 = vector.shape_cast %741 : vector<1x1x14x14xf32> to vector<14x14xf32>
    %743 = vector.shape_cast %725 : vector<14x14xf32> to vector<1x1x14x14xf32>
    tpu.vector_store %arg3[%c0_139, %c5_140, %c0_141, %c0_142], %743 {strides = array<i32>} : memref<2x6x14x14xf32, #tpu.memory_space<vmem>>, vector<1x1x14x14xf32>,
    %cst_143 = arith.constant 0.000000e+00 : f32
    %744 = vector.broadcast %cst_143 : f32 to vector<14x14xf32>
    %c0_144 = arith.constant 0 : index
    %745 = memref.load %arg2[%c0_144] : memref<6xf32, #tpu.memory_space<smem>>
    %746 = vector.broadcast %745 : f32 to vector<14x14xf32>
    %747 = arith.addf %744, %746 : vector<14x14xf32>
    %cst_145 = arith.constant 0.000000e+00 : f32
    %748 = vector.broadcast %cst_145 : f32 to vector<14x14xf32>
    %c1_146 = arith.constant 1 : index
    %749 = memref.load %arg2[%c1_146] : memref<6xf32, #tpu.memory_space<smem>>
    %750 = vector.broadcast %749 : f32 to vector<14x14xf32>
    %751 = arith.addf %748, %750 : vector<14x14xf32>
    %cst_147 = arith.constant 0.000000e+00 : f32
    %752 = vector.broadcast %cst_147 : f32 to vector<14x14xf32>
    %c2_148 = arith.constant 2 : index
    %753 = memref.load %arg2[%c2_148] : memref<6xf32, #tpu.memory_space<smem>>
    %754 = vector.broadcast %753 : f32 to vector<14x14xf32>
    %755 = arith.addf %752, %754 : vector<14x14xf32>
    %cst_149 = arith.constant 0.000000e+00 : f32
    %756 = vector.broadcast %cst_149 : f32 to vector<14x14xf32>
    %c3_150 = arith.constant 3 : index
    %757 = memref.load %arg2[%c3_150] : memref<6xf32, #tpu.memory_space<smem>>
    %758 = vector.broadcast %757 : f32 to vector<14x14xf32>
    %759 = arith.addf %756, %758 : vector<14x14xf32>
    %cst_151 = arith.constant 0.000000e+00 : f32
    %760 = vector.broadcast %cst_151 : f32 to vector<14x14xf32>
    %c4_152 = arith.constant 4 : index
    %761 = memref.load %arg2[%c4_152] : memref<6xf32, #tpu.memory_space<smem>>
    %762 = vector.broadcast %761 : f32 to vector<14x14xf32>
    %763 = arith.addf %760, %762 : vector<14x14xf32>
    %cst_153 = arith.constant 0.000000e+00 : f32
    %764 = vector.broadcast %cst_153 : f32 to vector<14x14xf32>
    %c5_154 = arith.constant 5 : index
    %765 = memref.load %arg2[%c5_154] : memref<6xf32, #tpu.memory_space<smem>>
    %766 = vector.broadcast %765 : f32 to vector<14x14xf32>
    %767 = arith.addf %764, %766 : vector<14x14xf32>
    %c1_155 = arith.constant 1 : index
    %c0_156 = arith.constant 0 : index
    %c0_157 = arith.constant 0 : index
    %c0_158 = arith.constant 0 : index
    %768 = vector.load %arg0[%c1_155, %c0_156, %c0_157, %c0_158] : memref<2x3x16x16xf32, #tpu.memory_space<vmem>>, vector<1x1x14x14xf32>
    %769 = vector.shape_cast %768 : vector<1x1x14x14xf32> to vector<14x14xf32>
    %c0_159 = arith.constant 0 : index
    %770 = memref.load %arg1[%c0_159] : memref<162xf32, #tpu.memory_space<smem>>
    %771 = vector.broadcast %770 : f32 to vector<14x14xf32>
    %772 = arith.mulf %769, %771 : vector<14x14xf32>
    %773 = arith.addf %747, %772 : vector<14x14xf32>
    %c27_160 = arith.constant 27 : index
    %774 = memref.load %arg1[%c27_160] : memref<162xf32, #tpu.memory_space<smem>>
    %775 = vector.broadcast %774 : f32 to vector<14x14xf32>
    %776 = arith.mulf %769, %775 : vector<14x14xf32>
    %777 = arith.addf %751, %776 : vector<14x14xf32>
    %c54_161 = arith.constant 54 : index
    %778 = memref.load %arg1[%c54_161] : memref<162xf32, #tpu.memory_space<smem>>
    %779 = vector.broadcast %778 : f32 to vector<14x14xf32>
    %780 = arith.mulf %769, %779 : vector<14x14xf32>
    %781 = arith.addf %755, %780 : vector<14x14xf32>
    %c81_162 = arith.constant 81 : index
    %782 = memref.load %arg1[%c81_162] : memref<162xf32, #tpu.memory_space<smem>>
    %783 = vector.broadcast %782 : f32 to vector<14x14xf32>
    %784 = arith.mulf %769, %783 : vector<14x14xf32>
    %785 = arith.addf %759, %784 : vector<14x14xf32>
    %c108_163 = arith.constant 108 : index
    %786 = memref.load %arg1[%c108_163] : memref<162xf32, #tpu.memory_space<smem>>
    %787 = vector.broadcast %786 : f32 to vector<14x14xf32>
    %788 = arith.mulf %769, %787 : vector<14x14xf32>
    %789 = arith.addf %763, %788 : vector<14x14xf32>
    %c135_164 = arith.constant 135 : index
    %790 = memref.load %arg1[%c135_164] : memref<162xf32, #tpu.memory_space<smem>>
    %791 = vector.broadcast %790 : f32 to vector<14x14xf32>
    %792 = arith.mulf %769, %791 : vector<14x14xf32>
    %793 = arith.addf %767, %792 : vector<14x14xf32>
    %c1_165 = arith.constant 1 : index
    %c0_166 = arith.constant 0 : index
    %c0_167 = arith.constant 0 : index
    %c1_168 = arith.constant 1 : index
    %794 = vector.load %arg0[%c1_165, %c0_166, %c0_167, %c1_168] : memref<2x3x16x16xf32, #tpu.memory_space<vmem>>, vector<1x1x14x14xf32>
    %795 = vector.shape_cast %794 : vector<1x1x14x14xf32> to vector<14x14xf32>
    %c1_169 = arith.constant 1 : index
    %796 = memref.load %arg1[%c1_169] : memref<162xf32, #tpu.memory_space<smem>>
    %797 = vector.broadcast %796 : f32 to vector<14x14xf32>
    %798 = arith.mulf %795, %797 : vector<14x14xf32>
    %799 = arith.addf %773, %798 : vector<14x14xf32>
    %c28_170 = arith.constant 28 : index
    %800 = memref.load %arg1[%c28_170] : memref<162xf32, #tpu.memory_space<smem>>
    %801 = vector.broadcast %800 : f32 to vector<14x14xf32>
    %802 = arith.mulf %795, %801 : vector<14x14xf32>
    %803 = arith.addf %777, %802 : vector<14x14xf32>
    %c55_171 = arith.constant 55 : index
    %804 = memref.load %arg1[%c55_171] : memref<162xf32, #tpu.memory_space<smem>>
    %805 = vector.broadcast %804 : f32 to vector<14x14xf32>
    %806 = arith.mulf %795, %805 : vector<14x14xf32>
    %807 = arith.addf %781, %806 : vector<14x14xf32>
    %c82_172 = arith.constant 82 : index
    %808 = memref.load %arg1[%c82_172] : memref<162xf32, #tpu.memory_space<smem>>
    %809 = vector.broadcast %808 : f32 to vector<14x14xf32>
    %810 = arith.mulf %795, %809 : vector<14x14xf32>
    %811 = arith.addf %785, %810 : vector<14x14xf32>
    %c109_173 = arith.constant 109 : index
    %812 = memref.load %arg1[%c109_173] : memref<162xf32, #tpu.memory_space<smem>>
    %813 = vector.broadcast %812 : f32 to vector<14x14xf32>
    %814 = arith.mulf %795, %813 : vector<14x14xf32>
    %815 = arith.addf %789, %814 : vector<14x14xf32>
    %c136_174 = arith.constant 136 : index
    %816 = memref.load %arg1[%c136_174] : memref<162xf32, #tpu.memory_space<smem>>
    %817 = vector.broadcast %816 : f32 to vector<14x14xf32>
    %818 = arith.mulf %795, %817 : vector<14x14xf32>
    %819 = arith.addf %793, %818 : vector<14x14xf32>
    %c1_175 = arith.constant 1 : index
    %c0_176 = arith.constant 0 : index
    %c0_177 = arith.constant 0 : index
    %c2_178 = arith.constant 2 : index
    %820 = vector.load %arg0[%c1_175, %c0_176, %c0_177, %c2_178] : memref<2x3x16x16xf32, #tpu.memory_space<vmem>>, vector<1x1x14x14xf32>
    %821 = vector.shape_cast %820 : vector<1x1x14x14xf32> to vector<14x14xf32>
    %c2_179 = arith.constant 2 : index
    %822 = memref.load %arg1[%c2_179] : memref<162xf32, #tpu.memory_space<smem>>
    %823 = vector.broadcast %822 : f32 to vector<14x14xf32>
    %824 = arith.mulf %821, %823 : vector<14x14xf32>
    %825 = arith.addf %799, %824 : vector<14x14xf32>
    %c29_180 = arith.constant 29 : index
    %826 = memref.load %arg1[%c29_180] : memref<162xf32, #tpu.memory_space<smem>>
    %827 = vector.broadcast %826 : f32 to vector<14x14xf32>
    %828 = arith.mulf %821, %827 : vector<14x14xf32>
    %829 = arith.addf %803, %828 : vector<14x14xf32>
    %c56_181 = arith.constant 56 : index
    %830 = memref.load %arg1[%c56_181] : memref<162xf32, #tpu.memory_space<smem>>
    %831 = vector.broadcast %830 : f32 to vector<14x14xf32>
    %832 = arith.mulf %821, %831 : vector<14x14xf32>
    %833 = arith.addf %807, %832 : vector<14x14xf32>
    %c83_182 = arith.constant 83 : index
    %834 = memref.load %arg1[%c83_182] : memref<162xf32, #tpu.memory_space<smem>>
    %835 = vector.broadcast %834 : f32 to vector<14x14xf32>
    %836 = arith.mulf %821, %835 : vector<14x14xf32>
    %837 = arith.addf %811, %836 : vector<14x14xf32>
    %c110_183 = arith.constant 110 : index
    %838 = memref.load %arg1[%c110_183] : memref<162xf32, #tpu.memory_space<smem>>
    %839 = vector.broadcast %838 : f32 to vector<14x14xf32>
    %840 = arith.mulf %821, %839 : vector<14x14xf32>
    %841 = arith.addf %815, %840 : vector<14x14xf32>
    %c137_184 = arith.constant 137 : index
    %842 = memref.load %arg1[%c137_184] : memref<162xf32, #tpu.memory_space<smem>>
    %843 = vector.broadcast %842 : f32 to vector<14x14xf32>
    %844 = arith.mulf %821, %843 : vector<14x14xf32>
    %845 = arith.addf %819, %844 : vector<14x14xf32>
    %c1_185 = arith.constant 1 : index
    %c0_186 = arith.constant 0 : index
    %c1_187 = arith.constant 1 : index
    %c0_188 = arith.constant 0 : index
    %846 = vector.load %arg0[%c1_185, %c0_186, %c1_187, %c0_188] : memref<2x3x16x16xf32, #tpu.memory_space<vmem>>, vector<1x1x14x14xf32>
    %847 = vector.shape_cast %846 : vector<1x1x14x14xf32> to vector<14x14xf32>
    %c3_189 = arith.constant 3 : index
    %848 = memref.load %arg1[%c3_189] : memref<162xf32, #tpu.memory_space<smem>>
    %849 = vector.broadcast %848 : f32 to vector<14x14xf32>
    %850 = arith.mulf %847, %849 : vector<14x14xf32>
    %851 = arith.addf %825, %850 : vector<14x14xf32>
    %c30_190 = arith.constant 30 : index
    %852 = memref.load %arg1[%c30_190] : memref<162xf32, #tpu.memory_space<smem>>
    %853 = vector.broadcast %852 : f32 to vector<14x14xf32>
    %854 = arith.mulf %847, %853 : vector<14x14xf32>
    %855 = arith.addf %829, %854 : vector<14x14xf32>
    %c57_191 = arith.constant 57 : index
    %856 = memref.load %arg1[%c57_191] : memref<162xf32, #tpu.memory_space<smem>>
    %857 = vector.broadcast %856 : f32 to vector<14x14xf32>
    %858 = arith.mulf %847, %857 : vector<14x14xf32>
    %859 = arith.addf %833, %858 : vector<14x14xf32>
    %c84_192 = arith.constant 84 : index
    %860 = memref.load %arg1[%c84_192] : memref<162xf32, #tpu.memory_space<smem>>
    %861 = vector.broadcast %860 : f32 to vector<14x14xf32>
    %862 = arith.mulf %847, %861 : vector<14x14xf32>
    %863 = arith.addf %837, %862 : vector<14x14xf32>
    %c111_193 = arith.constant 111 : index
    %864 = memref.load %arg1[%c111_193] : memref<162xf32, #tpu.memory_space<smem>>
    %865 = vector.broadcast %864 : f32 to vector<14x14xf32>
    %866 = arith.mulf %847, %865 : vector<14x14xf32>
    %867 = arith.addf %841, %866 : vector<14x14xf32>
    %c138_194 = arith.constant 138 : index
    %868 = memref.load %arg1[%c138_194] : memref<162xf32, #tpu.memory_space<smem>>
    %869 = vector.broadcast %868 : f32 to vector<14x14xf32>
    %870 = arith.mulf %847, %869 : vector<14x14xf32>
    %871 = arith.addf %845, %870 : vector<14x14xf32>
    %c1_195 = arith.constant 1 : index
    %c0_196 = arith.constant 0 : index
    %c1_197 = arith.constant 1 : index
    %c1_198 = arith.constant 1 : index
    %872 = vector.load %arg0[%c1_195, %c0_196, %c1_197, %c1_198] : memref<2x3x16x16xf32, #tpu.memory_space<vmem>>, vector<1x1x14x14xf32>
    %873 = vector.shape_cast %872 : vector<1x1x14x14xf32> to vector<14x14xf32>
    %c4_199 = arith.constant 4 : index
    %874 = memref.load %arg1[%c4_199] : memref<162xf32, #tpu.memory_space<smem>>
    %875 = vector.broadcast %874 : f32 to vector<14x14xf32>
    %876 = arith.mulf %873, %875 : vector<14x14xf32>
    %877 = arith.addf %851, %876 : vector<14x14xf32>
    %c31_200 = arith.constant 31 : index
    %878 = memref.load %arg1[%c31_200] : memref<162xf32, #tpu.memory_space<smem>>
    %879 = vector.broadcast %878 : f32 to vector<14x14xf32>
    %880 = arith.mulf %873, %879 : vector<14x14xf32>
    %881 = arith.addf %855, %880 : vector<14x14xf32>
    %c58_201 = arith.constant 58 : index
    %882 = memref.load %arg1[%c58_201] : memref<162xf32, #tpu.memory_space<smem>>
    %883 = vector.broadcast %882 : f32 to vector<14x14xf32>
    %884 = arith.mulf %873, %883 : vector<14x14xf32>
    %885 = arith.addf %859, %884 : vector<14x14xf32>
    %c85_202 = arith.constant 85 : index
    %886 = memref.load %arg1[%c85_202] : memref<162xf32, #tpu.memory_space<smem>>
    %887 = vector.broadcast %886 : f32 to vector<14x14xf32>
    %888 = arith.mulf %873, %887 : vector<14x14xf32>
    %889 = arith.addf %863, %888 : vector<14x14xf32>
    %c112_203 = arith.constant 112 : index
    %890 = memref.load %arg1[%c112_203] : memref<162xf32, #tpu.memory_space<smem>>
    %891 = vector.broadcast %890 : f32 to vector<14x14xf32>
    %892 = arith.mulf %873, %891 : vector<14x14xf32>
    %893 = arith.addf %867, %892 : vector<14x14xf32>
    %c139_204 = arith.constant 139 : index
    %894 = memref.load %arg1[%c139_204] : memref<162xf32, #tpu.memory_space<smem>>
    %895 = vector.broadcast %894 : f32 to vector<14x14xf32>
    %896 = arith.mulf %873, %895 : vector<14x14xf32>
    %897 = arith.addf %871, %896 : vector<14x14xf32>
    %c1_205 = arith.constant 1 : index
    %c0_206 = arith.constant 0 : index
    %c1_207 = arith.constant 1 : index
    %c2_208 = arith.constant 2 : index
    %898 = vector.load %arg0[%c1_205, %c0_206, %c1_207, %c2_208] : memref<2x3x16x16xf32, #tpu.memory_space<vmem>>, vector<1x1x14x14xf32>
    %899 = vector.shape_cast %898 : vector<1x1x14x14xf32> to vector<14x14xf32>
    %c5_209 = arith.constant 5 : index
    %900 = memref.load %arg1[%c5_209] : memref<162xf32, #tpu.memory_space<smem>>
    %901 = vector.broadcast %900 : f32 to vector<14x14xf32>
    %902 = arith.mulf %899, %901 : vector<14x14xf32>
    %903 = arith.addf %877, %902 : vector<14x14xf32>
    %c32_210 = arith.constant 32 : index
    %904 = memref.load %arg1[%c32_210] : memref<162xf32, #tpu.memory_space<smem>>
    %905 = vector.broadcast %904 : f32 to vector<14x14xf32>
    %906 = arith.mulf %899, %905 : vector<14x14xf32>
    %907 = arith.addf %881, %906 : vector<14x14xf32>
    %c59_211 = arith.constant 59 : index
    %908 = memref.load %arg1[%c59_211] : memref<162xf32, #tpu.memory_space<smem>>
    %909 = vector.broadcast %908 : f32 to vector<14x14xf32>
    %910 = arith.mulf %899, %909 : vector<14x14xf32>
    %911 = arith.addf %885, %910 : vector<14x14xf32>
    %c86_212 = arith.constant 86 : index
    %912 = memref.load %arg1[%c86_212] : memref<162xf32, #tpu.memory_space<smem>>
    %913 = vector.broadcast %912 : f32 to vector<14x14xf32>
    %914 = arith.mulf %899, %913 : vector<14x14xf32>
    %915 = arith.addf %889, %914 : vector<14x14xf32>
    %c113_213 = arith.constant 113 : index
    %916 = memref.load %arg1[%c113_213] : memref<162xf32, #tpu.memory_space<smem>>
    %917 = vector.broadcast %916 : f32 to vector<14x14xf32>
    %918 = arith.mulf %899, %917 : vector<14x14xf32>
    %919 = arith.addf %893, %918 : vector<14x14xf32>
    %c140_214 = arith.constant 140 : index
    %920 = memref.load %arg1[%c140_214] : memref<162xf32, #tpu.memory_space<smem>>
    %921 = vector.broadcast %920 : f32 to vector<14x14xf32>
    %922 = arith.mulf %899, %921 : vector<14x14xf32>
    %923 = arith.addf %897, %922 : vector<14x14xf32>
    %c1_215 = arith.constant 1 : index
    %c0_216 = arith.constant 0 : index
    %c2_217 = arith.constant 2 : index
    %c0_218 = arith.constant 0 : index
    %924 = vector.load %arg0[%c1_215, %c0_216, %c2_217, %c0_218] : memref<2x3x16x16xf32, #tpu.memory_space<vmem>>, vector<1x1x14x14xf32>
    %925 = vector.shape_cast %924 : vector<1x1x14x14xf32> to vector<14x14xf32>
    %c6_219 = arith.constant 6 : index
    %926 = memref.load %arg1[%c6_219] : memref<162xf32, #tpu.memory_space<smem>>
    %927 = vector.broadcast %926 : f32 to vector<14x14xf32>
    %928 = arith.mulf %925, %927 : vector<14x14xf32>
    %929 = arith.addf %903, %928 : vector<14x14xf32>
    %c33_220 = arith.constant 33 : index
    %930 = memref.load %arg1[%c33_220] : memref<162xf32, #tpu.memory_space<smem>>
    %931 = vector.broadcast %930 : f32 to vector<14x14xf32>
    %932 = arith.mulf %925, %931 : vector<14x14xf32>
    %933 = arith.addf %907, %932 : vector<14x14xf32>
    %c60_221 = arith.constant 60 : index
    %934 = memref.load %arg1[%c60_221] : memref<162xf32, #tpu.memory_space<smem>>
    %935 = vector.broadcast %934 : f32 to vector<14x14xf32>
    %936 = arith.mulf %925, %935 : vector<14x14xf32>
    %937 = arith.addf %911, %936 : vector<14x14xf32>
    %c87_222 = arith.constant 87 : index
    %938 = memref.load %arg1[%c87_222] : memref<162xf32, #tpu.memory_space<smem>>
    %939 = vector.broadcast %938 : f32 to vector<14x14xf32>
    %940 = arith.mulf %925, %939 : vector<14x14xf32>
    %941 = arith.addf %915, %940 : vector<14x14xf32>
    %c114_223 = arith.constant 114 : index
    %942 = memref.load %arg1[%c114_223] : memref<162xf32, #tpu.memory_space<smem>>
    %943 = vector.broadcast %942 : f32 to vector<14x14xf32>
    %944 = arith.mulf %925, %943 : vector<14x14xf32>
    %945 = arith.addf %919, %944 : vector<14x14xf32>
    %c141_224 = arith.constant 141 : index
    %946 = memref.load %arg1[%c141_224] : memref<162xf32, #tpu.memory_space<smem>>
    %947 = vector.broadcast %946 : f32 to vector<14x14xf32>
    %948 = arith.mulf %925, %947 : vector<14x14xf32>
    %949 = arith.addf %923, %948 : vector<14x14xf32>
    %c1_225 = arith.constant 1 : index
    %c0_226 = arith.constant 0 : index
    %c2_227 = arith.constant 2 : index
    %c1_228 = arith.constant 1 : index
    %950 = vector.load %arg0[%c1_225, %c0_226, %c2_227, %c1_228] : memref<2x3x16x16xf32, #tpu.memory_space<vmem>>, vector<1x1x14x14xf32>
    %951 = vector.shape_cast %950 : vector<1x1x14x14xf32> to vector<14x14xf32>
    %c7_229 = arith.constant 7 : index
    %952 = memref.load %arg1[%c7_229] : memref<162xf32, #tpu.memory_space<smem>>
    %953 = vector.broadcast %952 : f32 to vector<14x14xf32>
    %954 = arith.mulf %951, %953 : vector<14x14xf32>
    %955 = arith.addf %929, %954 : vector<14x14xf32>
    %c34_230 = arith.constant 34 : index
    %956 = memref.load %arg1[%c34_230] : memref<162xf32, #tpu.memory_space<smem>>
    %957 = vector.broadcast %956 : f32 to vector<14x14xf32>
    %958 = arith.mulf %951, %957 : vector<14x14xf32>
    %959 = arith.addf %933, %958 : vector<14x14xf32>
    %c61_231 = arith.constant 61 : index
    %960 = memref.load %arg1[%c61_231] : memref<162xf32, #tpu.memory_space<smem>>
    %961 = vector.broadcast %960 : f32 to vector<14x14xf32>
    %962 = arith.mulf %951, %961 : vector<14x14xf32>
    %963 = arith.addf %937, %962 : vector<14x14xf32>
    %c88_232 = arith.constant 88 : index
    %964 = memref.load %arg1[%c88_232] : memref<162xf32, #tpu.memory_space<smem>>
    %965 = vector.broadcast %964 : f32 to vector<14x14xf32>
    %966 = arith.mulf %951, %965 : vector<14x14xf32>
    %967 = arith.addf %941, %966 : vector<14x14xf32>
    %c115_233 = arith.constant 115 : index
    %968 = memref.load %arg1[%c115_233] : memref<162xf32, #tpu.memory_space<smem>>
    %969 = vector.broadcast %968 : f32 to vector<14x14xf32>
    %970 = arith.mulf %951, %969 : vector<14x14xf32>
    %971 = arith.addf %945, %970 : vector<14x14xf32>
    %c142_234 = arith.constant 142 : index
    %972 = memref.load %arg1[%c142_234] : memref<162xf32, #tpu.memory_space<smem>>
    %973 = vector.broadcast %972 : f32 to vector<14x14xf32>
    %974 = arith.mulf %951, %973 : vector<14x14xf32>
    %975 = arith.addf %949, %974 : vector<14x14xf32>
    %c1_235 = arith.constant 1 : index
    %c0_236 = arith.constant 0 : index
    %c2_237 = arith.constant 2 : index
    %c2_238 = arith.constant 2 : index
    %976 = vector.load %arg0[%c1_235, %c0_236, %c2_237, %c2_238] : memref<2x3x16x16xf32, #tpu.memory_space<vmem>>, vector<1x1x14x14xf32>
    %977 = vector.shape_cast %976 : vector<1x1x14x14xf32> to vector<14x14xf32>
    %c8_239 = arith.constant 8 : index
    %978 = memref.load %arg1[%c8_239] : memref<162xf32, #tpu.memory_space<smem>>
    %979 = vector.broadcast %978 : f32 to vector<14x14xf32>
    %980 = arith.mulf %977, %979 : vector<14x14xf32>
    %981 = arith.addf %955, %980 : vector<14x14xf32>
    %c35_240 = arith.constant 35 : index
    %982 = memref.load %arg1[%c35_240] : memref<162xf32, #tpu.memory_space<smem>>
    %983 = vector.broadcast %982 : f32 to vector<14x14xf32>
    %984 = arith.mulf %977, %983 : vector<14x14xf32>
    %985 = arith.addf %959, %984 : vector<14x14xf32>
    %c62_241 = arith.constant 62 : index
    %986 = memref.load %arg1[%c62_241] : memref<162xf32, #tpu.memory_space<smem>>
    %987 = vector.broadcast %986 : f32 to vector<14x14xf32>
    %988 = arith.mulf %977, %987 : vector<14x14xf32>
    %989 = arith.addf %963, %988 : vector<14x14xf32>
    %c89_242 = arith.constant 89 : index
    %990 = memref.load %arg1[%c89_242] : memref<162xf32, #tpu.memory_space<smem>>
    %991 = vector.broadcast %990 : f32 to vector<14x14xf32>
    %992 = arith.mulf %977, %991 : vector<14x14xf32>
    %993 = arith.addf %967, %992 : vector<14x14xf32>
    %c116_243 = arith.constant 116 : index
    %994 = memref.load %arg1[%c116_243] : memref<162xf32, #tpu.memory_space<smem>>
    %995 = vector.broadcast %994 : f32 to vector<14x14xf32>
    %996 = arith.mulf %977, %995 : vector<14x14xf32>
    %997 = arith.addf %971, %996 : vector<14x14xf32>
    %c143_244 = arith.constant 143 : index
    %998 = memref.load %arg1[%c143_244] : memref<162xf32, #tpu.memory_space<smem>>
    %999 = vector.broadcast %998 : f32 to vector<14x14xf32>
    %1000 = arith.mulf %977, %999 : vector<14x14xf32>
    %1001 = arith.addf %975, %1000 : vector<14x14xf32>
    %c1_245 = arith.constant 1 : index
    %c1_246 = arith.constant 1 : index
    %c0_247 = arith.constant 0 : index
    %c0_248 = arith.constant 0 : index
    %1002 = vector.load %arg0[%c1_245, %c1_246, %c0_247, %c0_248] : memref<2x3x16x16xf32, #tpu.memory_space<vmem>>, vector<1x1x14x14xf32>
    %1003 = vector.shape_cast %1002 : vector<1x1x14x14xf32> to vector<14x14xf32>
    %c9_249 = arith.constant 9 : index
    %1004 = memref.load %arg1[%c9_249] : memref<162xf32, #tpu.memory_space<smem>>
    %1005 = vector.broadcast %1004 : f32 to vector<14x14xf32>
    %1006 = arith.mulf %1003, %1005 : vector<14x14xf32>
    %1007 = arith.addf %981, %1006 : vector<14x14xf32>
    %c36_250 = arith.constant 36 : index
    %1008 = memref.load %arg1[%c36_250] : memref<162xf32, #tpu.memory_space<smem>>
    %1009 = vector.broadcast %1008 : f32 to vector<14x14xf32>
    %1010 = arith.mulf %1003, %1009 : vector<14x14xf32>
    %1011 = arith.addf %985, %1010 : vector<14x14xf32>
    %c63_251 = arith.constant 63 : index
    %1012 = memref.load %arg1[%c63_251] : memref<162xf32, #tpu.memory_space<smem>>
    %1013 = vector.broadcast %1012 : f32 to vector<14x14xf32>
    %1014 = arith.mulf %1003, %1013 : vector<14x14xf32>
    %1015 = arith.addf %989, %1014 : vector<14x14xf32>
    %c90_252 = arith.constant 90 : index
    %1016 = memref.load %arg1[%c90_252] : memref<162xf32, #tpu.memory_space<smem>>
    %1017 = vector.broadcast %1016 : f32 to vector<14x14xf32>
    %1018 = arith.mulf %1003, %1017 : vector<14x14xf32>
    %1019 = arith.addf %993, %1018 : vector<14x14xf32>
    %c117_253 = arith.constant 117 : index
    %1020 = memref.load %arg1[%c117_253] : memref<162xf32, #tpu.memory_space<smem>>
    %1021 = vector.broadcast %1020 : f32 to vector<14x14xf32>
    %1022 = arith.mulf %1003, %1021 : vector<14x14xf32>
    %1023 = arith.addf %997, %1022 : vector<14x14xf32>
    %c144_254 = arith.constant 144 : index
    %1024 = memref.load %arg1[%c144_254] : memref<162xf32, #tpu.memory_space<smem>>
    %1025 = vector.broadcast %1024 : f32 to vector<14x14xf32>
    %1026 = arith.mulf %1003, %1025 : vector<14x14xf32>
    %1027 = arith.addf %1001, %1026 : vector<14x14xf32>
    %c1_255 = arith.constant 1 : index
    %c1_256 = arith.constant 1 : index
    %c0_257 = arith.constant 0 : index
    %c1_258 = arith.constant 1 : index
    %1028 = vector.load %arg0[%c1_255, %c1_256, %c0_257, %c1_258] : memref<2x3x16x16xf32, #tpu.memory_space<vmem>>, vector<1x1x14x14xf32>
    %1029 = vector.shape_cast %1028 : vector<1x1x14x14xf32> to vector<14x14xf32>
    %c10_259 = arith.constant 10 : index
    %1030 = memref.load %arg1[%c10_259] : memref<162xf32, #tpu.memory_space<smem>>
    %1031 = vector.broadcast %1030 : f32 to vector<14x14xf32>
    %1032 = arith.mulf %1029, %1031 : vector<14x14xf32>
    %1033 = arith.addf %1007, %1032 : vector<14x14xf32>
    %c37_260 = arith.constant 37 : index
    %1034 = memref.load %arg1[%c37_260] : memref<162xf32, #tpu.memory_space<smem>>
    %1035 = vector.broadcast %1034 : f32 to vector<14x14xf32>
    %1036 = arith.mulf %1029, %1035 : vector<14x14xf32>
    %1037 = arith.addf %1011, %1036 : vector<14x14xf32>
    %c64_261 = arith.constant 64 : index
    %1038 = memref.load %arg1[%c64_261] : memref<162xf32, #tpu.memory_space<smem>>
    %1039 = vector.broadcast %1038 : f32 to vector<14x14xf32>
    %1040 = arith.mulf %1029, %1039 : vector<14x14xf32>
    %1041 = arith.addf %1015, %1040 : vector<14x14xf32>
    %c91_262 = arith.constant 91 : index
    %1042 = memref.load %arg1[%c91_262] : memref<162xf32, #tpu.memory_space<smem>>
    %1043 = vector.broadcast %1042 : f32 to vector<14x14xf32>
    %1044 = arith.mulf %1029, %1043 : vector<14x14xf32>
    %1045 = arith.addf %1019, %1044 : vector<14x14xf32>
    %c118_263 = arith.constant 118 : index
    %1046 = memref.load %arg1[%c118_263] : memref<162xf32, #tpu.memory_space<smem>>
    %1047 = vector.broadcast %1046 : f32 to vector<14x14xf32>
    %1048 = arith.mulf %1029, %1047 : vector<14x14xf32>
    %1049 = arith.addf %1023, %1048 : vector<14x14xf32>
    %c145_264 = arith.constant 145 : index
    %1050 = memref.load %arg1[%c145_264] : memref<162xf32, #tpu.memory_space<smem>>
    %1051 = vector.broadcast %1050 : f32 to vector<14x14xf32>
    %1052 = arith.mulf %1029, %1051 : vector<14x14xf32>
    %1053 = arith.addf %1027, %1052 : vector<14x14xf32>
    %c1_265 = arith.constant 1 : index
    %c1_266 = arith.constant 1 : index
    %c0_267 = arith.constant 0 : index
    %c2_268 = arith.constant 2 : index
    %1054 = vector.load %arg0[%c1_265, %c1_266, %c0_267, %c2_268] : memref<2x3x16x16xf32, #tpu.memory_space<vmem>>, vector<1x1x14x14xf32>
    %1055 = vector.shape_cast %1054 : vector<1x1x14x14xf32> to vector<14x14xf32>
    %c11_269 = arith.constant 11 : index
    %1056 = memref.load %arg1[%c11_269] : memref<162xf32, #tpu.memory_space<smem>>
    %1057 = vector.broadcast %1056 : f32 to vector<14x14xf32>
    %1058 = arith.mulf %1055, %1057 : vector<14x14xf32>
    %1059 = arith.addf %1033, %1058 : vector<14x14xf32>
    %c38_270 = arith.constant 38 : index
    %1060 = memref.load %arg1[%c38_270] : memref<162xf32, #tpu.memory_space<smem>>
    %1061 = vector.broadcast %1060 : f32 to vector<14x14xf32>
    %1062 = arith.mulf %1055, %1061 : vector<14x14xf32>
    %1063 = arith.addf %1037, %1062 : vector<14x14xf32>
    %c65_271 = arith.constant 65 : index
    %1064 = memref.load %arg1[%c65_271] : memref<162xf32, #tpu.memory_space<smem>>
    %1065 = vector.broadcast %1064 : f32 to vector<14x14xf32>
    %1066 = arith.mulf %1055, %1065 : vector<14x14xf32>
    %1067 = arith.addf %1041, %1066 : vector<14x14xf32>
    %c92_272 = arith.constant 92 : index
    %1068 = memref.load %arg1[%c92_272] : memref<162xf32, #tpu.memory_space<smem>>
    %1069 = vector.broadcast %1068 : f32 to vector<14x14xf32>
    %1070 = arith.mulf %1055, %1069 : vector<14x14xf32>
    %1071 = arith.addf %1045, %1070 : vector<14x14xf32>
    %c119_273 = arith.constant 119 : index
    %1072 = memref.load %arg1[%c119_273] : memref<162xf32, #tpu.memory_space<smem>>
    %1073 = vector.broadcast %1072 : f32 to vector<14x14xf32>
    %1074 = arith.mulf %1055, %1073 : vector<14x14xf32>
    %1075 = arith.addf %1049, %1074 : vector<14x14xf32>
    %c146_274 = arith.constant 146 : index
    %1076 = memref.load %arg1[%c146_274] : memref<162xf32, #tpu.memory_space<smem>>
    %1077 = vector.broadcast %1076 : f32 to vector<14x14xf32>
    %1078 = arith.mulf %1055, %1077 : vector<14x14xf32>
    %1079 = arith.addf %1053, %1078 : vector<14x14xf32>
    %c1_275 = arith.constant 1 : index
    %c1_276 = arith.constant 1 : index
    %c1_277 = arith.constant 1 : index
    %c0_278 = arith.constant 0 : index
    %1080 = vector.load %arg0[%c1_275, %c1_276, %c1_277, %c0_278] : memref<2x3x16x16xf32, #tpu.memory_space<vmem>>, vector<1x1x14x14xf32>
    %1081 = vector.shape_cast %1080 : vector<1x1x14x14xf32> to vector<14x14xf32>
    %c12_279 = arith.constant 12 : index
    %1082 = memref.load %arg1[%c12_279] : memref<162xf32, #tpu.memory_space<smem>>
    %1083 = vector.broadcast %1082 : f32 to vector<14x14xf32>
    %1084 = arith.mulf %1081, %1083 : vector<14x14xf32>
    %1085 = arith.addf %1059, %1084 : vector<14x14xf32>
    %c39_280 = arith.constant 39 : index
    %1086 = memref.load %arg1[%c39_280] : memref<162xf32, #tpu.memory_space<smem>>
    %1087 = vector.broadcast %1086 : f32 to vector<14x14xf32>
    %1088 = arith.mulf %1081, %1087 : vector<14x14xf32>
    %1089 = arith.addf %1063, %1088 : vector<14x14xf32>
    %c66_281 = arith.constant 66 : index
    %1090 = memref.load %arg1[%c66_281] : memref<162xf32, #tpu.memory_space<smem>>
    %1091 = vector.broadcast %1090 : f32 to vector<14x14xf32>
    %1092 = arith.mulf %1081, %1091 : vector<14x14xf32>
    %1093 = arith.addf %1067, %1092 : vector<14x14xf32>
    %c93_282 = arith.constant 93 : index
    %1094 = memref.load %arg1[%c93_282] : memref<162xf32, #tpu.memory_space<smem>>
    %1095 = vector.broadcast %1094 : f32 to vector<14x14xf32>
    %1096 = arith.mulf %1081, %1095 : vector<14x14xf32>
    %1097 = arith.addf %1071, %1096 : vector<14x14xf32>
    %c120_283 = arith.constant 120 : index
    %1098 = memref.load %arg1[%c120_283] : memref<162xf32, #tpu.memory_space<smem>>
    %1099 = vector.broadcast %1098 : f32 to vector<14x14xf32>
    %1100 = arith.mulf %1081, %1099 : vector<14x14xf32>
    %1101 = arith.addf %1075, %1100 : vector<14x14xf32>
    %c147_284 = arith.constant 147 : index
    %1102 = memref.load %arg1[%c147_284] : memref<162xf32, #tpu.memory_space<smem>>
    %1103 = vector.broadcast %1102 : f32 to vector<14x14xf32>
    %1104 = arith.mulf %1081, %1103 : vector<14x14xf32>
    %1105 = arith.addf %1079, %1104 : vector<14x14xf32>
    %c1_285 = arith.constant 1 : index
    %c1_286 = arith.constant 1 : index
    %c1_287 = arith.constant 1 : index
    %c1_288 = arith.constant 1 : index
    %1106 = vector.load %arg0[%c1_285, %c1_286, %c1_287, %c1_288] : memref<2x3x16x16xf32, #tpu.memory_space<vmem>>, vector<1x1x14x14xf32>
    %1107 = vector.shape_cast %1106 : vector<1x1x14x14xf32> to vector<14x14xf32>
    %c13_289 = arith.constant 13 : index
    %1108 = memref.load %arg1[%c13_289] : memref<162xf32, #tpu.memory_space<smem>>
    %1109 = vector.broadcast %1108 : f32 to vector<14x14xf32>
    %1110 = arith.mulf %1107, %1109 : vector<14x14xf32>
    %1111 = arith.addf %1085, %1110 : vector<14x14xf32>
    %c40_290 = arith.constant 40 : index
    %1112 = memref.load %arg1[%c40_290] : memref<162xf32, #tpu.memory_space<smem>>
    %1113 = vector.broadcast %1112 : f32 to vector<14x14xf32>
    %1114 = arith.mulf %1107, %1113 : vector<14x14xf32>
    %1115 = arith.addf %1089, %1114 : vector<14x14xf32>
    %c67_291 = arith.constant 67 : index
    %1116 = memref.load %arg1[%c67_291] : memref<162xf32, #tpu.memory_space<smem>>
    %1117 = vector.broadcast %1116 : f32 to vector<14x14xf32>
    %1118 = arith.mulf %1107, %1117 : vector<14x14xf32>
    %1119 = arith.addf %1093, %1118 : vector<14x14xf32>
    %c94_292 = arith.constant 94 : index
    %1120 = memref.load %arg1[%c94_292] : memref<162xf32, #tpu.memory_space<smem>>
    %1121 = vector.broadcast %1120 : f32 to vector<14x14xf32>
    %1122 = arith.mulf %1107, %1121 : vector<14x14xf32>
    %1123 = arith.addf %1097, %1122 : vector<14x14xf32>
    %c121_293 = arith.constant 121 : index
    %1124 = memref.load %arg1[%c121_293] : memref<162xf32, #tpu.memory_space<smem>>
    %1125 = vector.broadcast %1124 : f32 to vector<14x14xf32>
    %1126 = arith.mulf %1107, %1125 : vector<14x14xf32>
    %1127 = arith.addf %1101, %1126 : vector<14x14xf32>
    %c148_294 = arith.constant 148 : index
    %1128 = memref.load %arg1[%c148_294] : memref<162xf32, #tpu.memory_space<smem>>
    %1129 = vector.broadcast %1128 : f32 to vector<14x14xf32>
    %1130 = arith.mulf %1107, %1129 : vector<14x14xf32>
    %1131 = arith.addf %1105, %1130 : vector<14x14xf32>
    %c1_295 = arith.constant 1 : index
    %c1_296 = arith.constant 1 : index
    %c1_297 = arith.constant 1 : index
    %c2_298 = arith.constant 2 : index
    %1132 = vector.load %arg0[%c1_295, %c1_296, %c1_297, %c2_298] : memref<2x3x16x16xf32, #tpu.memory_space<vmem>>, vector<1x1x14x14xf32>
    %1133 = vector.shape_cast %1132 : vector<1x1x14x14xf32> to vector<14x14xf32>
    %c14_299 = arith.constant 14 : index
    %1134 = memref.load %arg1[%c14_299] : memref<162xf32, #tpu.memory_space<smem>>
    %1135 = vector.broadcast %1134 : f32 to vector<14x14xf32>
    %1136 = arith.mulf %1133, %1135 : vector<14x14xf32>
    %1137 = arith.addf %1111, %1136 : vector<14x14xf32>
    %c41_300 = arith.constant 41 : index
    %1138 = memref.load %arg1[%c41_300] : memref<162xf32, #tpu.memory_space<smem>>
    %1139 = vector.broadcast %1138 : f32 to vector<14x14xf32>
    %1140 = arith.mulf %1133, %1139 : vector<14x14xf32>
    %1141 = arith.addf %1115, %1140 : vector<14x14xf32>
    %c68_301 = arith.constant 68 : index
    %1142 = memref.load %arg1[%c68_301] : memref<162xf32, #tpu.memory_space<smem>>
    %1143 = vector.broadcast %1142 : f32 to vector<14x14xf32>
    %1144 = arith.mulf %1133, %1143 : vector<14x14xf32>
    %1145 = arith.addf %1119, %1144 : vector<14x14xf32>
    %c95_302 = arith.constant 95 : index
    %1146 = memref.load %arg1[%c95_302] : memref<162xf32, #tpu.memory_space<smem>>
    %1147 = vector.broadcast %1146 : f32 to vector<14x14xf32>
    %1148 = arith.mulf %1133, %1147 : vector<14x14xf32>
    %1149 = arith.addf %1123, %1148 : vector<14x14xf32>
    %c122_303 = arith.constant 122 : index
    %1150 = memref.load %arg1[%c122_303] : memref<162xf32, #tpu.memory_space<smem>>
    %1151 = vector.broadcast %1150 : f32 to vector<14x14xf32>
    %1152 = arith.mulf %1133, %1151 : vector<14x14xf32>
    %1153 = arith.addf %1127, %1152 : vector<14x14xf32>
    %c149_304 = arith.constant 149 : index
    %1154 = memref.load %arg1[%c149_304] : memref<162xf32, #tpu.memory_space<smem>>
    %1155 = vector.broadcast %1154 : f32 to vector<14x14xf32>
    %1156 = arith.mulf %1133, %1155 : vector<14x14xf32>
    %1157 = arith.addf %1131, %1156 : vector<14x14xf32>
    %c1_305 = arith.constant 1 : index
    %c1_306 = arith.constant 1 : index
    %c2_307 = arith.constant 2 : index
    %c0_308 = arith.constant 0 : index
    %1158 = vector.load %arg0[%c1_305, %c1_306, %c2_307, %c0_308] : memref<2x3x16x16xf32, #tpu.memory_space<vmem>>, vector<1x1x14x14xf32>
    %1159 = vector.shape_cast %1158 : vector<1x1x14x14xf32> to vector<14x14xf32>
    %c15_309 = arith.constant 15 : index
    %1160 = memref.load %arg1[%c15_309] : memref<162xf32, #tpu.memory_space<smem>>
    %1161 = vector.broadcast %1160 : f32 to vector<14x14xf32>
    %1162 = arith.mulf %1159, %1161 : vector<14x14xf32>
    %1163 = arith.addf %1137, %1162 : vector<14x14xf32>
    %c42_310 = arith.constant 42 : index
    %1164 = memref.load %arg1[%c42_310] : memref<162xf32, #tpu.memory_space<smem>>
    %1165 = vector.broadcast %1164 : f32 to vector<14x14xf32>
    %1166 = arith.mulf %1159, %1165 : vector<14x14xf32>
    %1167 = arith.addf %1141, %1166 : vector<14x14xf32>
    %c69_311 = arith.constant 69 : index
    %1168 = memref.load %arg1[%c69_311] : memref<162xf32, #tpu.memory_space<smem>>
    %1169 = vector.broadcast %1168 : f32 to vector<14x14xf32>
    %1170 = arith.mulf %1159, %1169 : vector<14x14xf32>
    %1171 = arith.addf %1145, %1170 : vector<14x14xf32>
    %c96_312 = arith.constant 96 : index
    %1172 = memref.load %arg1[%c96_312] : memref<162xf32, #tpu.memory_space<smem>>
    %1173 = vector.broadcast %1172 : f32 to vector<14x14xf32>
    %1174 = arith.mulf %1159, %1173 : vector<14x14xf32>
    %1175 = arith.addf %1149, %1174 : vector<14x14xf32>
    %c123_313 = arith.constant 123 : index
    %1176 = memref.load %arg1[%c123_313] : memref<162xf32, #tpu.memory_space<smem>>
    %1177 = vector.broadcast %1176 : f32 to vector<14x14xf32>
    %1178 = arith.mulf %1159, %1177 : vector<14x14xf32>
    %1179 = arith.addf %1153, %1178 : vector<14x14xf32>
    %c150_314 = arith.constant 150 : index
    %1180 = memref.load %arg1[%c150_314] : memref<162xf32, #tpu.memory_space<smem>>
    %1181 = vector.broadcast %1180 : f32 to vector<14x14xf32>
    %1182 = arith.mulf %1159, %1181 : vector<14x14xf32>
    %1183 = arith.addf %1157, %1182 : vector<14x14xf32>
    %c1_315 = arith.constant 1 : index
    %c1_316 = arith.constant 1 : index
    %c2_317 = arith.constant 2 : index
    %c1_318 = arith.constant 1 : index
    %1184 = vector.load %arg0[%c1_315, %c1_316, %c2_317, %c1_318] : memref<2x3x16x16xf32, #tpu.memory_space<vmem>>, vector<1x1x14x14xf32>
    %1185 = vector.shape_cast %1184 : vector<1x1x14x14xf32> to vector<14x14xf32>
    %c16_319 = arith.constant 16 : index
    %1186 = memref.load %arg1[%c16_319] : memref<162xf32, #tpu.memory_space<smem>>
    %1187 = vector.broadcast %1186 : f32 to vector<14x14xf32>
    %1188 = arith.mulf %1185, %1187 : vector<14x14xf32>
    %1189 = arith.addf %1163, %1188 : vector<14x14xf32>
    %c43_320 = arith.constant 43 : index
    %1190 = memref.load %arg1[%c43_320] : memref<162xf32, #tpu.memory_space<smem>>
    %1191 = vector.broadcast %1190 : f32 to vector<14x14xf32>
    %1192 = arith.mulf %1185, %1191 : vector<14x14xf32>
    %1193 = arith.addf %1167, %1192 : vector<14x14xf32>
    %c70_321 = arith.constant 70 : index
    %1194 = memref.load %arg1[%c70_321] : memref<162xf32, #tpu.memory_space<smem>>
    %1195 = vector.broadcast %1194 : f32 to vector<14x14xf32>
    %1196 = arith.mulf %1185, %1195 : vector<14x14xf32>
    %1197 = arith.addf %1171, %1196 : vector<14x14xf32>
    %c97_322 = arith.constant 97 : index
    %1198 = memref.load %arg1[%c97_322] : memref<162xf32, #tpu.memory_space<smem>>
    %1199 = vector.broadcast %1198 : f32 to vector<14x14xf32>
    %1200 = arith.mulf %1185, %1199 : vector<14x14xf32>
    %1201 = arith.addf %1175, %1200 : vector<14x14xf32>
    %c124_323 = arith.constant 124 : index
    %1202 = memref.load %arg1[%c124_323] : memref<162xf32, #tpu.memory_space<smem>>
    %1203 = vector.broadcast %1202 : f32 to vector<14x14xf32>
    %1204 = arith.mulf %1185, %1203 : vector<14x14xf32>
    %1205 = arith.addf %1179, %1204 : vector<14x14xf32>
    %c151_324 = arith.constant 151 : index
    %1206 = memref.load %arg1[%c151_324] : memref<162xf32, #tpu.memory_space<smem>>
    %1207 = vector.broadcast %1206 : f32 to vector<14x14xf32>
    %1208 = arith.mulf %1185, %1207 : vector<14x14xf32>
    %1209 = arith.addf %1183, %1208 : vector<14x14xf32>
    %c1_325 = arith.constant 1 : index
    %c1_326 = arith.constant 1 : index
    %c2_327 = arith.constant 2 : index
    %c2_328 = arith.constant 2 : index
    %1210 = vector.load %arg0[%c1_325, %c1_326, %c2_327, %c2_328] : memref<2x3x16x16xf32, #tpu.memory_space<vmem>>, vector<1x1x14x14xf32>
    %1211 = vector.shape_cast %1210 : vector<1x1x14x14xf32> to vector<14x14xf32>
    %c17_329 = arith.constant 17 : index
    %1212 = memref.load %arg1[%c17_329] : memref<162xf32, #tpu.memory_space<smem>>
    %1213 = vector.broadcast %1212 : f32 to vector<14x14xf32>
    %1214 = arith.mulf %1211, %1213 : vector<14x14xf32>
    %1215 = arith.addf %1189, %1214 : vector<14x14xf32>
    %c44_330 = arith.constant 44 : index
    %1216 = memref.load %arg1[%c44_330] : memref<162xf32, #tpu.memory_space<smem>>
    %1217 = vector.broadcast %1216 : f32 to vector<14x14xf32>
    %1218 = arith.mulf %1211, %1217 : vector<14x14xf32>
    %1219 = arith.addf %1193, %1218 : vector<14x14xf32>
    %c71_331 = arith.constant 71 : index
    %1220 = memref.load %arg1[%c71_331] : memref<162xf32, #tpu.memory_space<smem>>
    %1221 = vector.broadcast %1220 : f32 to vector<14x14xf32>
    %1222 = arith.mulf %1211, %1221 : vector<14x14xf32>
    %1223 = arith.addf %1197, %1222 : vector<14x14xf32>
    %c98_332 = arith.constant 98 : index
    %1224 = memref.load %arg1[%c98_332] : memref<162xf32, #tpu.memory_space<smem>>
    %1225 = vector.broadcast %1224 : f32 to vector<14x14xf32>
    %1226 = arith.mulf %1211, %1225 : vector<14x14xf32>
    %1227 = arith.addf %1201, %1226 : vector<14x14xf32>
    %c125_333 = arith.constant 125 : index
    %1228 = memref.load %arg1[%c125_333] : memref<162xf32, #tpu.memory_space<smem>>
    %1229 = vector.broadcast %1228 : f32 to vector<14x14xf32>
    %1230 = arith.mulf %1211, %1229 : vector<14x14xf32>
    %1231 = arith.addf %1205, %1230 : vector<14x14xf32>
    %c152_334 = arith.constant 152 : index
    %1232 = memref.load %arg1[%c152_334] : memref<162xf32, #tpu.memory_space<smem>>
    %1233 = vector.broadcast %1232 : f32 to vector<14x14xf32>
    %1234 = arith.mulf %1211, %1233 : vector<14x14xf32>
    %1235 = arith.addf %1209, %1234 : vector<14x14xf32>
    %c1_335 = arith.constant 1 : index
    %c2_336 = arith.constant 2 : index
    %c0_337 = arith.constant 0 : index
    %c0_338 = arith.constant 0 : index
    %1236 = vector.load %arg0[%c1_335, %c2_336, %c0_337, %c0_338] : memref<2x3x16x16xf32, #tpu.memory_space<vmem>>, vector<1x1x14x14xf32>
    %1237 = vector.shape_cast %1236 : vector<1x1x14x14xf32> to vector<14x14xf32>
    %c18_339 = arith.constant 18 : index
    %1238 = memref.load %arg1[%c18_339] : memref<162xf32, #tpu.memory_space<smem>>
    %1239 = vector.broadcast %1238 : f32 to vector<14x14xf32>
    %1240 = arith.mulf %1237, %1239 : vector<14x14xf32>
    %1241 = arith.addf %1215, %1240 : vector<14x14xf32>
    %c45_340 = arith.constant 45 : index
    %1242 = memref.load %arg1[%c45_340] : memref<162xf32, #tpu.memory_space<smem>>
    %1243 = vector.broadcast %1242 : f32 to vector<14x14xf32>
    %1244 = arith.mulf %1237, %1243 : vector<14x14xf32>
    %1245 = arith.addf %1219, %1244 : vector<14x14xf32>
    %c72_341 = arith.constant 72 : index
    %1246 = memref.load %arg1[%c72_341] : memref<162xf32, #tpu.memory_space<smem>>
    %1247 = vector.broadcast %1246 : f32 to vector<14x14xf32>
    %1248 = arith.mulf %1237, %1247 : vector<14x14xf32>
    %1249 = arith.addf %1223, %1248 : vector<14x14xf32>
    %c99_342 = arith.constant 99 : index
    %1250 = memref.load %arg1[%c99_342] : memref<162xf32, #tpu.memory_space<smem>>
    %1251 = vector.broadcast %1250 : f32 to vector<14x14xf32>
    %1252 = arith.mulf %1237, %1251 : vector<14x14xf32>
    %1253 = arith.addf %1227, %1252 : vector<14x14xf32>
    %c126_343 = arith.constant 126 : index
    %1254 = memref.load %arg1[%c126_343] : memref<162xf32, #tpu.memory_space<smem>>
    %1255 = vector.broadcast %1254 : f32 to vector<14x14xf32>
    %1256 = arith.mulf %1237, %1255 : vector<14x14xf32>
    %1257 = arith.addf %1231, %1256 : vector<14x14xf32>
    %c153_344 = arith.constant 153 : index
    %1258 = memref.load %arg1[%c153_344] : memref<162xf32, #tpu.memory_space<smem>>
    %1259 = vector.broadcast %1258 : f32 to vector<14x14xf32>
    %1260 = arith.mulf %1237, %1259 : vector<14x14xf32>
    %1261 = arith.addf %1235, %1260 : vector<14x14xf32>
    %c1_345 = arith.constant 1 : index
    %c2_346 = arith.constant 2 : index
    %c0_347 = arith.constant 0 : index
    %c1_348 = arith.constant 1 : index
    %1262 = vector.load %arg0[%c1_345, %c2_346, %c0_347, %c1_348] : memref<2x3x16x16xf32, #tpu.memory_space<vmem>>, vector<1x1x14x14xf32>
    %1263 = vector.shape_cast %1262 : vector<1x1x14x14xf32> to vector<14x14xf32>
    %c19_349 = arith.constant 19 : index
    %1264 = memref.load %arg1[%c19_349] : memref<162xf32, #tpu.memory_space<smem>>
    %1265 = vector.broadcast %1264 : f32 to vector<14x14xf32>
    %1266 = arith.mulf %1263, %1265 : vector<14x14xf32>
    %1267 = arith.addf %1241, %1266 : vector<14x14xf32>
    %c46_350 = arith.constant 46 : index
    %1268 = memref.load %arg1[%c46_350] : memref<162xf32, #tpu.memory_space<smem>>
    %1269 = vector.broadcast %1268 : f32 to vector<14x14xf32>
    %1270 = arith.mulf %1263, %1269 : vector<14x14xf32>
    %1271 = arith.addf %1245, %1270 : vector<14x14xf32>
    %c73_351 = arith.constant 73 : index
    %1272 = memref.load %arg1[%c73_351] : memref<162xf32, #tpu.memory_space<smem>>
    %1273 = vector.broadcast %1272 : f32 to vector<14x14xf32>
    %1274 = arith.mulf %1263, %1273 : vector<14x14xf32>
    %1275 = arith.addf %1249, %1274 : vector<14x14xf32>
    %c100_352 = arith.constant 100 : index
    %1276 = memref.load %arg1[%c100_352] : memref<162xf32, #tpu.memory_space<smem>>
    %1277 = vector.broadcast %1276 : f32 to vector<14x14xf32>
    %1278 = arith.mulf %1263, %1277 : vector<14x14xf32>
    %1279 = arith.addf %1253, %1278 : vector<14x14xf32>
    %c127_353 = arith.constant 127 : index
    %1280 = memref.load %arg1[%c127_353] : memref<162xf32, #tpu.memory_space<smem>>
    %1281 = vector.broadcast %1280 : f32 to vector<14x14xf32>
    %1282 = arith.mulf %1263, %1281 : vector<14x14xf32>
    %1283 = arith.addf %1257, %1282 : vector<14x14xf32>
    %c154_354 = arith.constant 154 : index
    %1284 = memref.load %arg1[%c154_354] : memref<162xf32, #tpu.memory_space<smem>>
    %1285 = vector.broadcast %1284 : f32 to vector<14x14xf32>
    %1286 = arith.mulf %1263, %1285 : vector<14x14xf32>
    %1287 = arith.addf %1261, %1286 : vector<14x14xf32>
    %c1_355 = arith.constant 1 : index
    %c2_356 = arith.constant 2 : index
    %c0_357 = arith.constant 0 : index
    %c2_358 = arith.constant 2 : index
    %1288 = vector.load %arg0[%c1_355, %c2_356, %c0_357, %c2_358] : memref<2x3x16x16xf32, #tpu.memory_space<vmem>>, vector<1x1x14x14xf32>
    %1289 = vector.shape_cast %1288 : vector<1x1x14x14xf32> to vector<14x14xf32>
    %c20_359 = arith.constant 20 : index
    %1290 = memref.load %arg1[%c20_359] : memref<162xf32, #tpu.memory_space<smem>>
    %1291 = vector.broadcast %1290 : f32 to vector<14x14xf32>
    %1292 = arith.mulf %1289, %1291 : vector<14x14xf32>
    %1293 = arith.addf %1267, %1292 : vector<14x14xf32>
    %c47_360 = arith.constant 47 : index
    %1294 = memref.load %arg1[%c47_360] : memref<162xf32, #tpu.memory_space<smem>>
    %1295 = vector.broadcast %1294 : f32 to vector<14x14xf32>
    %1296 = arith.mulf %1289, %1295 : vector<14x14xf32>
    %1297 = arith.addf %1271, %1296 : vector<14x14xf32>
    %c74_361 = arith.constant 74 : index
    %1298 = memref.load %arg1[%c74_361] : memref<162xf32, #tpu.memory_space<smem>>
    %1299 = vector.broadcast %1298 : f32 to vector<14x14xf32>
    %1300 = arith.mulf %1289, %1299 : vector<14x14xf32>
    %1301 = arith.addf %1275, %1300 : vector<14x14xf32>
    %c101_362 = arith.constant 101 : index
    %1302 = memref.load %arg1[%c101_362] : memref<162xf32, #tpu.memory_space<smem>>
    %1303 = vector.broadcast %1302 : f32 to vector<14x14xf32>
    %1304 = arith.mulf %1289, %1303 : vector<14x14xf32>
    %1305 = arith.addf %1279, %1304 : vector<14x14xf32>
    %c128_363 = arith.constant 128 : index
    %1306 = memref.load %arg1[%c128_363] : memref<162xf32, #tpu.memory_space<smem>>
    %1307 = vector.broadcast %1306 : f32 to vector<14x14xf32>
    %1308 = arith.mulf %1289, %1307 : vector<14x14xf32>
    %1309 = arith.addf %1283, %1308 : vector<14x14xf32>
    %c155_364 = arith.constant 155 : index
    %1310 = memref.load %arg1[%c155_364] : memref<162xf32, #tpu.memory_space<smem>>
    %1311 = vector.broadcast %1310 : f32 to vector<14x14xf32>
    %1312 = arith.mulf %1289, %1311 : vector<14x14xf32>
    %1313 = arith.addf %1287, %1312 : vector<14x14xf32>
    %c1_365 = arith.constant 1 : index
    %c2_366 = arith.constant 2 : index
    %c1_367 = arith.constant 1 : index
    %c0_368 = arith.constant 0 : index
    %1314 = vector.load %arg0[%c1_365, %c2_366, %c1_367, %c0_368] : memref<2x3x16x16xf32, #tpu.memory_space<vmem>>, vector<1x1x14x14xf32>
    %1315 = vector.shape_cast %1314 : vector<1x1x14x14xf32> to vector<14x14xf32>
    %c21_369 = arith.constant 21 : index
    %1316 = memref.load %arg1[%c21_369] : memref<162xf32, #tpu.memory_space<smem>>
    %1317 = vector.broadcast %1316 : f32 to vector<14x14xf32>
    %1318 = arith.mulf %1315, %1317 : vector<14x14xf32>
    %1319 = arith.addf %1293, %1318 : vector<14x14xf32>
    %c48_370 = arith.constant 48 : index
    %1320 = memref.load %arg1[%c48_370] : memref<162xf32, #tpu.memory_space<smem>>
    %1321 = vector.broadcast %1320 : f32 to vector<14x14xf32>
    %1322 = arith.mulf %1315, %1321 : vector<14x14xf32>
    %1323 = arith.addf %1297, %1322 : vector<14x14xf32>
    %c75_371 = arith.constant 75 : index
    %1324 = memref.load %arg1[%c75_371] : memref<162xf32, #tpu.memory_space<smem>>
    %1325 = vector.broadcast %1324 : f32 to vector<14x14xf32>
    %1326 = arith.mulf %1315, %1325 : vector<14x14xf32>
    %1327 = arith.addf %1301, %1326 : vector<14x14xf32>
    %c102_372 = arith.constant 102 : index
    %1328 = memref.load %arg1[%c102_372] : memref<162xf32, #tpu.memory_space<smem>>
    %1329 = vector.broadcast %1328 : f32 to vector<14x14xf32>
    %1330 = arith.mulf %1315, %1329 : vector<14x14xf32>
    %1331 = arith.addf %1305, %1330 : vector<14x14xf32>
    %c129_373 = arith.constant 129 : index
    %1332 = memref.load %arg1[%c129_373] : memref<162xf32, #tpu.memory_space<smem>>
    %1333 = vector.broadcast %1332 : f32 to vector<14x14xf32>
    %1334 = arith.mulf %1315, %1333 : vector<14x14xf32>
    %1335 = arith.addf %1309, %1334 : vector<14x14xf32>
    %c156_374 = arith.constant 156 : index
    %1336 = memref.load %arg1[%c156_374] : memref<162xf32, #tpu.memory_space<smem>>
    %1337 = vector.broadcast %1336 : f32 to vector<14x14xf32>
    %1338 = arith.mulf %1315, %1337 : vector<14x14xf32>
    %1339 = arith.addf %1313, %1338 : vector<14x14xf32>
    %c1_375 = arith.constant 1 : index
    %c2_376 = arith.constant 2 : index
    %c1_377 = arith.constant 1 : index
    %c1_378 = arith.constant 1 : index
    %1340 = vector.load %arg0[%c1_375, %c2_376, %c1_377, %c1_378] : memref<2x3x16x16xf32, #tpu.memory_space<vmem>>, vector<1x1x14x14xf32>
    %1341 = vector.shape_cast %1340 : vector<1x1x14x14xf32> to vector<14x14xf32>
    %c22_379 = arith.constant 22 : index
    %1342 = memref.load %arg1[%c22_379] : memref<162xf32, #tpu.memory_space<smem>>
    %1343 = vector.broadcast %1342 : f32 to vector<14x14xf32>
    %1344 = arith.mulf %1341, %1343 : vector<14x14xf32>
    %1345 = arith.addf %1319, %1344 : vector<14x14xf32>
    %c49_380 = arith.constant 49 : index
    %1346 = memref.load %arg1[%c49_380] : memref<162xf32, #tpu.memory_space<smem>>
    %1347 = vector.broadcast %1346 : f32 to vector<14x14xf32>
    %1348 = arith.mulf %1341, %1347 : vector<14x14xf32>
    %1349 = arith.addf %1323, %1348 : vector<14x14xf32>
    %c76_381 = arith.constant 76 : index
    %1350 = memref.load %arg1[%c76_381] : memref<162xf32, #tpu.memory_space<smem>>
    %1351 = vector.broadcast %1350 : f32 to vector<14x14xf32>
    %1352 = arith.mulf %1341, %1351 : vector<14x14xf32>
    %1353 = arith.addf %1327, %1352 : vector<14x14xf32>
    %c103_382 = arith.constant 103 : index
    %1354 = memref.load %arg1[%c103_382] : memref<162xf32, #tpu.memory_space<smem>>
    %1355 = vector.broadcast %1354 : f32 to vector<14x14xf32>
    %1356 = arith.mulf %1341, %1355 : vector<14x14xf32>
    %1357 = arith.addf %1331, %1356 : vector<14x14xf32>
    %c130_383 = arith.constant 130 : index
    %1358 = memref.load %arg1[%c130_383] : memref<162xf32, #tpu.memory_space<smem>>
    %1359 = vector.broadcast %1358 : f32 to vector<14x14xf32>
    %1360 = arith.mulf %1341, %1359 : vector<14x14xf32>
    %1361 = arith.addf %1335, %1360 : vector<14x14xf32>
    %c157_384 = arith.constant 157 : index
    %1362 = memref.load %arg1[%c157_384] : memref<162xf32, #tpu.memory_space<smem>>
    %1363 = vector.broadcast %1362 : f32 to vector<14x14xf32>
    %1364 = arith.mulf %1341, %1363 : vector<14x14xf32>
    %1365 = arith.addf %1339, %1364 : vector<14x14xf32>
    %c1_385 = arith.constant 1 : index
    %c2_386 = arith.constant 2 : index
    %c1_387 = arith.constant 1 : index
    %c2_388 = arith.constant 2 : index
    %1366 = vector.load %arg0[%c1_385, %c2_386, %c1_387, %c2_388] : memref<2x3x16x16xf32, #tpu.memory_space<vmem>>, vector<1x1x14x14xf32>
    %1367 = vector.shape_cast %1366 : vector<1x1x14x14xf32> to vector<14x14xf32>
    %c23_389 = arith.constant 23 : index
    %1368 = memref.load %arg1[%c23_389] : memref<162xf32, #tpu.memory_space<smem>>
    %1369 = vector.broadcast %1368 : f32 to vector<14x14xf32>
    %1370 = arith.mulf %1367, %1369 : vector<14x14xf32>
    %1371 = arith.addf %1345, %1370 : vector<14x14xf32>
    %c50_390 = arith.constant 50 : index
    %1372 = memref.load %arg1[%c50_390] : memref<162xf32, #tpu.memory_space<smem>>
    %1373 = vector.broadcast %1372 : f32 to vector<14x14xf32>
    %1374 = arith.mulf %1367, %1373 : vector<14x14xf32>
    %1375 = arith.addf %1349, %1374 : vector<14x14xf32>
    %c77_391 = arith.constant 77 : index
    %1376 = memref.load %arg1[%c77_391] : memref<162xf32, #tpu.memory_space<smem>>
    %1377 = vector.broadcast %1376 : f32 to vector<14x14xf32>
    %1378 = arith.mulf %1367, %1377 : vector<14x14xf32>
    %1379 = arith.addf %1353, %1378 : vector<14x14xf32>
    %c104_392 = arith.constant 104 : index
    %1380 = memref.load %arg1[%c104_392] : memref<162xf32, #tpu.memory_space<smem>>
    %1381 = vector.broadcast %1380 : f32 to vector<14x14xf32>
    %1382 = arith.mulf %1367, %1381 : vector<14x14xf32>
    %1383 = arith.addf %1357, %1382 : vector<14x14xf32>
    %c131_393 = arith.constant 131 : index
    %1384 = memref.load %arg1[%c131_393] : memref<162xf32, #tpu.memory_space<smem>>
    %1385 = vector.broadcast %1384 : f32 to vector<14x14xf32>
    %1386 = arith.mulf %1367, %1385 : vector<14x14xf32>
    %1387 = arith.addf %1361, %1386 : vector<14x14xf32>
    %c158_394 = arith.constant 158 : index
    %1388 = memref.load %arg1[%c158_394] : memref<162xf32, #tpu.memory_space<smem>>
    %1389 = vector.broadcast %1388 : f32 to vector<14x14xf32>
    %1390 = arith.mulf %1367, %1389 : vector<14x14xf32>
    %1391 = arith.addf %1365, %1390 : vector<14x14xf32>
    %c1_395 = arith.constant 1 : index
    %c2_396 = arith.constant 2 : index
    %c2_397 = arith.constant 2 : index
    %c0_398 = arith.constant 0 : index
    %1392 = vector.load %arg0[%c1_395, %c2_396, %c2_397, %c0_398] : memref<2x3x16x16xf32, #tpu.memory_space<vmem>>, vector<1x1x14x14xf32>
    %1393 = vector.shape_cast %1392 : vector<1x1x14x14xf32> to vector<14x14xf32>
    %c24_399 = arith.constant 24 : index
    %1394 = memref.load %arg1[%c24_399] : memref<162xf32, #tpu.memory_space<smem>>
    %1395 = vector.broadcast %1394 : f32 to vector<14x14xf32>
    %1396 = arith.mulf %1393, %1395 : vector<14x14xf32>
    %1397 = arith.addf %1371, %1396 : vector<14x14xf32>
    %c51_400 = arith.constant 51 : index
    %1398 = memref.load %arg1[%c51_400] : memref<162xf32, #tpu.memory_space<smem>>
    %1399 = vector.broadcast %1398 : f32 to vector<14x14xf32>
    %1400 = arith.mulf %1393, %1399 : vector<14x14xf32>
    %1401 = arith.addf %1375, %1400 : vector<14x14xf32>
    %c78_401 = arith.constant 78 : index
    %1402 = memref.load %arg1[%c78_401] : memref<162xf32, #tpu.memory_space<smem>>
    %1403 = vector.broadcast %1402 : f32 to vector<14x14xf32>
    %1404 = arith.mulf %1393, %1403 : vector<14x14xf32>
    %1405 = arith.addf %1379, %1404 : vector<14x14xf32>
    %c105_402 = arith.constant 105 : index
    %1406 = memref.load %arg1[%c105_402] : memref<162xf32, #tpu.memory_space<smem>>
    %1407 = vector.broadcast %1406 : f32 to vector<14x14xf32>
    %1408 = arith.mulf %1393, %1407 : vector<14x14xf32>
    %1409 = arith.addf %1383, %1408 : vector<14x14xf32>
    %c132_403 = arith.constant 132 : index
    %1410 = memref.load %arg1[%c132_403] : memref<162xf32, #tpu.memory_space<smem>>
    %1411 = vector.broadcast %1410 : f32 to vector<14x14xf32>
    %1412 = arith.mulf %1393, %1411 : vector<14x14xf32>
    %1413 = arith.addf %1387, %1412 : vector<14x14xf32>
    %c159_404 = arith.constant 159 : index
    %1414 = memref.load %arg1[%c159_404] : memref<162xf32, #tpu.memory_space<smem>>
    %1415 = vector.broadcast %1414 : f32 to vector<14x14xf32>
    %1416 = arith.mulf %1393, %1415 : vector<14x14xf32>
    %1417 = arith.addf %1391, %1416 : vector<14x14xf32>
    %c1_405 = arith.constant 1 : index
    %c2_406 = arith.constant 2 : index
    %c2_407 = arith.constant 2 : index
    %c1_408 = arith.constant 1 : index
    %1418 = vector.load %arg0[%c1_405, %c2_406, %c2_407, %c1_408] : memref<2x3x16x16xf32, #tpu.memory_space<vmem>>, vector<1x1x14x14xf32>
    %1419 = vector.shape_cast %1418 : vector<1x1x14x14xf32> to vector<14x14xf32>
    %c25_409 = arith.constant 25 : index
    %1420 = memref.load %arg1[%c25_409] : memref<162xf32, #tpu.memory_space<smem>>
    %1421 = vector.broadcast %1420 : f32 to vector<14x14xf32>
    %1422 = arith.mulf %1419, %1421 : vector<14x14xf32>
    %1423 = arith.addf %1397, %1422 : vector<14x14xf32>
    %c52_410 = arith.constant 52 : index
    %1424 = memref.load %arg1[%c52_410] : memref<162xf32, #tpu.memory_space<smem>>
    %1425 = vector.broadcast %1424 : f32 to vector<14x14xf32>
    %1426 = arith.mulf %1419, %1425 : vector<14x14xf32>
    %1427 = arith.addf %1401, %1426 : vector<14x14xf32>
    %c79_411 = arith.constant 79 : index
    %1428 = memref.load %arg1[%c79_411] : memref<162xf32, #tpu.memory_space<smem>>
    %1429 = vector.broadcast %1428 : f32 to vector<14x14xf32>
    %1430 = arith.mulf %1419, %1429 : vector<14x14xf32>
    %1431 = arith.addf %1405, %1430 : vector<14x14xf32>
    %c106_412 = arith.constant 106 : index
    %1432 = memref.load %arg1[%c106_412] : memref<162xf32, #tpu.memory_space<smem>>
    %1433 = vector.broadcast %1432 : f32 to vector<14x14xf32>
    %1434 = arith.mulf %1419, %1433 : vector<14x14xf32>
    %1435 = arith.addf %1409, %1434 : vector<14x14xf32>
    %c133_413 = arith.constant 133 : index
    %1436 = memref.load %arg1[%c133_413] : memref<162xf32, #tpu.memory_space<smem>>
    %1437 = vector.broadcast %1436 : f32 to vector<14x14xf32>
    %1438 = arith.mulf %1419, %1437 : vector<14x14xf32>
    %1439 = arith.addf %1413, %1438 : vector<14x14xf32>
    %c160_414 = arith.constant 160 : index
    %1440 = memref.load %arg1[%c160_414] : memref<162xf32, #tpu.memory_space<smem>>
    %1441 = vector.broadcast %1440 : f32 to vector<14x14xf32>
    %1442 = arith.mulf %1419, %1441 : vector<14x14xf32>
    %1443 = arith.addf %1417, %1442 : vector<14x14xf32>
    %c1_415 = arith.constant 1 : index
    %c2_416 = arith.constant 2 : index
    %c2_417 = arith.constant 2 : index
    %c2_418 = arith.constant 2 : index
    %1444 = vector.load %arg0[%c1_415, %c2_416, %c2_417, %c2_418] : memref<2x3x16x16xf32, #tpu.memory_space<vmem>>, vector<1x1x14x14xf32>
    %1445 = vector.shape_cast %1444 : vector<1x1x14x14xf32> to vector<14x14xf32>
    %c26_419 = arith.constant 26 : index
    %1446 = memref.load %arg1[%c26_419] : memref<162xf32, #tpu.memory_space<smem>>
    %1447 = vector.broadcast %1446 : f32 to vector<14x14xf32>
    %1448 = arith.mulf %1445, %1447 : vector<14x14xf32>
    %1449 = arith.addf %1423, %1448 : vector<14x14xf32>
    %c53_420 = arith.constant 53 : index
    %1450 = memref.load %arg1[%c53_420] : memref<162xf32, #tpu.memory_space<smem>>
    %1451 = vector.broadcast %1450 : f32 to vector<14x14xf32>
    %1452 = arith.mulf %1445, %1451 : vector<14x14xf32>
    %1453 = arith.addf %1427, %1452 : vector<14x14xf32>
    %c80_421 = arith.constant 80 : index
    %1454 = memref.load %arg1[%c80_421] : memref<162xf32, #tpu.memory_space<smem>>
    %1455 = vector.broadcast %1454 : f32 to vector<14x14xf32>
    %1456 = arith.mulf %1445, %1455 : vector<14x14xf32>
    %1457 = arith.addf %1431, %1456 : vector<14x14xf32>
    %c107_422 = arith.constant 107 : index
    %1458 = memref.load %arg1[%c107_422] : memref<162xf32, #tpu.memory_space<smem>>
    %1459 = vector.broadcast %1458 : f32 to vector<14x14xf32>
    %1460 = arith.mulf %1445, %1459 : vector<14x14xf32>
    %1461 = arith.addf %1435, %1460 : vector<14x14xf32>
    %c134_423 = arith.constant 134 : index
    %1462 = memref.load %arg1[%c134_423] : memref<162xf32, #tpu.memory_space<smem>>
    %1463 = vector.broadcast %1462 : f32 to vector<14x14xf32>
    %1464 = arith.mulf %1445, %1463 : vector<14x14xf32>
    %1465 = arith.addf %1439, %1464 : vector<14x14xf32>
    %c161_424 = arith.constant 161 : index
    %1466 = memref.load %arg1[%c161_424] : memref<162xf32, #tpu.memory_space<smem>>
    %1467 = vector.broadcast %1466 : f32 to vector<14x14xf32>
    %1468 = arith.mulf %1445, %1467 : vector<14x14xf32>
    %1469 = arith.addf %1443, %1468 : vector<14x14xf32>
    %c1_425 = arith.constant 1 : index
    %c0_426 = arith.constant 0 : index
    %c0_427 = arith.constant 0 : index
    %c0_428 = arith.constant 0 : index
    %1470 = vector.load %arg3[%c1_425, %c0_426, %c0_427, %c0_428] : memref<2x6x14x14xf32, #tpu.memory_space<vmem>>, vector<1x1x14x14xf32>
    %1471 = vector.shape_cast %1470 : vector<1x1x14x14xf32> to vector<14x14xf32>
    %1472 = vector.shape_cast %1449 : vector<14x14xf32> to vector<1x1x14x14xf32>
    tpu.vector_store %arg3[%c1_425, %c0_426, %c0_427, %c0_428], %1472 {strides = array<i32>} : memref<2x6x14x14xf32, #tpu.memory_space<vmem>>, vector<1x1x14x14xf32>,
    %c1_429 = arith.constant 1 : index
    %c1_430 = arith.constant 1 : index
    %c0_431 = arith.constant 0 : index
    %c0_432 = arith.constant 0 : index
    %1473 = vector.load %arg3[%c1_429, %c1_430, %c0_431, %c0_432] : memref<2x6x14x14xf32, #tpu.memory_space<vmem>>, vector<1x1x14x14xf32>
    %1474 = vector.shape_cast %1473 : vector<1x1x14x14xf32> to vector<14x14xf32>
    %1475 = vector.shape_cast %1453 : vector<14x14xf32> to vector<1x1x14x14xf32>
    tpu.vector_store %arg3[%c1_429, %c1_430, %c0_431, %c0_432], %1475 {strides = array<i32>} : memref<2x6x14x14xf32, #tpu.memory_space<vmem>>, vector<1x1x14x14xf32>,
    %c1_433 = arith.constant 1 : index
    %c2_434 = arith.constant 2 : index
    %c0_435 = arith.constant 0 : index
    %c0_436 = arith.constant 0 : index
    %1476 = vector.load %arg3[%c1_433, %c2_434, %c0_435, %c0_436] : memref<2x6x14x14xf32, #tpu.memory_space<vmem>>, vector<1x1x14x14xf32>
    %1477 = vector.shape_cast %1476 : vector<1x1x14x14xf32> to vector<14x14xf32>
    %1478 = vector.shape_cast %1457 : vector<14x14xf32> to vector<1x1x14x14xf32>
    tpu.vector_store %arg3[%c1_433, %c2_434, %c0_435, %c0_436], %1478 {strides = array<i32>} : memref<2x6x14x14xf32, #tpu.memory_space<vmem>>, vector<1x1x14x14xf32>,
    %c1_437 = arith.constant 1 : index
    %c3_438 = arith.constant 3 : index
    %c0_439 = arith.constant 0 : index
    %c0_440 = arith.constant 0 : index
    %1479 = vector.load %arg3[%c1_437, %c3_438, %c0_439, %c0_440] : memref<2x6x14x14xf32, #tpu.memory_space<vmem>>, vector<1x1x14x14xf32>
    %1480 = vector.shape_cast %1479 : vector<1x1x14x14xf32> to vector<14x14xf32>
    %1481 = vector.shape_cast %1461 : vector<14x14xf32> to vector<1x1x14x14xf32>
    tpu.vector_store %arg3[%c1_437, %c3_438, %c0_439, %c0_440], %1481 {strides = array<i32>} : memref<2x6x14x14xf32, #tpu.memory_space<vmem>>, vector<1x1x14x14xf32>,
    %c1_441 = arith.constant 1 : index
    %c4_442 = arith.constant 4 : index
    %c0_443 = arith.constant 0 : index
    %c0_444 = arith.constant 0 : index
    %1482 = vector.load %arg3[%c1_441, %c4_442, %c0_443, %c0_444] : memref<2x6x14x14xf32, #tpu.memory_space<vmem>>, vector<1x1x14x14xf32>
    %1483 = vector.shape_cast %1482 : vector<1x1x14x14xf32> to vector<14x14xf32>
    %1484 = vector.shape_cast %1465 : vector<14x14xf32> to vector<1x1x14x14xf32>
    tpu.vector_store %arg3[%c1_441, %c4_442, %c0_443, %c0_444], %1484 {strides = array<i32>} : memref<2x6x14x14xf32, #tpu.memory_space<vmem>>, vector<1x1x14x14xf32>,
    %c1_445 = arith.constant 1 : index
    %c5_446 = arith.constant 5 : index
    %c0_447 = arith.constant 0 : index
    %c0_448 = arith.constant 0 : index
    %1485 = vector.load %arg3[%c1_445, %c5_446, %c0_447, %c0_448] : memref<2x6x14x14xf32, #tpu.memory_space<vmem>>, vector<1x1x14x14xf32>
    %1486 = vector.shape_cast %1485 : vector<1x1x14x14xf32> to vector<14x14xf32>
    %1487 = vector.shape_cast %1469 : vector<14x14xf32> to vector<1x1x14x14xf32>
    tpu.vector_store %arg3[%c1_445, %c5_446, %c0_447, %c0_448], %1487 {strides = array<i32>} : memref<2x6x14x14xf32, #tpu.memory_space<vmem>>, vector<1x1x14x14xf32>,
    return
  }
}

</mosaic_0001>

<llo_original>
// kernel: tpu_custom_call.1
$region0: #{tpu_custom_call.1}
  #allocation0 [shape = 'u32[]', space=smem, size = 0x4, offset = 0x4, fixed_abs, tag = 'smem constant byte address 0x4 - core index']
  #allocation1 [shape = 'u32[72,128]{1,0:T(1,128)}', space=vmem, size = 0x9000, scoped, tag = 'internal scratch']
  %s0 = inlined_call_operand.hbm [shape: f32[2,3,16,16], index: 0, kind: input, shape index: {}]
  %s1 = inlined_call_operand.hbm [shape: f32[162], index: 1, kind: input, shape index: {}]
  %s2 = inlined_call_operand.vmem [shape: f32[6], index: 2, kind: input, shape index: {}]
  %s3 = inlined_call_operand.vmem [shape: f32[2,6,14,14], index: 3, kind: output, shape index: {}]
  %s4 = sld [smem:[#allocation0]]
  $region34: #{tpu_custom_call.1} parent=0
    _
  %s6 = ssub.s32 1, %s4
  %s7 = scalar_select 0, %s6, %s4
  $region1: #{tpu_custom_call.1} parent=0
    #allocation2 [shape = 'u8[49152]{0}', space=vmem, size = 0xc000, scoped, tag = 'input window, operand 0, single buffered']
    #allocation3 [shape = 's32[1]{0}', space=sflag, size = 0x4, scoped, tag = 'scoped memory for tpu_custom_call.1']
    #allocation4 [shape = 's32[1]{0}', space=sflag, size = 0x4, scoped, tag = 'scoped memory for tpu_custom_call.1']
    #allocation5 [shape = 's32[1]{0}', space=sflag, size = 0x4, scoped, tag = 'scoped memory for tpu_custom_call.1']
    #allocation6 [shape = 'u8[1024]{0}', space=smem, size = 0x400, scoped, tag = 'input window, operand 1, single buffered']
    #allocation7 [shape = 'u8[512]{0}', space=smem, size = 0x200, scoped, tag = 'input window, operand 2, single buffered']
    %8 = vsyncpa [#allocation3], 0
    %9 = vsyncpa [#allocation4], 0
    %10 = vsyncpa [#allocation5], 0
    // Predicated region
    $region2: #{tpu_custom_call.1} parent=1 // pred_check
      _
    $region3: #{tpu_custom_call.1} parent=1 // pred_check_branch
      %12 = sbr.rel (0) target = $region5
    $region4: #{tpu_custom_call.1} parent=1 // pred_region
      %14 = vsyncadd [#allocation3], 0
      %s15 = sshll.u32 %s0, 4
      %s16 = int_to_ptr.hbm [resolvable:$true] %s15
      %s17 = sshll.u32 [#allocation2], 4
      %s18 = int_to_ptr.vmem [resolvable:$true] %s17
      %23 = dma.hbm_to_vmem [thread:$0]  %s16, 1536, %s18, [#allocation3], 128, 128, 8
    $region5: #{tpu_custom_call.1} parent=1 // pred_fallthru
      _
    // Predicated region
    $region6: #{tpu_custom_call.1} parent=1 // pred_check
      _
    $region7: #{tpu_custom_call.1} parent=1 // pred_check_branch
      %25 = sbr.rel (0) target = $region9
    $region8: #{tpu_custom_call.1} parent=1 // pred_region
      %27 = vsyncadd [#allocation4], 0
      %s29 = sshll.u32 %s1, 4
      %s30 = int_to_ptr.hbm [resolvable:$true] %s29
      %32 = dma.hbm_to_smem %s30, 32, [#allocation6], [#allocation4]
    $region9: #{tpu_custom_call.1} parent=1 // pred_fallthru
      _
    // Predicated region
    $region10: #{tpu_custom_call.1} parent=1 // pred_check
      _
    $region11: #{tpu_custom_call.1} parent=1 // pred_check_branch
      %34 = sbr.rel (0) target = $region13
    $region12: #{tpu_custom_call.1} parent=1 // pred_region
      %36 = vsyncadd [#allocation5], 0
      %s38 = sshll.u32 %s2, 4
      %s39 = int_to_ptr.vmem [resolvable:$true] %s38
      %41 = dma.vmem_to_smem %s39, 16, [#allocation7], [#allocation5]
    $region13: #{tpu_custom_call.1} parent=1 // pred_fallthru
      _
    // Predicated region
    $region14: #{tpu_custom_call.1} parent=1 // pred_check
      _
    $region15: #{tpu_custom_call.1} parent=1 // pred_check_branch
      %43 = sbr.rel (0) target = $region17
    $region16: #{tpu_custom_call.1} parent=1 // pred_region
      %45 = dma.done [#allocation3], 1536
    $region17: #{tpu_custom_call.1} parent=1 // pred_fallthru
      _
    // Predicated region
    $region18: #{tpu_custom_call.1} parent=1 // pred_check
      _
    $region19: #{tpu_custom_call.1} parent=1 // pred_check_branch
      %47 = sbr.rel (0) target = $region21
    $region20: #{tpu_custom_call.1} parent=1 // pred_region
      %49 = dma.done [#allocation4], 32
    $region21: #{tpu_custom_call.1} parent=1 // pred_fallthru
      _
    // Predicated region
    $region22: #{tpu_custom_call.1} parent=1 // pred_check
      _
    $region23: #{tpu_custom_call.1} parent=1 // pred_check_branch
      %51 = sbr.rel (0) target = $region25
    $region24: #{tpu_custom_call.1} parent=1 // pred_region
      %53 = dma.done [#allocation5], 16
    $region25: #{tpu_custom_call.1} parent=1 // pred_fallthru
      _
    %54 = sfence
    %s55 = sld [smem:[#allocation7]]
    %v56 = vstv %s55
    %v57 = vadd.f32 %v56, 0.0
    %s58 = sld [smem:[#allocation7 + $0x1]]
    %v59 = vstv %s58
    %v60 = vadd.f32 %v59, 0.0
    %s61 = sld [smem:[#allocation7 + $0x2]]
    %v62 = vstv %s61
    %v63 = vadd.f32 %v62, 0.0
    %s64 = sld [smem:[#allocation7 + $0x3]]
    %v65 = vstv %s64
    %v66 = vadd.f32 %v65, 0.0
    %s67 = sld [smem:[#allocation7 + $0x4]]
    %v68 = vstv %s67
    %v69 = vadd.f32 %v68, 0.0
    %s70 = sld [smem:[#allocation7 + $0x5]]
    %v71 = vstv %s70
    %v72 = vadd.f32 %v71, 0.0
    %v73 = vld [vmem:[#allocation2] sm:$0xff]
    %v74 = vld [vmem:[#allocation2 + $0x8] sm:$0x3f]
    %s75 = sld [smem:[#allocation6]]
    %v76 = vstv %s75
    %v77 = vmul.f32 %v73, %v76
    %v78 = vmul.f32 %v74, %v76
    %v79 = vadd.f32 %v57, %v77
    %v80 = vadd.f32 %v57, %v78
    %s81 = sld [smem:[#allocation6 + $0x1b]]
    %v82 = vstv %s81
    %v83 = vmul.f32 %v73, %v82
    %v84 = vmul.f32 %v74, %v82
    %v85 = vadd.f32 %v60, %v83
    %v86 = vadd.f32 %v60, %v84
    %s87 = sld [smem:[#allocation6 + $0x36]]
    %v88 = vstv %s87
    %v89 = vmul.f32 %v73, %v88
    %v90 = vmul.f32 %v74, %v88
    %v91 = vadd.f32 %v63, %v89
    %v92 = vadd.f32 %v63, %v90
    %s93 = sld [smem:[#allocation6 + $0x51]]
    %v94 = vstv %s93
    %v95 = vmul.f32 %v73, %v94
    %v96 = vmul.f32 %v74, %v94
    %v97 = vadd.f32 %v66, %v95
    %v98 = vadd.f32 %v66, %v96
    %s99 = sld [smem:[#allocation6 + $0x6c]]
    %v100 = vstv %s99
    %v101 = vmul.f32 %v73, %v100
    %v102 = vmul.f32 %v74, %v100
    %v103 = vadd.f32 %v69, %v101
    %v104 = vadd.f32 %v69, %v102
    %s105 = sld [smem:[#allocation6 + $0x87]]
    %v106 = vstv %s105
    %v107 = vmul.f32 %v73, %v106
    %v108 = vmul.f32 %v74, %v106
    %v109 = vadd.f32 %v72, %v107
    %v110 = vadd.f32 %v72, %v108
    %s111 = sld [smem:[#allocation6 + $0x1]]
    %v112 = vstv %s111
    %v113 = vmul.f32 %v73, %v112
    %v114 = vmul.f32 %v74, %v112
    %117 = vrot.lane.b32.xlu0 %v113, 127
    %v118 = vpop.permute.xlu0 %117
    %119 = vrot.lane.b32.xlu0 %v114, 127
    %v120 = vpop.permute.xlu0 %119
    %v123 = vadd.f32 %v79, %v118
    %v124 = vadd.f32 %v80, %v120
    %s125 = sld [smem:[#allocation6 + $0x1c]]
    %v126 = vstv %s125
    %v127 = vmul.f32 %v73, %v126
    %v128 = vmul.f32 %v74, %v126
    %131 = vrot.lane.b32.xlu0 %v127, 127
    %v132 = vpop.permute.xlu0 %131
    %133 = vrot.lane.b32.xlu0 %v128, 127
    %v134 = vpop.permute.xlu0 %133
    %v137 = vadd.f32 %v85, %v132
    %v138 = vadd.f32 %v86, %v134
    %s139 = sld [smem:[#allocation6 + $0x37]]
    %v140 = vstv %s139
    %v141 = vmul.f32 %v73, %v140
    %v142 = vmul.f32 %v74, %v140
    %145 = vrot.lane.b32.xlu0 %v141, 127
    %v146 = vpop.permute.xlu0 %145
    %147 = vrot.lane.b32.xlu0 %v142, 127
    %v148 = vpop.permute.xlu0 %147
    %v151 = vadd.f32 %v91, %v146
    %v152 = vadd.f32 %v92, %v148
    %s153 = sld [smem:[#allocation6 + $0x52]]
    %v154 = vstv %s153
    %v155 = vmul.f32 %v73, %v154
    %v156 = vmul.f32 %v74, %v154
    %159 = vrot.lane.b32.xlu0 %v155, 127
    %v160 = vpop.permute.xlu0 %159
    %161 = vrot.lane.b32.xlu0 %v156, 127
    %v162 = vpop.permute.xlu0 %161
    %v165 = vadd.f32 %v97, %v160
    %v166 = vadd.f32 %v98, %v162
    %s167 = sld [smem:[#allocation6 + $0x6d]]
    %v168 = vstv %s167
    %v169 = vmul.f32 %v73, %v168
    %v170 = vmul.f32 %v74, %v168
    %173 = vrot.lane.b32.xlu0 %v169, 127
    %v174 = vpop.permute.xlu0 %173
    %175 = vrot.lane.b32.xlu0 %v170, 127
    %v176 = vpop.permute.xlu0 %175
    %v179 = vadd.f32 %v103, %v174
    %v180 = vadd.f32 %v104, %v176
    %s181 = sld [smem:[#allocation6 + $0x88]]
    %v182 = vstv %s181
    %v183 = vmul.f32 %v73, %v182
    %v184 = vmul.f32 %v74, %v182
    %187 = vrot.lane.b32.xlu0 %v183, 127
    %v188 = vpop.permute.xlu0 %187
    %189 = vrot.lane.b32.xlu0 %v184, 127
    %v190 = vpop.permute.xlu0 %189
    %v193 = vadd.f32 %v109, %v188
    %v194 = vadd.f32 %v110, %v190
    %s195 = sld [smem:[#allocation6 + $0x2]]
    %v196 = vstv %s195
    %v197 = vmul.f32 %v73, %v196
    %v198 = vmul.f32 %v74, %v196
    %201 = vrot.lane.b32.xlu0 %v197, 126
    %v202 = vpop.permute.xlu0 %201
    %203 = vrot.lane.b32.xlu0 %v198, 126
    %v204 = vpop.permute.xlu0 %203
    %v207 = vadd.f32 %v123, %v202
    %v208 = vadd.f32 %v124, %v204
    %s209 = sld [smem:[#allocation6 + $0x1d]]
    %v210 = vstv %s209
    %v211 = vmul.f32 %v73, %v210
    %v212 = vmul.f32 %v74, %v210
    %215 = vrot.lane.b32.xlu0 %v211, 126
    %v216 = vpop.permute.xlu0 %215
    %217 = vrot.lane.b32.xlu0 %v212, 126
    %v218 = vpop.permute.xlu0 %217
    %v221 = vadd.f32 %v137, %v216
    %v222 = vadd.f32 %v138, %v218
    %s223 = sld [smem:[#allocation6 + $0x38]]
    %v224 = vstv %s223
    %v225 = vmul.f32 %v73, %v224
    %v226 = vmul.f32 %v74, %v224
    %229 = vrot.lane.b32.xlu0 %v225, 126
    %v230 = vpop.permute.xlu0 %229
    %231 = vrot.lane.b32.xlu0 %v226, 126
    %v232 = vpop.permute.xlu0 %231
    %v235 = vadd.f32 %v151, %v230
    %v236 = vadd.f32 %v152, %v232
    %s237 = sld [smem:[#allocation6 + $0x53]]
    %v238 = vstv %s237
    %v239 = vmul.f32 %v73, %v238
    %v240 = vmul.f32 %v74, %v238
    %243 = vrot.lane.b32.xlu0 %v239, 126
    %v244 = vpop.permute.xlu0 %243
    %245 = vrot.lane.b32.xlu0 %v240, 126
    %v246 = vpop.permute.xlu0 %245
    %v249 = vadd.f32 %v165, %v244
    %v250 = vadd.f32 %v166, %v246
    %s251 = sld [smem:[#allocation6 + $0x6e]]
    %v252 = vstv %s251
    %v253 = vmul.f32 %v73, %v252
    %v254 = vmul.f32 %v74, %v252
    %257 = vrot.lane.b32.xlu0 %v253, 126
    %v258 = vpop.permute.xlu0 %257
    %259 = vrot.lane.b32.xlu0 %v254, 126
    %v260 = vpop.permute.xlu0 %259
    %v263 = vadd.f32 %v179, %v258
    %v264 = vadd.f32 %v180, %v260
    %s265 = sld [smem:[#allocation6 + $0x89]]
    %v266 = vstv %s265
    %v267 = vmul.f32 %v73, %v266
    %v268 = vmul.f32 %v74, %v266
    %271 = vrot.lane.b32.xlu0 %v267, 126
    %v272 = vpop.permute.xlu0 %271
    %273 = vrot.lane.b32.xlu0 %v268, 126
    %v274 = vpop.permute.xlu0 %273
    %v277 = vadd.f32 %v193, %v272
    %v278 = vadd.f32 %v194, %v274
    %v279 = vld [vmem:[#allocation2 + $0x1] sm:$0xff]
    %v280 = vld [vmem:[#allocation2 + $0x9] sm:$0x3f]
    %s281 = sld [smem:[#allocation6 + $0x3]]
    %v282 = vstv %s281
    %v283 = vmul.f32 %v279, %v282
    %v284 = vmul.f32 %v280, %v282
    %v285 = vadd.f32 %v207, %v283
    %v286 = vadd.f32 %v208, %v284
    %s287 = sld [smem:[#allocation6 + $0x1e]]
    %v288 = vstv %s287
    %v289 = vmul.f32 %v279, %v288
    %v290 = vmul.f32 %v280, %v288
    %v291 = vadd.f32 %v221, %v289
    %v292 = vadd.f32 %v222, %v290
    %s293 = sld [smem:[#allocation6 + $0x39]]
    %v294 = vstv %s293
    %v295 = vmul.f32 %v279, %v294
    %v296 = vmul.f32 %v280, %v294
    %v297 = vadd.f32 %v235, %v295
    %v298 = vadd.f32 %v236, %v296
    %s299 = sld [smem:[#allocation6 + $0x54]]
    %v300 = vstv %s299
    %v301 = vmul.f32 %v279, %v300
    %v302 = vmul.f32 %v280, %v300
    %v303 = vadd.f32 %v249, %v301
    %v304 = vadd.f32 %v250, %v302
    %s305 = sld [smem:[#allocation6 + $0x6f]]
    %v306 = vstv %s305
    %v307 = vmul.f32 %v279, %v306
    %v308 = vmul.f32 %v280, %v306
    %v309 = vadd.f32 %v263, %v307
    %v310 = vadd.f32 %v264, %v308
    %s311 = sld [smem:[#allocation6 + $0x8a]]
    %v312 = vstv %s311
    %v313 = vmul.f32 %v279, %v312
    %v314 = vmul.f32 %v280, %v312
    %v315 = vadd.f32 %v277, %v313
    %v316 = vadd.f32 %v278, %v314
    %s317 = sld [smem:[#allocation6 + $0x4]]
    %v318 = vstv %s317
    %v319 = vmul.f32 %v279, %v318
    %v320 = vmul.f32 %v280, %v318
    %323 = vrot.lane.b32.xlu0 %v319, 127
    %v324 = vpop.permute.xlu0 %323
    %325 = vrot.lane.b32.xlu0 %v320, 127
    %v326 = vpop.permute.xlu0 %325
    %v329 = vadd.f32 %v285, %v324
    %v330 = vadd.f32 %v286, %v326
    %s331 = sld [smem:[#allocation6 + $0x1f]]
    %v332 = vstv %s331
    %v333 = vmul.f32 %v279, %v332
    %v334 = vmul.f32 %v280, %v332
    %337 = vrot.lane.b32.xlu0 %v333, 127
    %v338 = vpop.permute.xlu0 %337
    %339 = vrot.lane.b32.xlu0 %v334, 127
    %v340 = vpop.permute.xlu0 %339
    %v343 = vadd.f32 %v291, %v338
    %v344 = vadd.f32 %v292, %v340
    %s345 = sld [smem:[#allocation6 + $0x3a]]
    %v346 = vstv %s345
    %v347 = vmul.f32 %v279, %v346
    %v348 = vmul.f32 %v280, %v346
    %351 = vrot.lane.b32.xlu0 %v347, 127
    %v352 = vpop.permute.xlu0 %351
    %353 = vrot.lane.b32.xlu0 %v348, 127
    %v354 = vpop.permute.xlu0 %353
    %v357 = vadd.f32 %v297, %v352
    %v358 = vadd.f32 %v298, %v354
    %s359 = sld [smem:[#allocation6 + $0x55]]
    %v360 = vstv %s359
    %v361 = vmul.f32 %v279, %v360
    %v362 = vmul.f32 %v280, %v360
    %365 = vrot.lane.b32.xlu0 %v361, 127
    %v366 = vpop.permute.xlu0 %365
    %367 = vrot.lane.b32.xlu0 %v362, 127
    %v368 = vpop.permute.xlu0 %367
    %v371 = vadd.f32 %v303, %v366
    %v372 = vadd.f32 %v304, %v368
    %s373 = sld [smem:[#allocation6 + $0x70]]
    %v374 = vstv %s373
    %v375 = vmul.f32 %v279, %v374
    %v376 = vmul.f32 %v280, %v374
    %379 = vrot.lane.b32.xlu0 %v375, 127
    %v380 = vpop.permute.xlu0 %379
    %381 = vrot.lane.b32.xlu0 %v376, 127
    %v382 = vpop.permute.xlu0 %381
    %v385 = vadd.f32 %v309, %v380
    %v386 = vadd.f32 %v310, %v382
    %s387 = sld [smem:[#allocation6 + $0x8b]]
    %v388 = vstv %s387
    %v389 = vmul.f32 %v279, %v388
    %v390 = vmul.f32 %v280, %v388
    %393 = vrot.lane.b32.xlu0 %v389, 127
    %v394 = vpop.permute.xlu0 %393
    %395 = vrot.lane.b32.xlu0 %v390, 127
    %v396 = vpop.permute.xlu0 %395
    %v399 = vadd.f32 %v315, %v394
    %v400 = vadd.f32 %v316, %v396
    %s401 = sld [smem:[#allocation6 + $0x5]]
    %v402 = vstv %s401
    %v403 = vmul.f32 %v279, %v402
    %v404 = vmul.f32 %v280, %v402
    %407 = vrot.lane.b32.xlu0 %v403, 126
    %v408 = vpop.permute.xlu0 %407
    %409 = vrot.lane.b32.xlu0 %v404, 126
    %v410 = vpop.permute.xlu0 %409
    %v413 = vadd.f32 %v329, %v408
    %v414 = vadd.f32 %v330, %v410
    %s415 = sld [smem:[#allocation6 + $0x20]]
    %v416 = vstv %s415
    %v417 = vmul.f32 %v279, %v416
    %v418 = vmul.f32 %v280, %v416
    %421 = vrot.lane.b32.xlu0 %v417, 126
    %v422 = vpop.permute.xlu0 %421
    %423 = vrot.lane.b32.xlu0 %v418, 126
    %v424 = vpop.permute.xlu0 %423
    %v427 = vadd.f32 %v343, %v422
    %v428 = vadd.f32 %v344, %v424
    %s429 = sld [smem:[#allocation6 + $0x3b]]
    %v430 = vstv %s429
    %v431 = vmul.f32 %v279, %v430
    %v432 = vmul.f32 %v280, %v430
    %435 = vrot.lane.b32.xlu0 %v431, 126
    %v436 = vpop.permute.xlu0 %435
    %437 = vrot.lane.b32.xlu0 %v432, 126
    %v438 = vpop.permute.xlu0 %437
    %v441 = vadd.f32 %v357, %v436
    %v442 = vadd.f32 %v358, %v438
    %s443 = sld [smem:[#allocation6 + $0x56]]
    %v444 = vstv %s443
    %v445 = vmul.f32 %v279, %v444
    %v446 = vmul.f32 %v280, %v444
    %449 = vrot.lane.b32.xlu0 %v445, 126
    %v450 = vpop.permute.xlu0 %449
    %451 = vrot.lane.b32.xlu0 %v446, 126
    %v452 = vpop.permute.xlu0 %451
    %v455 = vadd.f32 %v371, %v450
    %v456 = vadd.f32 %v372, %v452
    %s457 = sld [smem:[#allocation6 + $0x71]]
    %v458 = vstv %s457
    %v459 = vmul.f32 %v279, %v458
    %v460 = vmul.f32 %v280, %v458
    %463 = vrot.lane.b32.xlu0 %v459, 126
    %v464 = vpop.permute.xlu0 %463
    %465 = vrot.lane.b32.xlu0 %v460, 126
    %v466 = vpop.permute.xlu0 %465
    %v469 = vadd.f32 %v385, %v464
    %v470 = vadd.f32 %v386, %v466
    %s471 = sld [smem:[#allocation6 + $0x8c]]
    %v472 = vstv %s471
    %v473 = vmul.f32 %v279, %v472
    %v474 = vmul.f32 %v280, %v472
    %477 = vrot.lane.b32.xlu0 %v473, 126
    %v478 = vpop.permute.xlu0 %477
    %479 = vrot.lane.b32.xlu0 %v474, 126
    %v480 = vpop.permute.xlu0 %479
    %v483 = vadd.f32 %v399, %v478
    %v484 = vadd.f32 %v400, %v480
    %v485 = vld [vmem:[#allocation2 + $0x2] sm:$0xff]
    %v486 = vld [vmem:[#allocation2 + $0xa] sm:$0x3f]
    %s487 = sld [smem:[#allocation6 + $0x6]]
    %v488 = vstv %s487
    %v489 = vmul.f32 %v485, %v488
    %v490 = vmul.f32 %v486, %v488
    %v491 = vadd.f32 %v413, %v489
    %v492 = vadd.f32 %v414, %v490
    %s493 = sld [smem:[#allocation6 + $0x21]]
    %v494 = vstv %s493
    %v495 = vmul.f32 %v485, %v494
    %v496 = vmul.f32 %v486, %v494
    %v497 = vadd.f32 %v427, %v495
    %v498 = vadd.f32 %v428, %v496
    %s499 = sld [smem:[#allocation6 + $0x3c]]
    %v500 = vstv %s499
    %v501 = vmul.f32 %v485, %v500
    %v502 = vmul.f32 %v486, %v500
    %v503 = vadd.f32 %v441, %v501
    %v504 = vadd.f32 %v442, %v502
    %s505 = sld [smem:[#allocation6 + $0x57]]
    %v506 = vstv %s505
    %v507 = vmul.f32 %v485, %v506
    %v508 = vmul.f32 %v486, %v506
    %v509 = vadd.f32 %v455, %v507
    %v510 = vadd.f32 %v456, %v508
    %s511 = sld [smem:[#allocation6 + $0x72]]
    %v512 = vstv %s511
    %v513 = vmul.f32 %v485, %v512
    %v514 = vmul.f32 %v486, %v512
    %v515 = vadd.f32 %v469, %v513
    %v516 = vadd.f32 %v470, %v514
    %s517 = sld [smem:[#allocation6 + $0x8d]]
    %v518 = vstv %s517
    %v519 = vmul.f32 %v485, %v518
    %v520 = vmul.f32 %v486, %v518
    %v521 = vadd.f32 %v483, %v519
    %v522 = vadd.f32 %v484, %v520
    %s523 = sld [smem:[#allocation6 + $0x7]]
    %v524 = vstv %s523
    %v525 = vmul.f32 %v485, %v524
    %v526 = vmul.f32 %v486, %v524
    %529 = vrot.lane.b32.xlu0 %v525, 127
    %v530 = vpop.permute.xlu0 %529
    %531 = vrot.lane.b32.xlu0 %v526, 127
    %v532 = vpop.permute.xlu0 %531
    %v535 = vadd.f32 %v491, %v530
    %v536 = vadd.f32 %v492, %v532
    %s537 = sld [smem:[#allocation6 + $0x22]]
    %v538 = vstv %s537
    %v539 = vmul.f32 %v485, %v538
    %v540 = vmul.f32 %v486, %v538
    %543 = vrot.lane.b32.xlu0 %v539, 127
    %v544 = vpop.permute.xlu0 %543
    %545 = vrot.lane.b32.xlu0 %v540, 127
    %v546 = vpop.permute.xlu0 %545
    %v549 = vadd.f32 %v497, %v544
    %v550 = vadd.f32 %v498, %v546
    %s551 = sld [smem:[#allocation6 + $0x3d]]
    %v552 = vstv %s551
    %v553 = vmul.f32 %v485, %v552
    %v554 = vmul.f32 %v486, %v552
    %557 = vrot.lane.b32.xlu0 %v553, 127
    %v558 = vpop.permute.xlu0 %557
    %559 = vrot.lane.b32.xlu0 %v554, 127
    %v560 = vpop.permute.xlu0 %559
    %v563 = vadd.f32 %v503, %v558
    %v564 = vadd.f32 %v504, %v560
    %s565 = sld [smem:[#allocation6 + $0x58]]
    %v566 = vstv %s565
    %v567 = vmul.f32 %v485, %v566
    %v568 = vmul.f32 %v486, %v566
    %571 = vrot.lane.b32.xlu0 %v567, 127
    %v572 = vpop.permute.xlu0 %571
    %573 = vrot.lane.b32.xlu0 %v568, 127
    %v574 = vpop.permute.xlu0 %573
    %v577 = vadd.f32 %v509, %v572
    %v578 = vadd.f32 %v510, %v574
    %s579 = sld [smem:[#allocation6 + $0x73]]
    %v580 = vstv %s579
    %v581 = vmul.f32 %v485, %v580
    %v582 = vmul.f32 %v486, %v580
    %585 = vrot.lane.b32.xlu0 %v581, 127
    %v586 = vpop.permute.xlu0 %585
    %587 = vrot.lane.b32.xlu0 %v582, 127
    %v588 = vpop.permute.xlu0 %587
    %v591 = vadd.f32 %v515, %v586
    %v592 = vadd.f32 %v516, %v588
    %s593 = sld [smem:[#allocation6 + $0x8e]]
    %v594 = vstv %s593
    %v595 = vmul.f32 %v485, %v594
    %v596 = vmul.f32 %v486, %v594
    %599 = vrot.lane.b32.xlu0 %v595, 127
    %v600 = vpop.permute.xlu0 %599
    %601 = vrot.lane.b32.xlu0 %v596, 127
    %v602 = vpop.permute.xlu0 %601
    %v605 = vadd.f32 %v521, %v600
    %v606 = vadd.f32 %v522, %v602
    %s607 = sld [smem:[#allocation6 + $0x8]]
    %v608 = vstv %s607
    %v609 = vmul.f32 %v485, %v608
    %v610 = vmul.f32 %v486, %v608
    %613 = vrot.lane.b32.xlu0 %v609, 126
    %v614 = vpop.permute.xlu0 %613
    %615 = vrot.lane.b32.xlu0 %v610, 126
    %v616 = vpop.permute.xlu0 %615
    %v619 = vadd.f32 %v535, %v614
    %v620 = vadd.f32 %v536, %v616
    %s621 = sld [smem:[#allocation6 + $0x23]]
    %v622 = vstv %s621
    %v623 = vmul.f32 %v485, %v622
    %v624 = vmul.f32 %v486, %v622
    %627 = vrot.lane.b32.xlu0 %v623, 126
    %v628 = vpop.permute.xlu0 %627
    %629 = vrot.lane.b32.xlu0 %v624, 126
    %v630 = vpop.permute.xlu0 %629
    %v633 = vadd.f32 %v549, %v628
    %v634 = vadd.f32 %v550, %v630
    %s635 = sld [smem:[#allocation6 + $0x3e]]
    %v636 = vstv %s635
    %v637 = vmul.f32 %v485, %v636
    %v638 = vmul.f32 %v486, %v636
    %641 = vrot.lane.b32.xlu0 %v637, 126
    %v642 = vpop.permute.xlu0 %641
    %643 = vrot.lane.b32.xlu0 %v638, 126
    %v644 = vpop.permute.xlu0 %643
    %v647 = vadd.f32 %v563, %v642
    %v648 = vadd.f32 %v564, %v644
    %s649 = sld [smem:[#allocation6 + $0x59]]
    %v650 = vstv %s649
    %v651 = vmul.f32 %v485, %v650
    %v652 = vmul.f32 %v486, %v650
    %655 = vrot.lane.b32.xlu0 %v651, 126
    %v656 = vpop.permute.xlu0 %655
    %657 = vrot.lane.b32.xlu0 %v652, 126
    %v658 = vpop.permute.xlu0 %657
    %v661 = vadd.f32 %v577, %v656
    %v662 = vadd.f32 %v578, %v658
    %s663 = sld [smem:[#allocation6 + $0x74]]
    %v664 = vstv %s663
    %v665 = vmul.f32 %v485, %v664
    %v666 = vmul.f32 %v486, %v664
    %669 = vrot.lane.b32.xlu0 %v665, 126
    %v670 = vpop.permute.xlu0 %669
    %671 = vrot.lane.b32.xlu0 %v666, 126
    %v672 = vpop.permute.xlu0 %671
    %v675 = vadd.f32 %v591, %v670
    %v676 = vadd.f32 %v592, %v672
    %s677 = sld [smem:[#allocation6 + $0x8f]]
    %v678 = vstv %s677
    %v679 = vmul.f32 %v485, %v678
    %v680 = vmul.f32 %v486, %v678
    %683 = vrot.lane.b32.xlu0 %v679, 126
    %v684 = vpop.permute.xlu0 %683
    %685 = vrot.lane.b32.xlu0 %v680, 126
    %v686 = vpop.permute.xlu0 %685
    %v689 = vadd.f32 %v605, %v684
    %v690 = vadd.f32 %v606, %v686
    %s691 = scalar_lea.vmem [#allocation2], 16
    %v692 = vld [vmem:[%s691] sm:$0xff]
    %v693 = vld [vmem:[%s691 + $0x8] sm:$0x3f]
    %s694 = sld [smem:[#allocation6 + $0x9]]
    %v695 = vstv %s694
    %v696 = vmul.f32 %v692, %v695
    %v697 = vmul.f32 %v693, %v695
    %v698 = vadd.f32 %v619, %v696
    %v699 = vadd.f32 %v620, %v697
    %s700 = sld [smem:[#allocation6 + $0x24]]
    %v701 = vstv %s700
    %v702 = vmul.f32 %v692, %v701
    %v703 = vmul.f32 %v693, %v701
    %v704 = vadd.f32 %v633, %v702
    %v705 = vadd.f32 %v634, %v703
    %s706 = sld [smem:[#allocation6 + $0x3f]]
    %v707 = vstv %s706
    %v708 = vmul.f32 %v692, %v707
    %v709 = vmul.f32 %v693, %v707
    %v710 = vadd.f32 %v647, %v708
    %v711 = vadd.f32 %v648, %v709
    %s712 = sld [smem:[#allocation6 + $0x5a]]
    %v713 = vstv %s712
    %v714 = vmul.f32 %v692, %v713
    %v715 = vmul.f32 %v693, %v713
    %v716 = vadd.f32 %v661, %v714
    %v717 = vadd.f32 %v662, %v715
    %s718 = sld [smem:[#allocation6 + $0x75]]
    %v719 = vstv %s718
    %v720 = vmul.f32 %v692, %v719
    %v721 = vmul.f32 %v693, %v719
    %v722 = vadd.f32 %v675, %v720
    %v723 = vadd.f32 %v676, %v721
    %s724 = sld [smem:[#allocation6 + $0x90]]
    %v725 = vstv %s724
    %v726 = vmul.f32 %v692, %v725
    %v727 = vmul.f32 %v693, %v725
    %v728 = vadd.f32 %v689, %v726
    %v729 = vadd.f32 %v690, %v727
    %s730 = sld [smem:[#allocation6 + $0xa]]
    %v731 = vstv %s730
    %v732 = vmul.f32 %v692, %v731
    %v733 = vmul.f32 %v693, %v731
    %736 = vrot.lane.b32.xlu0 %v732, 127
    %v737 = vpop.permute.xlu0 %736
    %738 = vrot.lane.b32.xlu0 %v733, 127
    %v739 = vpop.permute.xlu0 %738
    %v742 = vadd.f32 %v698, %v737
    %v743 = vadd.f32 %v699, %v739
    %s744 = sld [smem:[#allocation6 + $0x25]]
    %v745 = vstv %s744
    %v746 = vmul.f32 %v692, %v745
    %v747 = vmul.f32 %v693, %v745
    %750 = vrot.lane.b32.xlu0 %v746, 127
    %v751 = vpop.permute.xlu0 %750
    %752 = vrot.lane.b32.xlu0 %v747, 127
    %v753 = vpop.permute.xlu0 %752
    %v756 = vadd.f32 %v704, %v751
    %v757 = vadd.f32 %v705, %v753
    %s758 = sld [smem:[#allocation6 + $0x40]]
    %v759 = vstv %s758
    %v760 = vmul.f32 %v692, %v759
    %v761 = vmul.f32 %v693, %v759
    %764 = vrot.lane.b32.xlu0 %v760, 127
    %v765 = vpop.permute.xlu0 %764
    %766 = vrot.lane.b32.xlu0 %v761, 127
    %v767 = vpop.permute.xlu0 %766
    %v770 = vadd.f32 %v710, %v765
    %v771 = vadd.f32 %v711, %v767
    %s772 = sld [smem:[#allocation6 + $0x5b]]
    %v773 = vstv %s772
    %v774 = vmul.f32 %v692, %v773
    %v775 = vmul.f32 %v693, %v773
    %778 = vrot.lane.b32.xlu0 %v774, 127
    %v779 = vpop.permute.xlu0 %778
    %780 = vrot.lane.b32.xlu0 %v775, 127
    %v781 = vpop.permute.xlu0 %780
    %v784 = vadd.f32 %v716, %v779
    %v785 = vadd.f32 %v717, %v781
    %s786 = sld [smem:[#allocation6 + $0x76]]
    %v787 = vstv %s786
    %v788 = vmul.f32 %v692, %v787
    %v789 = vmul.f32 %v693, %v787
    %792 = vrot.lane.b32.xlu0 %v788, 127
    %v793 = vpop.permute.xlu0 %792
    %794 = vrot.lane.b32.xlu0 %v789, 127
    %v795 = vpop.permute.xlu0 %794
    %v798 = vadd.f32 %v722, %v793
    %v799 = vadd.f32 %v723, %v795
    %s800 = sld [smem:[#allocation6 + $0x91]]
    %v801 = vstv %s800
    %v802 = vmul.f32 %v692, %v801
    %v803 = vmul.f32 %v693, %v801
    %806 = vrot.lane.b32.xlu0 %v802, 127
    %v807 = vpop.permute.xlu0 %806
    %808 = vrot.lane.b32.xlu0 %v803, 127
    %v809 = vpop.permute.xlu0 %808
    %v812 = vadd.f32 %v728, %v807
    %v813 = vadd.f32 %v729, %v809
    %s814 = sld [smem:[#allocation6 + $0xb]]
    %v815 = vstv %s814
    %v816 = vmul.f32 %v692, %v815
    %v817 = vmul.f32 %v693, %v815
    %820 = vrot.lane.b32.xlu0 %v816, 126
    %v821 = vpop.permute.xlu0 %820
    %822 = vrot.lane.b32.xlu0 %v817, 126
    %v823 = vpop.permute.xlu0 %822
    %v826 = vadd.f32 %v742, %v821
    %v827 = vadd.f32 %v743, %v823
    %s828 = sld [smem:[#allocation6 + $0x26]]
    %v829 = vstv %s828
    %v830 = vmul.f32 %v692, %v829
    %v831 = vmul.f32 %v693, %v829
    %834 = vrot.lane.b32.xlu0 %v830, 126
    %v835 = vpop.permute.xlu0 %834
    %836 = vrot.lane.b32.xlu0 %v831, 126
    %v837 = vpop.permute.xlu0 %836
    %v840 = vadd.f32 %v756, %v835
    %v841 = vadd.f32 %v757, %v837
    %s842 = sld [smem:[#allocation6 + $0x41]]
    %v843 = vstv %s842
    %v844 = vmul.f32 %v692, %v843
    %v845 = vmul.f32 %v693, %v843
    %848 = vrot.lane.b32.xlu0 %v844, 126
    %v849 = vpop.permute.xlu0 %848
    %850 = vrot.lane.b32.xlu0 %v845, 126
    %v851 = vpop.permute.xlu0 %850
    %v854 = vadd.f32 %v770, %v849
    %v855 = vadd.f32 %v771, %v851
    %s856 = sld [smem:[#allocation6 + $0x5c]]
    %v857 = vstv %s856
    %v858 = vmul.f32 %v692, %v857
    %v859 = vmul.f32 %v693, %v857
    %862 = vrot.lane.b32.xlu0 %v858, 126
    %v863 = vpop.permute.xlu0 %862
    %864 = vrot.lane.b32.xlu0 %v859, 126
    %v865 = vpop.permute.xlu0 %864
    %v868 = vadd.f32 %v784, %v863
    %v869 = vadd.f32 %v785, %v865
    %s870 = sld [smem:[#allocation6 + $0x77]]
    %v871 = vstv %s870
    %v872 = vmul.f32 %v692, %v871
    %v873 = vmul.f32 %v693, %v871
    %876 = vrot.lane.b32.xlu0 %v872, 126
    %v877 = vpop.permute.xlu0 %876
    %878 = vrot.lane.b32.xlu0 %v873, 126
    %v879 = vpop.permute.xlu0 %878
    %v882 = vadd.f32 %v798, %v877
    %v883 = vadd.f32 %v799, %v879
    %s884 = sld [smem:[#allocation6 + $0x92]]
    %v885 = vstv %s884
    %v886 = vmul.f32 %v692, %v885
    %v887 = vmul.f32 %v693, %v885
    %890 = vrot.lane.b32.xlu0 %v886, 126
    %v891 = vpop.permute.xlu0 %890
    %892 = vrot.lane.b32.xlu0 %v887, 126
    %v893 = vpop.permute.xlu0 %892
    %v896 = vadd.f32 %v812, %v891
    %v897 = vadd.f32 %v813, %v893
    %v898 = vld [vmem:[%s691 + $0x1] sm:$0xff]
    %v899 = vld [vmem:[%s691 + $0x9] sm:$0x3f]
    %s900 = sld [smem:[#allocation6 + $0xc]]
    %v901 = vstv %s900
    %v902 = vmul.f32 %v898, %v901
    %v903 = vmul.f32 %v899, %v901
    %v904 = vadd.f32 %v826, %v902
    %v905 = vadd.f32 %v827, %v903
    %s906 = sld [smem:[#allocation6 + $0x27]]
    %v907 = vstv %s906
    %v908 = vmul.f32 %v898, %v907
    %v909 = vmul.f32 %v899, %v907
    %v910 = vadd.f32 %v840, %v908
    %v911 = vadd.f32 %v841, %v909
    %s912 = sld [smem:[#allocation6 + $0x42]]
    %v913 = vstv %s912
    %v914 = vmul.f32 %v898, %v913
    %v915 = vmul.f32 %v899, %v913
    %v916 = vadd.f32 %v854, %v914
    %v917 = vadd.f32 %v855, %v915
    %s918 = sld [smem:[#allocation6 + $0x5d]]
    %v919 = vstv %s918
    %v920 = vmul.f32 %v898, %v919
    %v921 = vmul.f32 %v899, %v919
    %v922 = vadd.f32 %v868, %v920
    %v923 = vadd.f32 %v869, %v921
    %s924 = sld [smem:[#allocation6 + $0x78]]
    %v925 = vstv %s924
    %v926 = vmul.f32 %v898, %v925
    %v927 = vmul.f32 %v899, %v925
    %v928 = vadd.f32 %v882, %v926
    %v929 = vadd.f32 %v883, %v927
    %s930 = sld [smem:[#allocation6 + $0x93]]
    %v931 = vstv %s930
    %v932 = vmul.f32 %v898, %v931
    %v933 = vmul.f32 %v899, %v931
    %v934 = vadd.f32 %v896, %v932
    %v935 = vadd.f32 %v897, %v933
    %s936 = sld [smem:[#allocation6 + $0xd]]
    %v937 = vstv %s936
    %v938 = vmul.f32 %v898, %v937
    %v939 = vmul.f32 %v899, %v937
    %942 = vrot.lane.b32.xlu0 %v938, 127
    %v943 = vpop.permute.xlu0 %942
    %944 = vrot.lane.b32.xlu0 %v939, 127
    %v945 = vpop.permute.xlu0 %944
    %v948 = vadd.f32 %v904, %v943
    %v949 = vadd.f32 %v905, %v945
    %s950 = sld [smem:[#allocation6 + $0x28]]
    %v951 = vstv %s950
    %v952 = vmul.f32 %v898, %v951
    %v953 = vmul.f32 %v899, %v951
    %956 = vrot.lane.b32.xlu0 %v952, 127
    %v957 = vpop.permute.xlu0 %956
    %958 = vrot.lane.b32.xlu0 %v953, 127
    %v959 = vpop.permute.xlu0 %958
    %v962 = vadd.f32 %v910, %v957
    %v963 = vadd.f32 %v911, %v959
    %s964 = sld [smem:[#allocation6 + $0x43]]
    %v965 = vstv %s964
    %v966 = vmul.f32 %v898, %v965
    %v967 = vmul.f32 %v899, %v965
    %970 = vrot.lane.b32.xlu0 %v966, 127
    %v971 = vpop.permute.xlu0 %970
    %972 = vrot.lane.b32.xlu0 %v967, 127
    %v973 = vpop.permute.xlu0 %972
    %v976 = vadd.f32 %v916, %v971
    %v977 = vadd.f32 %v917, %v973
    %s978 = sld [smem:[#allocation6 + $0x5e]]
    %v979 = vstv %s978
    %v980 = vmul.f32 %v898, %v979
    %v981 = vmul.f32 %v899, %v979
    %984 = vrot.lane.b32.xlu0 %v980, 127
    %v985 = vpop.permute.xlu0 %984
    %986 = vrot.lane.b32.xlu0 %v981, 127
    %v987 = vpop.permute.xlu0 %986
    %v990 = vadd.f32 %v922, %v985
    %v991 = vadd.f32 %v923, %v987
    %s992 = sld [smem:[#allocation6 + $0x79]]
    %v993 = vstv %s992
    %v994 = vmul.f32 %v898, %v993
    %v995 = vmul.f32 %v899, %v993
    %998 = vrot.lane.b32.xlu0 %v994, 127
    %v999 = vpop.permute.xlu0 %998
    %1000 = vrot.lane.b32.xlu0 %v995, 127
    %v1001 = vpop.permute.xlu0 %1000
    %v1004 = vadd.f32 %v928, %v999
    %v1005 = vadd.f32 %v929, %v1001
    %s1006 = sld [smem:[#allocation6 + $0x94]]
    %v1007 = vstv %s1006
    %v1008 = vmul.f32 %v898, %v1007
    %v1009 = vmul.f32 %v899, %v1007
    %1012 = vrot.lane.b32.xlu0 %v1008, 127
    %v1013 = vpop.permute.xlu0 %1012
    %1014 = vrot.lane.b32.xlu0 %v1009, 127
    %v1015 = vpop.permute.xlu0 %1014
    %v1018 = vadd.f32 %v934, %v1013
    %v1019 = vadd.f32 %v935, %v1015
    %s1020 = sld [smem:[#allocation6 + $0xe]]
    %v1021 = vstv %s1020
    %v1022 = vmul.f32 %v898, %v1021
    %v1023 = vmul.f32 %v899, %v1021
    %1026 = vrot.lane.b32.xlu0 %v1022, 126
    %v1027 = vpop.permute.xlu0 %1026
    %1028 = vrot.lane.b32.xlu0 %v1023, 126
    %v1029 = vpop.permute.xlu0 %1028
    %v1032 = vadd.f32 %v948, %v1027
    %v1033 = vadd.f32 %v949, %v1029
    %s1034 = sld [smem:[#allocation6 + $0x29]]
    %v1035 = vstv %s1034
    %v1036 = vmul.f32 %v898, %v1035
    %v1037 = vmul.f32 %v899, %v1035
    %1040 = vrot.lane.b32.xlu0 %v1036, 126
    %v1041 = vpop.permute.xlu0 %1040
    %1042 = vrot.lane.b32.xlu0 %v1037, 126
    %v1043 = vpop.permute.xlu0 %1042
    %v1046 = vadd.f32 %v962, %v1041
    %v1047 = vadd.f32 %v963, %v1043
    %s1048 = sld [smem:[#allocation6 + $0x44]]
    %v1049 = vstv %s1048
    %v1050 = vmul.f32 %v898, %v1049
    %v1051 = vmul.f32 %v899, %v1049
    %1054 = vrot.lane.b32.xlu0 %v1050, 126
    %v1055 = vpop.permute.xlu0 %1054
    %1056 = vrot.lane.b32.xlu0 %v1051, 126
    %v1057 = vpop.permute.xlu0 %1056
    %v1060 = vadd.f32 %v976, %v1055
    %v1061 = vadd.f32 %v977, %v1057
    %s1062 = sld [smem:[#allocation6 + $0x5f]]
    %v1063 = vstv %s1062
    %v1064 = vmul.f32 %v898, %v1063
    %v1065 = vmul.f32 %v899, %v1063
    %1068 = vrot.lane.b32.xlu0 %v1064, 126
    %v1069 = vpop.permute.xlu0 %1068
    %1070 = vrot.lane.b32.xlu0 %v1065, 126
    %v1071 = vpop.permute.xlu0 %1070
    %v1074 = vadd.f32 %v990, %v1069
    %v1075 = vadd.f32 %v991, %v1071
    %s1076 = sld [smem:[#allocation6 + $0x7a]]
    %v1077 = vstv %s1076
    %v1078 = vmul.f32 %v898, %v1077
    %v1079 = vmul.f32 %v899, %v1077
    %1082 = vrot.lane.b32.xlu0 %v1078, 126
    %v1083 = vpop.permute.xlu0 %1082
    %1084 = vrot.lane.b32.xlu0 %v1079, 126
    %v1085 = vpop.permute.xlu0 %1084
    %v1088 = vadd.f32 %v1004, %v1083
    %v1089 = vadd.f32 %v1005, %v1085
    %s1090 = sld [smem:[#allocation6 + $0x95]]
    %v1091 = vstv %s1090
    %v1092 = vmul.f32 %v898, %v1091
    %v1093 = vmul.f32 %v899, %v1091
    %1096 = vrot.lane.b32.xlu0 %v1092, 126
    %v1097 = vpop.permute.xlu0 %1096
    %1098 = vrot.lane.b32.xlu0 %v1093, 126
    %v1099 = vpop.permute.xlu0 %1098
    %v1102 = vadd.f32 %v1018, %v1097
    %v1103 = vadd.f32 %v1019, %v1099
    %v1104 = vld [vmem:[%s691 + $0x2] sm:$0xff]
    %v1105 = vld [vmem:[%s691 + $0xa] sm:$0x3f]
    %s1106 = sld [smem:[#allocation6 + $0xf]]
    %v1107 = vstv %s1106
    %v1108 = vmul.f32 %v1104, %v1107
    %v1109 = vmul.f32 %v1105, %v1107
    %v1110 = vadd.f32 %v1032, %v1108
    %v1111 = vadd.f32 %v1033, %v1109
    %s1112 = sld [smem:[#allocation6 + $0x2a]]
    %v1113 = vstv %s1112
    %v1114 = vmul.f32 %v1104, %v1113
    %v1115 = vmul.f32 %v1105, %v1113
    %v1116 = vadd.f32 %v1046, %v1114
    %v1117 = vadd.f32 %v1047, %v1115
    %s1118 = sld [smem:[#allocation6 + $0x45]]
    %v1119 = vstv %s1118
    %v1120 = vmul.f32 %v1104, %v1119
    %v1121 = vmul.f32 %v1105, %v1119
    %v1122 = vadd.f32 %v1060, %v1120
    %v1123 = vadd.f32 %v1061, %v1121
    %s1124 = sld [smem:[#allocation6 + $0x60]]
    %v1125 = vstv %s1124
    %v1126 = vmul.f32 %v1104, %v1125
    %v1127 = vmul.f32 %v1105, %v1125
    %v1128 = vadd.f32 %v1074, %v1126
    %v1129 = vadd.f32 %v1075, %v1127
    %s1130 = sld [smem:[#allocation6 + $0x7b]]
    %v1131 = vstv %s1130
    %v1132 = vmul.f32 %v1104, %v1131
    %v1133 = vmul.f32 %v1105, %v1131
    %v1134 = vadd.f32 %v1088, %v1132
    %v1135 = vadd.f32 %v1089, %v1133
    %s1136 = sld [smem:[#allocation6 + $0x96]]
    %v1137 = vstv %s1136
    %v1138 = vmul.f32 %v1104, %v1137
    %v1139 = vmul.f32 %v1105, %v1137
    %v1140 = vadd.f32 %v1102, %v1138
    %v1141 = vadd.f32 %v1103, %v1139
    %s1142 = sld [smem:[#allocation6 + $0x10]]
    %v1143 = vstv %s1142
    %v1144 = vmul.f32 %v1104, %v1143
    %v1145 = vmul.f32 %v1105, %v1143
    %1148 = vrot.lane.b32.xlu0 %v1144, 127
    %v1149 = vpop.permute.xlu0 %1148
    %1150 = vrot.lane.b32.xlu0 %v1145, 127
    %v1151 = vpop.permute.xlu0 %1150
    %v1154 = vadd.f32 %v1110, %v1149
    %v1155 = vadd.f32 %v1111, %v1151
    %s1156 = sld [smem:[#allocation6 + $0x2b]]
    %v1157 = vstv %s1156
    %v1158 = vmul.f32 %v1104, %v1157
    %v1159 = vmul.f32 %v1105, %v1157
    %1162 = vrot.lane.b32.xlu0 %v1158, 127
    %v1163 = vpop.permute.xlu0 %1162
    %1164 = vrot.lane.b32.xlu0 %v1159, 127
    %v1165 = vpop.permute.xlu0 %1164
    %v1168 = vadd.f32 %v1116, %v1163
    %v1169 = vadd.f32 %v1117, %v1165
    %s1170 = sld [smem:[#allocation6 + $0x46]]
    %v1171 = vstv %s1170
    %v1172 = vmul.f32 %v1104, %v1171
    %v1173 = vmul.f32 %v1105, %v1171
    %1176 = vrot.lane.b32.xlu0 %v1172, 127
    %v1177 = vpop.permute.xlu0 %1176
    %1178 = vrot.lane.b32.xlu0 %v1173, 127
    %v1179 = vpop.permute.xlu0 %1178
    %v1182 = vadd.f32 %v1122, %v1177
    %v1183 = vadd.f32 %v1123, %v1179
    %s1184 = sld [smem:[#allocation6 + $0x61]]
    %v1185 = vstv %s1184
    %v1186 = vmul.f32 %v1104, %v1185
    %v1187 = vmul.f32 %v1105, %v1185
    %1190 = vrot.lane.b32.xlu0 %v1186, 127
    %v1191 = vpop.permute.xlu0 %1190
    %1192 = vrot.lane.b32.xlu0 %v1187, 127
    %v1193 = vpop.permute.xlu0 %1192
    %v1196 = vadd.f32 %v1128, %v1191
    %v1197 = vadd.f32 %v1129, %v1193
    %s1198 = sld [smem:[#allocation6 + $0x7c]]
    %v1199 = vstv %s1198
    %v1200 = vmul.f32 %v1104, %v1199
    %v1201 = vmul.f32 %v1105, %v1199
    %1204 = vrot.lane.b32.xlu0 %v1200, 127
    %v1205 = vpop.permute.xlu0 %1204
    %1206 = vrot.lane.b32.xlu0 %v1201, 127
    %v1207 = vpop.permute.xlu0 %1206
    %v1210 = vadd.f32 %v1134, %v1205
    %v1211 = vadd.f32 %v1135, %v1207
    %s1212 = sld [smem:[#allocation6 + $0x97]]
    %v1213 = vstv %s1212
    %v1214 = vmul.f32 %v1104, %v1213
    %v1215 = vmul.f32 %v1105, %v1213
    %1218 = vrot.lane.b32.xlu0 %v1214, 127
    %v1219 = vpop.permute.xlu0 %1218
    %1220 = vrot.lane.b32.xlu0 %v1215, 127
    %v1221 = vpop.permute.xlu0 %1220
    %v1224 = vadd.f32 %v1140, %v1219
    %v1225 = vadd.f32 %v1141, %v1221
    %s1226 = sld [smem:[#allocation6 + $0x11]]
    %v1227 = vstv %s1226
    %v1228 = vmul.f32 %v1104, %v1227
    %v1229 = vmul.f32 %v1105, %v1227
    %1232 = vrot.lane.b32.xlu0 %v1228, 126
    %v1233 = vpop.permute.xlu0 %1232
    %1234 = vrot.lane.b32.xlu0 %v1229, 126
    %v1235 = vpop.permute.xlu0 %1234
    %v1238 = vadd.f32 %v1154, %v1233
    %v1239 = vadd.f32 %v1155, %v1235
    %s1240 = sld [smem:[#allocation6 + $0x2c]]
    %v1241 = vstv %s1240
    %v1242 = vmul.f32 %v1104, %v1241
    %v1243 = vmul.f32 %v1105, %v1241
    %1246 = vrot.lane.b32.xlu0 %v1242, 126
    %v1247 = vpop.permute.xlu0 %1246
    %1248 = vrot.lane.b32.xlu0 %v1243, 126
    %v1249 = vpop.permute.xlu0 %1248
    %v1252 = vadd.f32 %v1168, %v1247
    %v1253 = vadd.f32 %v1169, %v1249
    %s1254 = sld [smem:[#allocation6 + $0x47]]
    %v1255 = vstv %s1254
    %v1256 = vmul.f32 %v1104, %v1255
    %v1257 = vmul.f32 %v1105, %v1255
    %1260 = vrot.lane.b32.xlu0 %v1256, 126
    %v1261 = vpop.permute.xlu0 %1260
    %1262 = vrot.lane.b32.xlu0 %v1257, 126
    %v1263 = vpop.permute.xlu0 %1262
    %v1266 = vadd.f32 %v1182, %v1261
    %v1267 = vadd.f32 %v1183, %v1263
    %s1268 = sld [smem:[#allocation6 + $0x62]]
    %v1269 = vstv %s1268
    %v1270 = vmul.f32 %v1104, %v1269
    %v1271 = vmul.f32 %v1105, %v1269
    %1274 = vrot.lane.b32.xlu0 %v1270, 126
    %v1275 = vpop.permute.xlu0 %1274
    %1276 = vrot.lane.b32.xlu0 %v1271, 126
    %v1277 = vpop.permute.xlu0 %1276
    %v1280 = vadd.f32 %v1196, %v1275
    %v1281 = vadd.f32 %v1197, %v1277
    %s1282 = sld [smem:[#allocation6 + $0x7d]]
    %v1283 = vstv %s1282
    %v1284 = vmul.f32 %v1104, %v1283
    %v1285 = vmul.f32 %v1105, %v1283
    %1288 = vrot.lane.b32.xlu0 %v1284, 126
    %v1289 = vpop.permute.xlu0 %1288
    %1290 = vrot.lane.b32.xlu0 %v1285, 126
    %v1291 = vpop.permute.xlu0 %1290
    %v1294 = vadd.f32 %v1210, %v1289
    %v1295 = vadd.f32 %v1211, %v1291
    %s1296 = sld [smem:[#allocation6 + $0x98]]
    %v1297 = vstv %s1296
    %v1298 = vmul.f32 %v1104, %v1297
    %v1299 = vmul.f32 %v1105, %v1297
    %1302 = vrot.lane.b32.xlu0 %v1298, 126
    %v1303 = vpop.permute.xlu0 %1302
    %1304 = vrot.lane.b32.xlu0 %v1299, 126
    %v1305 = vpop.permute.xlu0 %1304
    %v1308 = vadd.f32 %v1224, %v1303
    %v1309 = vadd.f32 %v1225, %v1305
    %s1310 = scalar_lea.vmem [#allocation2], 32
    %v1311 = vld [vmem:[%s1310] sm:$0xff]
    %v1312 = vld [vmem:[%s1310 + $0x8] sm:$0x3f]
    %s1313 = sld [smem:[#allocation6 + $0x12]]
    %v1314 = vstv %s1313
    %v1315 = vmul.f32 %v1311, %v1314
    %v1316 = vmul.f32 %v1312, %v1314
    %v1317 = vadd.f32 %v1238, %v1315
    %v1318 = vadd.f32 %v1239, %v1316
    %s1319 = sld [smem:[#allocation6 + $0x2d]]
    %v1320 = vstv %s1319
    %v1321 = vmul.f32 %v1311, %v1320
    %v1322 = vmul.f32 %v1312, %v1320
    %v1323 = vadd.f32 %v1252, %v1321
    %v1324 = vadd.f32 %v1253, %v1322
    %s1325 = sld [smem:[#allocation6 + $0x48]]
    %v1326 = vstv %s1325
    %v1327 = vmul.f32 %v1311, %v1326
    %v1328 = vmul.f32 %v1312, %v1326
    %v1329 = vadd.f32 %v1266, %v1327
    %v1330 = vadd.f32 %v1267, %v1328
    %s1331 = sld [smem:[#allocation6 + $0x63]]
    %v1332 = vstv %s1331
    %v1333 = vmul.f32 %v1311, %v1332
    %v1334 = vmul.f32 %v1312, %v1332
    %v1335 = vadd.f32 %v1280, %v1333
    %v1336 = vadd.f32 %v1281, %v1334
    %s1337 = sld [smem:[#allocation6 + $0x7e]]
    %v1338 = vstv %s1337
    %v1339 = vmul.f32 %v1311, %v1338
    %v1340 = vmul.f32 %v1312, %v1338
    %v1341 = vadd.f32 %v1294, %v1339
    %v1342 = vadd.f32 %v1295, %v1340
    %s1343 = sld [smem:[#allocation6 + $0x99]]
    %v1344 = vstv %s1343
    %v1345 = vmul.f32 %v1311, %v1344
    %v1346 = vmul.f32 %v1312, %v1344
    %v1347 = vadd.f32 %v1308, %v1345
    %v1348 = vadd.f32 %v1309, %v1346
    %s1349 = sld [smem:[#allocation6 + $0x13]]
    %v1350 = vstv %s1349
    %v1351 = vmul.f32 %v1311, %v1350
    %v1352 = vmul.f32 %v1312, %v1350
    %1355 = vrot.lane.b32.xlu0 %v1351, 127
    %v1356 = vpop.permute.xlu0 %1355
    %1357 = vrot.lane.b32.xlu0 %v1352, 127
    %v1358 = vpop.permute.xlu0 %1357
    %v1361 = vadd.f32 %v1317, %v1356
    %v1362 = vadd.f32 %v1318, %v1358
    %s1363 = sld [smem:[#allocation6 + $0x2e]]
    %v1364 = vstv %s1363
    %v1365 = vmul.f32 %v1311, %v1364
    %v1366 = vmul.f32 %v1312, %v1364
    %1369 = vrot.lane.b32.xlu0 %v1365, 127
    %v1370 = vpop.permute.xlu0 %1369
    %1371 = vrot.lane.b32.xlu0 %v1366, 127
    %v1372 = vpop.permute.xlu0 %1371
    %v1375 = vadd.f32 %v1323, %v1370
    %v1376 = vadd.f32 %v1324, %v1372
    %s1377 = sld [smem:[#allocation6 + $0x49]]
    %v1378 = vstv %s1377
    %v1379 = vmul.f32 %v1311, %v1378
    %v1380 = vmul.f32 %v1312, %v1378
    %1383 = vrot.lane.b32.xlu0 %v1379, 127
    %v1384 = vpop.permute.xlu0 %1383
    %1385 = vrot.lane.b32.xlu0 %v1380, 127
    %v1386 = vpop.permute.xlu0 %1385
    %v1389 = vadd.f32 %v1329, %v1384
    %v1390 = vadd.f32 %v1330, %v1386
    %s1391 = sld [smem:[#allocation6 + $0x64]]
    %v1392 = vstv %s1391
    %v1393 = vmul.f32 %v1311, %v1392
    %v1394 = vmul.f32 %v1312, %v1392
    %1397 = vrot.lane.b32.xlu0 %v1393, 127
    %v1398 = vpop.permute.xlu0 %1397
    %1399 = vrot.lane.b32.xlu0 %v1394, 127
    %v1400 = vpop.permute.xlu0 %1399
    %v1403 = vadd.f32 %v1335, %v1398
    %v1404 = vadd.f32 %v1336, %v1400
    %s1405 = sld [smem:[#allocation6 + $0x7f]]
    %v1406 = vstv %s1405
    %v1407 = vmul.f32 %v1311, %v1406
    %v1408 = vmul.f32 %v1312, %v1406
    %1411 = vrot.lane.b32.xlu0 %v1407, 127
    %v1412 = vpop.permute.xlu0 %1411
    %1413 = vrot.lane.b32.xlu0 %v1408, 127
    %v1414 = vpop.permute.xlu0 %1413
    %v1417 = vadd.f32 %v1341, %v1412
    %v1418 = vadd.f32 %v1342, %v1414
    %s1419 = sld [smem:[#allocation6 + $0x9a]]
    %v1420 = vstv %s1419
    %v1421 = vmul.f32 %v1311, %v1420
    %v1422 = vmul.f32 %v1312, %v1420
    %1425 = vrot.lane.b32.xlu0 %v1421, 127
    %v1426 = vpop.permute.xlu0 %1425
    %1427 = vrot.lane.b32.xlu0 %v1422, 127
    %v1428 = vpop.permute.xlu0 %1427
    %v1431 = vadd.f32 %v1347, %v1426
    %v1432 = vadd.f32 %v1348, %v1428
    %s1433 = sld [smem:[#allocation6 + $0x14]]
    %v1434 = vstv %s1433
    %v1435 = vmul.f32 %v1311, %v1434
    %v1436 = vmul.f32 %v1312, %v1434
    %1439 = vrot.lane.b32.xlu0 %v1435, 126
    %v1440 = vpop.permute.xlu0 %1439
    %1441 = vrot.lane.b32.xlu0 %v1436, 126
    %v1442 = vpop.permute.xlu0 %1441
    %v1445 = vadd.f32 %v1361, %v1440
    %v1446 = vadd.f32 %v1362, %v1442
    %s1447 = sld [smem:[#allocation6 + $0x2f]]
    %v1448 = vstv %s1447
    %v1449 = vmul.f32 %v1311, %v1448
    %v1450 = vmul.f32 %v1312, %v1448
    %1453 = vrot.lane.b32.xlu0 %v1449, 126
    %v1454 = vpop.permute.xlu0 %1453
    %1455 = vrot.lane.b32.xlu0 %v1450, 126
    %v1456 = vpop.permute.xlu0 %1455
    %v1459 = vadd.f32 %v1375, %v1454
    %v1460 = vadd.f32 %v1376, %v1456
    %s1461 = sld [smem:[#allocation6 + $0x4a]]
    %v1462 = vstv %s1461
    %v1463 = vmul.f32 %v1311, %v1462
    %v1464 = vmul.f32 %v1312, %v1462
    %1467 = vrot.lane.b32.xlu0 %v1463, 126
    %v1468 = vpop.permute.xlu0 %1467
    %1469 = vrot.lane.b32.xlu0 %v1464, 126
    %v1470 = vpop.permute.xlu0 %1469
    %v1473 = vadd.f32 %v1389, %v1468
    %v1474 = vadd.f32 %v1390, %v1470
    %s1475 = sld [smem:[#allocation6 + $0x65]]
    %v1476 = vstv %s1475
    %v1477 = vmul.f32 %v1311, %v1476
    %v1478 = vmul.f32 %v1312, %v1476
    %1481 = vrot.lane.b32.xlu0 %v1477, 126
    %v1482 = vpop.permute.xlu0 %1481
    %1483 = vrot.lane.b32.xlu0 %v1478, 126
    %v1484 = vpop.permute.xlu0 %1483
    %v1487 = vadd.f32 %v1403, %v1482
    %v1488 = vadd.f32 %v1404, %v1484
    %s1489 = sld [smem:[#allocation6 + $0x80]]
    %v1490 = vstv %s1489
    %v1491 = vmul.f32 %v1311, %v1490
    %v1492 = vmul.f32 %v1312, %v1490
    %1495 = vrot.lane.b32.xlu0 %v1491, 126
    %v1496 = vpop.permute.xlu0 %1495
    %1497 = vrot.lane.b32.xlu0 %v1492, 126
    %v1498 = vpop.permute.xlu0 %1497
    %v1501 = vadd.f32 %v1417, %v1496
    %v1502 = vadd.f32 %v1418, %v1498
    %s1503 = sld [smem:[#allocation6 + $0x9b]]
    %v1504 = vstv %s1503
    %v1505 = vmul.f32 %v1311, %v1504
    %v1506 = vmul.f32 %v1312, %v1504
    %1509 = vrot.lane.b32.xlu0 %v1505, 126
    %v1510 = vpop.permute.xlu0 %1509
    %1511 = vrot.lane.b32.xlu0 %v1506, 126
    %v1512 = vpop.permute.xlu0 %1511
    %v1515 = vadd.f32 %v1431, %v1510
    %v1516 = vadd.f32 %v1432, %v1512
    %v1517 = vld [vmem:[%s1310 + $0x1] sm:$0xff]
    %v1518 = vld [vmem:[%s1310 + $0x9] sm:$0x3f]
    %s1519 = sld [smem:[#allocation6 + $0x15]]
    %v1520 = vstv %s1519
    %v1521 = vmul.f32 %v1517, %v1520
    %v1522 = vmul.f32 %v1518, %v1520
    %v1523 = vadd.f32 %v1445, %v1521
    %v1524 = vadd.f32 %v1446, %v1522
    %s1525 = sld [smem:[#allocation6 + $0x30]]
    %v1526 = vstv %s1525
    %v1527 = vmul.f32 %v1517, %v1526
    %v1528 = vmul.f32 %v1518, %v1526
    %v1529 = vadd.f32 %v1459, %v1527
    %v1530 = vadd.f32 %v1460, %v1528
    %s1531 = sld [smem:[#allocation6 + $0x4b]]
    %v1532 = vstv %s1531
    %v1533 = vmul.f32 %v1517, %v1532
    %v1534 = vmul.f32 %v1518, %v1532
    %v1535 = vadd.f32 %v1473, %v1533
    %v1536 = vadd.f32 %v1474, %v1534
    %s1537 = sld [smem:[#allocation6 + $0x66]]
    %v1538 = vstv %s1537
    %v1539 = vmul.f32 %v1517, %v1538
    %v1540 = vmul.f32 %v1518, %v1538
    %v1541 = vadd.f32 %v1487, %v1539
    %v1542 = vadd.f32 %v1488, %v1540
    %s1543 = sld [smem:[#allocation6 + $0x81]]
    %v1544 = vstv %s1543
    %v1545 = vmul.f32 %v1517, %v1544
    %v1546 = vmul.f32 %v1518, %v1544
    %v1547 = vadd.f32 %v1501, %v1545
    %v1548 = vadd.f32 %v1502, %v1546
    %s1549 = sld [smem:[#allocation6 + $0x9c]]
    %v1550 = vstv %s1549
    %v1551 = vmul.f32 %v1517, %v1550
    %v1552 = vmul.f32 %v1518, %v1550
    %v1553 = vadd.f32 %v1515, %v1551
    %v1554 = vadd.f32 %v1516, %v1552
    %s1555 = sld [smem:[#allocation6 + $0x16]]
    %v1556 = vstv %s1555
    %v1557 = vmul.f32 %v1517, %v1556
    %v1558 = vmul.f32 %v1518, %v1556
    %1561 = vrot.lane.b32.xlu0 %v1557, 127
    %v1562 = vpop.permute.xlu0 %1561
    %1563 = vrot.lane.b32.xlu0 %v1558, 127
    %v1564 = vpop.permute.xlu0 %1563
    %v1567 = vadd.f32 %v1523, %v1562
    %v1568 = vadd.f32 %v1524, %v1564
    %s1569 = sld [smem:[#allocation6 + $0x31]]
    %v1570 = vstv %s1569
    %v1571 = vmul.f32 %v1517, %v1570
    %v1572 = vmul.f32 %v1518, %v1570
    %1575 = vrot.lane.b32.xlu0 %v1571, 127
    %v1576 = vpop.permute.xlu0 %1575
    %1577 = vrot.lane.b32.xlu0 %v1572, 127
    %v1578 = vpop.permute.xlu0 %1577
    %v1581 = vadd.f32 %v1529, %v1576
    %v1582 = vadd.f32 %v1530, %v1578
    %s1583 = sld [smem:[#allocation6 + $0x4c]]
    %v1584 = vstv %s1583
    %v1585 = vmul.f32 %v1517, %v1584
    %v1586 = vmul.f32 %v1518, %v1584
    %1589 = vrot.lane.b32.xlu0 %v1585, 127
    %v1590 = vpop.permute.xlu0 %1589
    %1591 = vrot.lane.b32.xlu0 %v1586, 127
    %v1592 = vpop.permute.xlu0 %1591
    %v1595 = vadd.f32 %v1535, %v1590
    %v1596 = vadd.f32 %v1536, %v1592
    %s1597 = sld [smem:[#allocation6 + $0x67]]
    %v1598 = vstv %s1597
    %v1599 = vmul.f32 %v1517, %v1598
    %v1600 = vmul.f32 %v1518, %v1598
    %1603 = vrot.lane.b32.xlu0 %v1599, 127
    %v1604 = vpop.permute.xlu0 %1603
    %1605 = vrot.lane.b32.xlu0 %v1600, 127
    %v1606 = vpop.permute.xlu0 %1605
    %v1609 = vadd.f32 %v1541, %v1604
    %v1610 = vadd.f32 %v1542, %v1606
    %s1611 = sld [smem:[#allocation6 + $0x82]]
    %v1612 = vstv %s1611
    %v1613 = vmul.f32 %v1517, %v1612
    %v1614 = vmul.f32 %v1518, %v1612
    %1617 = vrot.lane.b32.xlu0 %v1613, 127
    %v1618 = vpop.permute.xlu0 %1617
    %1619 = vrot.lane.b32.xlu0 %v1614, 127
    %v1620 = vpop.permute.xlu0 %1619
    %v1623 = vadd.f32 %v1547, %v1618
    %v1624 = vadd.f32 %v1548, %v1620
    %s1625 = sld [smem:[#allocation6 + $0x9d]]
    %v1626 = vstv %s1625
    %v1627 = vmul.f32 %v1517, %v1626
    %v1628 = vmul.f32 %v1518, %v1626
    %1631 = vrot.lane.b32.xlu0 %v1627, 127
    %v1632 = vpop.permute.xlu0 %1631
    %1633 = vrot.lane.b32.xlu0 %v1628, 127
    %v1634 = vpop.permute.xlu0 %1633
    %v1637 = vadd.f32 %v1553, %v1632
    %v1638 = vadd.f32 %v1554, %v1634
    %s1639 = sld [smem:[#allocation6 + $0x17]]
    %v1640 = vstv %s1639
    %v1641 = vmul.f32 %v1517, %v1640
    %v1642 = vmul.f32 %v1518, %v1640
    %1645 = vrot.lane.b32.xlu0 %v1641, 126
    %v1646 = vpop.permute.xlu0 %1645
    %1647 = vrot.lane.b32.xlu0 %v1642, 126
    %v1648 = vpop.permute.xlu0 %1647
    %v1651 = vadd.f32 %v1567, %v1646
    %v1652 = vadd.f32 %v1568, %v1648
    %s1653 = sld [smem:[#allocation6 + $0x32]]
    %v1654 = vstv %s1653
    %v1655 = vmul.f32 %v1517, %v1654
    %v1656 = vmul.f32 %v1518, %v1654
    %1659 = vrot.lane.b32.xlu0 %v1655, 126
    %v1660 = vpop.permute.xlu0 %1659
    %1661 = vrot.lane.b32.xlu0 %v1656, 126
    %v1662 = vpop.permute.xlu0 %1661
    %v1665 = vadd.f32 %v1581, %v1660
    %v1666 = vadd.f32 %v1582, %v1662
    %s1667 = sld [smem:[#allocation6 + $0x4d]]
    %v1668 = vstv %s1667
    %v1669 = vmul.f32 %v1517, %v1668
    %v1670 = vmul.f32 %v1518, %v1668
    %1673 = vrot.lane.b32.xlu0 %v1669, 126
    %v1674 = vpop.permute.xlu0 %1673
    %1675 = vrot.lane.b32.xlu0 %v1670, 126
    %v1676 = vpop.permute.xlu0 %1675
    %v1679 = vadd.f32 %v1595, %v1674
    %v1680 = vadd.f32 %v1596, %v1676
    %s1681 = sld [smem:[#allocation6 + $0x68]]
    %v1682 = vstv %s1681
    %v1683 = vmul.f32 %v1517, %v1682
    %v1684 = vmul.f32 %v1518, %v1682
    %1687 = vrot.lane.b32.xlu0 %v1683, 126
    %v1688 = vpop.permute.xlu0 %1687
    %1689 = vrot.lane.b32.xlu0 %v1684, 126
    %v1690 = vpop.permute.xlu0 %1689
    %v1693 = vadd.f32 %v1609, %v1688
    %v1694 = vadd.f32 %v1610, %v1690
    %s1695 = sld [smem:[#allocation6 + $0x83]]
    %v1696 = vstv %s1695
    %v1697 = vmul.f32 %v1517, %v1696
    %v1698 = vmul.f32 %v1518, %v1696
    %1701 = vrot.lane.b32.xlu0 %v1697, 126
    %v1702 = vpop.permute.xlu0 %1701
    %1703 = vrot.lane.b32.xlu0 %v1698, 126
    %v1704 = vpop.permute.xlu0 %1703
    %v1707 = vadd.f32 %v1623, %v1702
    %v1708 = vadd.f32 %v1624, %v1704
    %s1709 = sld [smem:[#allocation6 + $0x9e]]
    %v1710 = vstv %s1709
    %v1711 = vmul.f32 %v1517, %v1710
    %v1712 = vmul.f32 %v1518, %v1710
    %1715 = vrot.lane.b32.xlu0 %v1711, 126
    %v1716 = vpop.permute.xlu0 %1715
    %1717 = vrot.lane.b32.xlu0 %v1712, 126
    %v1718 = vpop.permute.xlu0 %1717
    %v1721 = vadd.f32 %v1637, %v1716
    %v1722 = vadd.f32 %v1638, %v1718
    %v1723 = vld [vmem:[%s1310 + $0x2] sm:$0xff]
    %v1724 = vld [vmem:[%s1310 + $0xa] sm:$0x3f]
    %s1725 = sld [smem:[#allocation6 + $0x18]]
    %v1726 = vstv %s1725
    %v1727 = vmul.f32 %v1723, %v1726
    %v1728 = vmul.f32 %v1724, %v1726
    %v1729 = vadd.f32 %v1651, %v1727
    %v1730 = vadd.f32 %v1652, %v1728
    %s1731 = sld [smem:[#allocation6 + $0x33]]
    %v1732 = vstv %s1731
    %v1733 = vmul.f32 %v1723, %v1732
    %v1734 = vmul.f32 %v1724, %v1732
    %v1735 = vadd.f32 %v1665, %v1733
    %v1736 = vadd.f32 %v1666, %v1734
    %s1737 = sld [smem:[#allocation6 + $0x4e]]
    %v1738 = vstv %s1737
    %v1739 = vmul.f32 %v1723, %v1738
    %v1740 = vmul.f32 %v1724, %v1738
    %v1741 = vadd.f32 %v1679, %v1739
    %v1742 = vadd.f32 %v1680, %v1740
    %s1743 = sld [smem:[#allocation6 + $0x69]]
    %v1744 = vstv %s1743
    %v1745 = vmul.f32 %v1723, %v1744
    %v1746 = vmul.f32 %v1724, %v1744
    %v1747 = vadd.f32 %v1693, %v1745
    %v1748 = vadd.f32 %v1694, %v1746
    %s1749 = sld [smem:[#allocation6 + $0x84]]
    %v1750 = vstv %s1749
    %v1751 = vmul.f32 %v1723, %v1750
    %v1752 = vmul.f32 %v1724, %v1750
    %v1753 = vadd.f32 %v1707, %v1751
    %v1754 = vadd.f32 %v1708, %v1752
    %s1755 = sld [smem:[#allocation6 + $0x9f]]
    %v1756 = vstv %s1755
    %v1757 = vmul.f32 %v1723, %v1756
    %v1758 = vmul.f32 %v1724, %v1756
    %v1759 = vadd.f32 %v1721, %v1757
    %v1760 = vadd.f32 %v1722, %v1758
    %s1761 = sld [smem:[#allocation6 + $0x19]]
    %v1762 = vstv %s1761
    %v1763 = vmul.f32 %v1723, %v1762
    %v1764 = vmul.f32 %v1724, %v1762
    %1767 = vrot.lane.b32.xlu0 %v1763, 127
    %v1768 = vpop.permute.xlu0 %1767
    %1769 = vrot.lane.b32.xlu0 %v1764, 127
    %v1770 = vpop.permute.xlu0 %1769
    %v1773 = vadd.f32 %v1729, %v1768
    %v1774 = vadd.f32 %v1730, %v1770
    %s1775 = sld [smem:[#allocation6 + $0x34]]
    %v1776 = vstv %s1775
    %v1777 = vmul.f32 %v1723, %v1776
    %v1778 = vmul.f32 %v1724, %v1776
    %1781 = vrot.lane.b32.xlu0 %v1777, 127
    %v1782 = vpop.permute.xlu0 %1781
    %1783 = vrot.lane.b32.xlu0 %v1778, 127
    %v1784 = vpop.permute.xlu0 %1783
    %v1787 = vadd.f32 %v1735, %v1782
    %v1788 = vadd.f32 %v1736, %v1784
    %s1789 = sld [smem:[#allocation6 + $0x4f]]
    %v1790 = vstv %s1789
    %v1791 = vmul.f32 %v1723, %v1790
    %v1792 = vmul.f32 %v1724, %v1790
    %1795 = vrot.lane.b32.xlu0 %v1791, 127
    %v1796 = vpop.permute.xlu0 %1795
    %1797 = vrot.lane.b32.xlu0 %v1792, 127
    %v1798 = vpop.permute.xlu0 %1797
    %v1801 = vadd.f32 %v1741, %v1796
    %v1802 = vadd.f32 %v1742, %v1798
    %s1803 = sld [smem:[#allocation6 + $0x6a]]
    %v1804 = vstv %s1803
    %v1805 = vmul.f32 %v1723, %v1804
    %v1806 = vmul.f32 %v1724, %v1804
    %1809 = vrot.lane.b32.xlu0 %v1805, 127
    %v1810 = vpop.permute.xlu0 %1809
    %1811 = vrot.lane.b32.xlu0 %v1806, 127
    %v1812 = vpop.permute.xlu0 %1811
    %v1815 = vadd.f32 %v1747, %v1810
    %v1816 = vadd.f32 %v1748, %v1812
    %s1817 = sld [smem:[#allocation6 + $0x85]]
    %v1818 = vstv %s1817
    %v1819 = vmul.f32 %v1723, %v1818
    %v1820 = vmul.f32 %v1724, %v1818
    %1823 = vrot.lane.b32.xlu0 %v1819, 127
    %v1824 = vpop.permute.xlu0 %1823
    %1825 = vrot.lane.b32.xlu0 %v1820, 127
    %v1826 = vpop.permute.xlu0 %1825
    %v1829 = vadd.f32 %v1753, %v1824
    %v1830 = vadd.f32 %v1754, %v1826
    %s1831 = sld [smem:[#allocation6 + $0xa0]]
    %v1832 = vstv %s1831
    %v1833 = vmul.f32 %v1723, %v1832
    %v1834 = vmul.f32 %v1724, %v1832
    %1837 = vrot.lane.b32.xlu0 %v1833, 127
    %v1838 = vpop.permute.xlu0 %1837
    %1839 = vrot.lane.b32.xlu0 %v1834, 127
    %v1840 = vpop.permute.xlu0 %1839
    %v1843 = vadd.f32 %v1759, %v1838
    %v1844 = vadd.f32 %v1760, %v1840
    %s1845 = sld [smem:[#allocation6 + $0x1a]]
    %v1846 = vstv %s1845
    %v1847 = vmul.f32 %v1723, %v1846
    %v1848 = vmul.f32 %v1724, %v1846
    %1851 = vrot.lane.b32.xlu0 %v1847, 126
    %v1852 = vpop.permute.xlu0 %1851
    %1853 = vrot.lane.b32.xlu0 %v1848, 126
    %v1854 = vpop.permute.xlu0 %1853
    %v1857 = vadd.f32 %v1773, %v1852
    %v1858 = vadd.f32 %v1774, %v1854
    %s1859 = sld [smem:[#allocation6 + $0x35]]
    %v1860 = vstv %s1859
    %v1861 = vmul.f32 %v1723, %v1860
    %v1862 = vmul.f32 %v1724, %v1860
    %1865 = vrot.lane.b32.xlu0 %v1861, 126
    %v1866 = vpop.permute.xlu0 %1865
    %1867 = vrot.lane.b32.xlu0 %v1862, 126
    %v1868 = vpop.permute.xlu0 %1867
    %v1871 = vadd.f32 %v1787, %v1866
    %v1872 = vadd.f32 %v1788, %v1868
    %s1873 = sld [smem:[#allocation6 + $0x50]]
    %v1874 = vstv %s1873
    %v1875 = vmul.f32 %v1723, %v1874
    %v1876 = vmul.f32 %v1724, %v1874
    %1879 = vrot.lane.b32.xlu0 %v1875, 126
    %v1880 = vpop.permute.xlu0 %1879
    %1881 = vrot.lane.b32.xlu0 %v1876, 126
    %v1882 = vpop.permute.xlu0 %1881
    %v1885 = vadd.f32 %v1801, %v1880
    %v1886 = vadd.f32 %v1802, %v1882
    %s1887 = sld [smem:[#allocation6 + $0x6b]]
    %v1888 = vstv %s1887
    %v1889 = vmul.f32 %v1723, %v1888
    %v1890 = vmul.f32 %v1724, %v1888
    %1893 = vrot.lane.b32.xlu0 %v1889, 126
    %v1894 = vpop.permute.xlu0 %1893
    %1895 = vrot.lane.b32.xlu0 %v1890, 126
    %v1896 = vpop.permute.xlu0 %1895
    %v1899 = vadd.f32 %v1815, %v1894
    %v1900 = vadd.f32 %v1816, %v1896
    %s1901 = sld [smem:[#allocation6 + $0x86]]
    %v1902 = vstv %s1901
    %v1903 = vmul.f32 %v1723, %v1902
    %v1904 = vmul.f32 %v1724, %v1902
    %1907 = vrot.lane.b32.xlu0 %v1903, 126
    %v1908 = vpop.permute.xlu0 %1907
    %1909 = vrot.lane.b32.xlu0 %v1904, 126
    %v1910 = vpop.permute.xlu0 %1909
    %v1913 = vadd.f32 %v1829, %v1908
    %v1914 = vadd.f32 %v1830, %v1910
    %s1915 = sld [smem:[#allocation6 + $0xa1]]
    %v1916 = vstv %s1915
    %v1917 = vmul.f32 %v1723, %v1916
    %v1918 = vmul.f32 %v1724, %v1916
    %1921 = vrot.lane.b32.xlu0 %v1917, 126
    %v1922 = vpop.permute.xlu0 %1921
    %1923 = vrot.lane.b32.xlu0 %v1918, 126
    %v1924 = vpop.permute.xlu0 %1923
    %v1927 = vadd.f32 %v1843, %v1922
    %v1928 = vadd.f32 %v1844, %v1924
    %vm1929 = vcmask 113664
    %1930 = vst.msk [vmem:[%s3] sm:$0xff] %vm1929, %v1857
    %vm1931 = vcmask 111616
    %1932 = vst.msk [vmem:[%s3 + $0x8] sm:$0x3f] %vm1931, %v1858
    %s1933 = scalar_lea.vmem %s3, 16
    %1934 = vst.msk [vmem:[%s1933] sm:$0xff] %vm1929, %v1871
    %1935 = vst.msk [vmem:[%s1933 + $0x8] sm:$0x3f] %vm1931, %v1872
    %s1936 = scalar_lea.vmem %s3, 32
    %1937 = vst.msk [vmem:[%s1936] sm:$0xff] %vm1929, %v1885
    %1938 = vst.msk [vmem:[%s1936 + $0x8] sm:$0x3f] %vm1931, %v1886
    %s1939 = scalar_lea.vmem %s3, 48
    %1940 = vst.msk [vmem:[%s1939] sm:$0xff] %vm1929, %v1899
    %1941 = vst.msk [vmem:[%s1939 + $0x8] sm:$0x3f] %vm1931, %v1900
    %s1942 = scalar_lea.vmem %s3, 64
    %1943 = vst.msk [vmem:[%s1942] sm:$0xff] %vm1929, %v1913
    %1944 = vst.msk [vmem:[%s1942 + $0x8] sm:$0x3f] %vm1931, %v1914
    %s1945 = scalar_lea.vmem %s3, 80
    %1946 = vst.msk [vmem:[%s1945] sm:$0xff] %vm1929, %v1927
    %1947 = vst.msk [vmem:[%s1945 + $0x8] sm:$0x3f] %vm1931, %v1928
    %s1948 = sld [smem:[#allocation7]]
    %v1949 = vstv %s1948
    %v1950 = vadd.f32 %v1949, 0.0
    %s1951 = sld [smem:[#allocation7 + $0x1]]
    %v1952 = vstv %s1951
    %v1953 = vadd.f32 %v1952, 0.0
    %s1954 = sld [smem:[#allocation7 + $0x2]]
    %v1955 = vstv %s1954
    %v1956 = vadd.f32 %v1955, 0.0
    %s1957 = sld [smem:[#allocation7 + $0x3]]
    %v1958 = vstv %s1957
    %v1959 = vadd.f32 %v1958, 0.0
    %s1960 = sld [smem:[#allocation7 + $0x4]]
    %v1961 = vstv %s1960
    %v1962 = vadd.f32 %v1961, 0.0
    %s1963 = sld [smem:[#allocation7 + $0x5]]
    %v1964 = vstv %s1963
    %v1965 = vadd.f32 %v1964, 0.0
    %s1966 = scalar_lea.vmem [#allocation2], 48
    %v1967 = vld [vmem:[%s1966] sm:$0xff]
    %v1968 = vld [vmem:[%s1966 + $0x8] sm:$0x3f]
    %s1969 = sld [smem:[#allocation6]]
    %v1970 = vstv %s1969
    %v1971 = vmul.f32 %v1967, %v1970
    %v1972 = vmul.f32 %v1968, %v1970
    %v1973 = vadd.f32 %v1950, %v1971
    %v1974 = vadd.f32 %v1950, %v1972
    %s1975 = sld [smem:[#allocation6 + $0x1b]]
    %v1976 = vstv %s1975
    %v1977 = vmul.f32 %v1967, %v1976
    %v1978 = vmul.f32 %v1968, %v1976
    %v1979 = vadd.f32 %v1953, %v1977
    %v1980 = vadd.f32 %v1953, %v1978
    %s1981 = sld [smem:[#allocation6 + $0x36]]
    %v1982 = vstv %s1981
    %v1983 = vmul.f32 %v1967, %v1982
    %v1984 = vmul.f32 %v1968, %v1982
    %v1985 = vadd.f32 %v1956, %v1983
    %v1986 = vadd.f32 %v1956, %v1984
    %s1987 = sld [smem:[#allocation6 + $0x51]]
    %v1988 = vstv %s1987
    %v1989 = vmul.f32 %v1967, %v1988
    %v1990 = vmul.f32 %v1968, %v1988
    %v1991 = vadd.f32 %v1959, %v1989
    %v1992 = vadd.f32 %v1959, %v1990
    %s1993 = sld [smem:[#allocation6 + $0x6c]]
    %v1994 = vstv %s1993
    %v1995 = vmul.f32 %v1967, %v1994
    %v1996 = vmul.f32 %v1968, %v1994
    %v1997 = vadd.f32 %v1962, %v1995
    %v1998 = vadd.f32 %v1962, %v1996
    %s1999 = sld [smem:[#allocation6 + $0x87]]
    %v2000 = vstv %s1999
    %v2001 = vmul.f32 %v1967, %v2000
    %v2002 = vmul.f32 %v1968, %v2000
    %v2003 = vadd.f32 %v1965, %v2001
    %v2004 = vadd.f32 %v1965, %v2002
    %s2005 = sld [smem:[#allocation6 + $0x1]]
    %v2006 = vstv %s2005
    %v2007 = vmul.f32 %v1967, %v2006
    %v2008 = vmul.f32 %v1968, %v2006
    %2011 = vrot.lane.b32.xlu0 %v2007, 127
    %v2012 = vpop.permute.xlu0 %2011
    %2013 = vrot.lane.b32.xlu0 %v2008, 127
    %v2014 = vpop.permute.xlu0 %2013
    %v2017 = vadd.f32 %v1973, %v2012
    %v2018 = vadd.f32 %v1974, %v2014
    %s2019 = sld [smem:[#allocation6 + $0x1c]]
    %v2020 = vstv %s2019
    %v2021 = vmul.f32 %v1967, %v2020
    %v2022 = vmul.f32 %v1968, %v2020
    %2025 = vrot.lane.b32.xlu0 %v2021, 127
    %v2026 = vpop.permute.xlu0 %2025
    %2027 = vrot.lane.b32.xlu0 %v2022, 127
    %v2028 = vpop.permute.xlu0 %2027
    %v2031 = vadd.f32 %v1979, %v2026
    %v2032 = vadd.f32 %v1980, %v2028
    %s2033 = sld [smem:[#allocation6 + $0x37]]
    %v2034 = vstv %s2033
    %v2035 = vmul.f32 %v1967, %v2034
    %v2036 = vmul.f32 %v1968, %v2034
    %2039 = vrot.lane.b32.xlu0 %v2035, 127
    %v2040 = vpop.permute.xlu0 %2039
    %2041 = vrot.lane.b32.xlu0 %v2036, 127
    %v2042 = vpop.permute.xlu0 %2041
    %v2045 = vadd.f32 %v1985, %v2040
    %v2046 = vadd.f32 %v1986, %v2042
    %s2047 = sld [smem:[#allocation6 + $0x52]]
    %v2048 = vstv %s2047
    %v2049 = vmul.f32 %v1967, %v2048
    %v2050 = vmul.f32 %v1968, %v2048
    %2053 = vrot.lane.b32.xlu0 %v2049, 127
    %v2054 = vpop.permute.xlu0 %2053
    %2055 = vrot.lane.b32.xlu0 %v2050, 127
    %v2056 = vpop.permute.xlu0 %2055
    %v2059 = vadd.f32 %v1991, %v2054
    %v2060 = vadd.f32 %v1992, %v2056
    %s2061 = sld [smem:[#allocation6 + $0x6d]]
    %v2062 = vstv %s2061
    %v2063 = vmul.f32 %v1967, %v2062
    %v2064 = vmul.f32 %v1968, %v2062
    %2067 = vrot.lane.b32.xlu0 %v2063, 127
    %v2068 = vpop.permute.xlu0 %2067
    %2069 = vrot.lane.b32.xlu0 %v2064, 127
    %v2070 = vpop.permute.xlu0 %2069
    %v2073 = vadd.f32 %v1997, %v2068
    %v2074 = vadd.f32 %v1998, %v2070
    %s2075 = sld [smem:[#allocation6 + $0x88]]
    %v2076 = vstv %s2075
    %v2077 = vmul.f32 %v1967, %v2076
    %v2078 = vmul.f32 %v1968, %v2076
    %2081 = vrot.lane.b32.xlu0 %v2077, 127
    %v2082 = vpop.permute.xlu0 %2081
    %2083 = vrot.lane.b32.xlu0 %v2078, 127
    %v2084 = vpop.permute.xlu0 %2083
    %v2087 = vadd.f32 %v2003, %v2082
    %v2088 = vadd.f32 %v2004, %v2084
    %s2089 = sld [smem:[#allocation6 + $0x2]]
    %v2090 = vstv %s2089
    %v2091 = vmul.f32 %v1967, %v2090
    %v2092 = vmul.f32 %v1968, %v2090
    %2095 = vrot.lane.b32.xlu0 %v2091, 126
    %v2096 = vpop.permute.xlu0 %2095
    %2097 = vrot.lane.b32.xlu0 %v2092, 126
    %v2098 = vpop.permute.xlu0 %2097
    %v2101 = vadd.f32 %v2017, %v2096
    %v2102 = vadd.f32 %v2018, %v2098
    %s2103 = sld [smem:[#allocation6 + $0x1d]]
    %v2104 = vstv %s2103
    %v2105 = vmul.f32 %v1967, %v2104
    %v2106 = vmul.f32 %v1968, %v2104
    %2109 = vrot.lane.b32.xlu0 %v2105, 126
    %v2110 = vpop.permute.xlu0 %2109
    %2111 = vrot.lane.b32.xlu0 %v2106, 126
    %v2112 = vpop.permute.xlu0 %2111
    %v2115 = vadd.f32 %v2031, %v2110
    %v2116 = vadd.f32 %v2032, %v2112
    %s2117 = sld [smem:[#allocation6 + $0x38]]
    %v2118 = vstv %s2117
    %v2119 = vmul.f32 %v1967, %v2118
    %v2120 = vmul.f32 %v1968, %v2118
    %2123 = vrot.lane.b32.xlu0 %v2119, 126
    %v2124 = vpop.permute.xlu0 %2123
    %2125 = vrot.lane.b32.xlu0 %v2120, 126
    %v2126 = vpop.permute.xlu0 %2125
    %v2129 = vadd.f32 %v2045, %v2124
    %v2130 = vadd.f32 %v2046, %v2126
    %s2131 = sld [smem:[#allocation6 + $0x53]]
    %v2132 = vstv %s2131
    %v2133 = vmul.f32 %v1967, %v2132
    %v2134 = vmul.f32 %v1968, %v2132
    %2137 = vrot.lane.b32.xlu0 %v2133, 126
    %v2138 = vpop.permute.xlu0 %2137
    %2139 = vrot.lane.b32.xlu0 %v2134, 126
    %v2140 = vpop.permute.xlu0 %2139
    %v2143 = vadd.f32 %v2059, %v2138
    %v2144 = vadd.f32 %v2060, %v2140
    %s2145 = sld [smem:[#allocation6 + $0x6e]]
    %v2146 = vstv %s2145
    %v2147 = vmul.f32 %v1967, %v2146
    %v2148 = vmul.f32 %v1968, %v2146
    %2151 = vrot.lane.b32.xlu0 %v2147, 126
    %v2152 = vpop.permute.xlu0 %2151
    %2153 = vrot.lane.b32.xlu0 %v2148, 126
    %v2154 = vpop.permute.xlu0 %2153
    %v2157 = vadd.f32 %v2073, %v2152
    %v2158 = vadd.f32 %v2074, %v2154
    %s2159 = sld [smem:[#allocation6 + $0x89]]
    %v2160 = vstv %s2159
    %v2161 = vmul.f32 %v1967, %v2160
    %v2162 = vmul.f32 %v1968, %v2160
    %2165 = vrot.lane.b32.xlu0 %v2161, 126
    %v2166 = vpop.permute.xlu0 %2165
    %2167 = vrot.lane.b32.xlu0 %v2162, 126
    %v2168 = vpop.permute.xlu0 %2167
    %v2171 = vadd.f32 %v2087, %v2166
    %v2172 = vadd.f32 %v2088, %v2168
    %v2173 = vld [vmem:[%s1966 + $0x1] sm:$0xff]
    %v2174 = vld [vmem:[%s1966 + $0x9] sm:$0x3f]
    %s2175 = sld [smem:[#allocation6 + $0x3]]
    %v2176 = vstv %s2175
    %v2177 = vmul.f32 %v2173, %v2176
    %v2178 = vmul.f32 %v2174, %v2176
    %v2179 = vadd.f32 %v2101, %v2177
    %v2180 = vadd.f32 %v2102, %v2178
    %s2181 = sld [smem:[#allocation6 + $0x1e]]
    %v2182 = vstv %s2181
    %v2183 = vmul.f32 %v2173, %v2182
    %v2184 = vmul.f32 %v2174, %v2182
    %v2185 = vadd.f32 %v2115, %v2183
    %v2186 = vadd.f32 %v2116, %v2184
    %s2187 = sld [smem:[#allocation6 + $0x39]]
    %v2188 = vstv %s2187
    %v2189 = vmul.f32 %v2173, %v2188
    %v2190 = vmul.f32 %v2174, %v2188
    %v2191 = vadd.f32 %v2129, %v2189
    %v2192 = vadd.f32 %v2130, %v2190
    %s2193 = sld [smem:[#allocation6 + $0x54]]
    %v2194 = vstv %s2193
    %v2195 = vmul.f32 %v2173, %v2194
    %v2196 = vmul.f32 %v2174, %v2194
    %v2197 = vadd.f32 %v2143, %v2195
    %v2198 = vadd.f32 %v2144, %v2196
    %s2199 = sld [smem:[#allocation6 + $0x6f]]
    %v2200 = vstv %s2199
    %v2201 = vmul.f32 %v2173, %v2200
    %v2202 = vmul.f32 %v2174, %v2200
    %v2203 = vadd.f32 %v2157, %v2201
    %v2204 = vadd.f32 %v2158, %v2202
    %s2205 = sld [smem:[#allocation6 + $0x8a]]
    %v2206 = vstv %s2205
    %v2207 = vmul.f32 %v2173, %v2206
    %v2208 = vmul.f32 %v2174, %v2206
    %v2209 = vadd.f32 %v2171, %v2207
    %v2210 = vadd.f32 %v2172, %v2208
    %s2211 = sld [smem:[#allocation6 + $0x4]]
    %v2212 = vstv %s2211
    %v2213 = vmul.f32 %v2173, %v2212
    %v2214 = vmul.f32 %v2174, %v2212
    %2217 = vrot.lane.b32.xlu0 %v2213, 127
    %v2218 = vpop.permute.xlu0 %2217
    %2219 = vrot.lane.b32.xlu0 %v2214, 127
    %v2220 = vpop.permute.xlu0 %2219
    %v2223 = vadd.f32 %v2179, %v2218
    %v2224 = vadd.f32 %v2180, %v2220
    %s2225 = sld [smem:[#allocation6 + $0x1f]]
    %v2226 = vstv %s2225
    %v2227 = vmul.f32 %v2173, %v2226
    %v2228 = vmul.f32 %v2174, %v2226
    %2231 = vrot.lane.b32.xlu0 %v2227, 127
    %v2232 = vpop.permute.xlu0 %2231
    %2233 = vrot.lane.b32.xlu0 %v2228, 127
    %v2234 = vpop.permute.xlu0 %2233
    %v2237 = vadd.f32 %v2185, %v2232
    %v2238 = vadd.f32 %v2186, %v2234
    %s2239 = sld [smem:[#allocation6 + $0x3a]]
    %v2240 = vstv %s2239
    %v2241 = vmul.f32 %v2173, %v2240
    %v2242 = vmul.f32 %v2174, %v2240
    %2245 = vrot.lane.b32.xlu0 %v2241, 127
    %v2246 = vpop.permute.xlu0 %2245
    %2247 = vrot.lane.b32.xlu0 %v2242, 127
    %v2248 = vpop.permute.xlu0 %2247
    %v2251 = vadd.f32 %v2191, %v2246
    %v2252 = vadd.f32 %v2192, %v2248
    %s2253 = sld [smem:[#allocation6 + $0x55]]
    %v2254 = vstv %s2253
    %v2255 = vmul.f32 %v2173, %v2254
    %v2256 = vmul.f32 %v2174, %v2254
    %2259 = vrot.lane.b32.xlu0 %v2255, 127
    %v2260 = vpop.permute.xlu0 %2259
    %2261 = vrot.lane.b32.xlu0 %v2256, 127
    %v2262 = vpop.permute.xlu0 %2261
    %v2265 = vadd.f32 %v2197, %v2260
    %v2266 = vadd.f32 %v2198, %v2262
    %s2267 = sld [smem:[#allocation6 + $0x70]]
    %v2268 = vstv %s2267
    %v2269 = vmul.f32 %v2173, %v2268
    %v2270 = vmul.f32 %v2174, %v2268
    %2273 = vrot.lane.b32.xlu0 %v2269, 127
    %v2274 = vpop.permute.xlu0 %2273
    %2275 = vrot.lane.b32.xlu0 %v2270, 127
    %v2276 = vpop.permute.xlu0 %2275
    %v2279 = vadd.f32 %v2203, %v2274
    %v2280 = vadd.f32 %v2204, %v2276
    %s2281 = sld [smem:[#allocation6 + $0x8b]]
    %v2282 = vstv %s2281
    %v2283 = vmul.f32 %v2173, %v2282
    %v2284 = vmul.f32 %v2174, %v2282
    %2287 = vrot.lane.b32.xlu0 %v2283, 127
    %v2288 = vpop.permute.xlu0 %2287
    %2289 = vrot.lane.b32.xlu0 %v2284, 127
    %v2290 = vpop.permute.xlu0 %2289
    %v2293 = vadd.f32 %v2209, %v2288
    %v2294 = vadd.f32 %v2210, %v2290
    %s2295 = sld [smem:[#allocation6 + $0x5]]
    %v2296 = vstv %s2295
    %v2297 = vmul.f32 %v2173, %v2296
    %v2298 = vmul.f32 %v2174, %v2296
    %2301 = vrot.lane.b32.xlu0 %v2297, 126
    %v2302 = vpop.permute.xlu0 %2301
    %2303 = vrot.lane.b32.xlu0 %v2298, 126
    %v2304 = vpop.permute.xlu0 %2303
    %v2307 = vadd.f32 %v2223, %v2302
    %v2308 = vadd.f32 %v2224, %v2304
    %s2309 = sld [smem:[#allocation6 + $0x20]]
    %v2310 = vstv %s2309
    %v2311 = vmul.f32 %v2173, %v2310
    %v2312 = vmul.f32 %v2174, %v2310
    %2315 = vrot.lane.b32.xlu0 %v2311, 126
    %v2316 = vpop.permute.xlu0 %2315
    %2317 = vrot.lane.b32.xlu0 %v2312, 126
    %v2318 = vpop.permute.xlu0 %2317
    %v2321 = vadd.f32 %v2237, %v2316
    %v2322 = vadd.f32 %v2238, %v2318
    %s2323 = sld [smem:[#allocation6 + $0x3b]]
    %v2324 = vstv %s2323
    %v2325 = vmul.f32 %v2173, %v2324
    %v2326 = vmul.f32 %v2174, %v2324
    %2329 = vrot.lane.b32.xlu0 %v2325, 126
    %v2330 = vpop.permute.xlu0 %2329
    %2331 = vrot.lane.b32.xlu0 %v2326, 126
    %v2332 = vpop.permute.xlu0 %2331
    %v2335 = vadd.f32 %v2251, %v2330
    %v2336 = vadd.f32 %v2252, %v2332
    %s2337 = sld [smem:[#allocation6 + $0x56]]
    %v2338 = vstv %s2337
    %v2339 = vmul.f32 %v2173, %v2338
    %v2340 = vmul.f32 %v2174, %v2338
    %2343 = vrot.lane.b32.xlu0 %v2339, 126
    %v2344 = vpop.permute.xlu0 %2343
    %2345 = vrot.lane.b32.xlu0 %v2340, 126
    %v2346 = vpop.permute.xlu0 %2345
    %v2349 = vadd.f32 %v2265, %v2344
    %v2350 = vadd.f32 %v2266, %v2346
    %s2351 = sld [smem:[#allocation6 + $0x71]]
    %v2352 = vstv %s2351
    %v2353 = vmul.f32 %v2173, %v2352
    %v2354 = vmul.f32 %v2174, %v2352
    %2357 = vrot.lane.b32.xlu0 %v2353, 126
    %v2358 = vpop.permute.xlu0 %2357
    %2359 = vrot.lane.b32.xlu0 %v2354, 126
    %v2360 = vpop.permute.xlu0 %2359
    %v2363 = vadd.f32 %v2279, %v2358
    %v2364 = vadd.f32 %v2280, %v2360
    %s2365 = sld [smem:[#allocation6 + $0x8c]]
    %v2366 = vstv %s2365
    %v2367 = vmul.f32 %v2173, %v2366
    %v2368 = vmul.f32 %v2174, %v2366
    %2371 = vrot.lane.b32.xlu0 %v2367, 126
    %v2372 = vpop.permute.xlu0 %2371
    %2373 = vrot.lane.b32.xlu0 %v2368, 126
    %v2374 = vpop.permute.xlu0 %2373
    %v2377 = vadd.f32 %v2293, %v2372
    %v2378 = vadd.f32 %v2294, %v2374
    %v2379 = vld [vmem:[%s1966 + $0x2] sm:$0xff]
    %v2380 = vld [vmem:[%s1966 + $0xa] sm:$0x3f]
    %s2381 = sld [smem:[#allocation6 + $0x6]]
    %v2382 = vstv %s2381
    %v2383 = vmul.f32 %v2379, %v2382
    %v2384 = vmul.f32 %v2380, %v2382
    %v2385 = vadd.f32 %v2307, %v2383
    %v2386 = vadd.f32 %v2308, %v2384
    %s2387 = sld [smem:[#allocation6 + $0x21]]
    %v2388 = vstv %s2387
    %v2389 = vmul.f32 %v2379, %v2388
    %v2390 = vmul.f32 %v2380, %v2388
    %v2391 = vadd.f32 %v2321, %v2389
    %v2392 = vadd.f32 %v2322, %v2390
    %s2393 = sld [smem:[#allocation6 + $0x3c]]
    %v2394 = vstv %s2393
    %v2395 = vmul.f32 %v2379, %v2394
    %v2396 = vmul.f32 %v2380, %v2394
    %v2397 = vadd.f32 %v2335, %v2395
    %v2398 = vadd.f32 %v2336, %v2396
    %s2399 = sld [smem:[#allocation6 + $0x57]]
    %v2400 = vstv %s2399
    %v2401 = vmul.f32 %v2379, %v2400
    %v2402 = vmul.f32 %v2380, %v2400
    %v2403 = vadd.f32 %v2349, %v2401
    %v2404 = vadd.f32 %v2350, %v2402
    %s2405 = sld [smem:[#allocation6 + $0x72]]
    %v2406 = vstv %s2405
    %v2407 = vmul.f32 %v2379, %v2406
    %v2408 = vmul.f32 %v2380, %v2406
    %v2409 = vadd.f32 %v2363, %v2407
    %v2410 = vadd.f32 %v2364, %v2408
    %s2411 = sld [smem:[#allocation6 + $0x8d]]
    %v2412 = vstv %s2411
    %v2413 = vmul.f32 %v2379, %v2412
    %v2414 = vmul.f32 %v2380, %v2412
    %v2415 = vadd.f32 %v2377, %v2413
    %v2416 = vadd.f32 %v2378, %v2414
    %s2417 = sld [smem:[#allocation6 + $0x7]]
    %v2418 = vstv %s2417
    %v2419 = vmul.f32 %v2379, %v2418
    %v2420 = vmul.f32 %v2380, %v2418
    %2423 = vrot.lane.b32.xlu0 %v2419, 127
    %v2424 = vpop.permute.xlu0 %2423
    %2425 = vrot.lane.b32.xlu0 %v2420, 127
    %v2426 = vpop.permute.xlu0 %2425
    %v2429 = vadd.f32 %v2385, %v2424
    %v2430 = vadd.f32 %v2386, %v2426
    %s2431 = sld [smem:[#allocation6 + $0x22]]
    %v2432 = vstv %s2431
    %v2433 = vmul.f32 %v2379, %v2432
    %v2434 = vmul.f32 %v2380, %v2432
    %2437 = vrot.lane.b32.xlu0 %v2433, 127
    %v2438 = vpop.permute.xlu0 %2437
    %2439 = vrot.lane.b32.xlu0 %v2434, 127
    %v2440 = vpop.permute.xlu0 %2439
    %v2443 = vadd.f32 %v2391, %v2438
    %v2444 = vadd.f32 %v2392, %v2440
    %s2445 = sld [smem:[#allocation6 + $0x3d]]
    %v2446 = vstv %s2445
    %v2447 = vmul.f32 %v2379, %v2446
    %v2448 = vmul.f32 %v2380, %v2446
    %2451 = vrot.lane.b32.xlu0 %v2447, 127
    %v2452 = vpop.permute.xlu0 %2451
    %2453 = vrot.lane.b32.xlu0 %v2448, 127
    %v2454 = vpop.permute.xlu0 %2453
    %v2457 = vadd.f32 %v2397, %v2452
    %v2458 = vadd.f32 %v2398, %v2454
    %s2459 = sld [smem:[#allocation6 + $0x58]]
    %v2460 = vstv %s2459
    %v2461 = vmul.f32 %v2379, %v2460
    %v2462 = vmul.f32 %v2380, %v2460
    %2465 = vrot.lane.b32.xlu0 %v2461, 127
    %v2466 = vpop.permute.xlu0 %2465
    %2467 = vrot.lane.b32.xlu0 %v2462, 127
    %v2468 = vpop.permute.xlu0 %2467
    %v2471 = vadd.f32 %v2403, %v2466
    %v2472 = vadd.f32 %v2404, %v2468
    %s2473 = sld [smem:[#allocation6 + $0x73]]
    %v2474 = vstv %s2473
    %v2475 = vmul.f32 %v2379, %v2474
    %v2476 = vmul.f32 %v2380, %v2474
    %2479 = vrot.lane.b32.xlu0 %v2475, 127
    %v2480 = vpop.permute.xlu0 %2479
    %2481 = vrot.lane.b32.xlu0 %v2476, 127
    %v2482 = vpop.permute.xlu0 %2481
    %v2485 = vadd.f32 %v2409, %v2480
    %v2486 = vadd.f32 %v2410, %v2482
    %s2487 = sld [smem:[#allocation6 + $0x8e]]
    %v2488 = vstv %s2487
    %v2489 = vmul.f32 %v2379, %v2488
    %v2490 = vmul.f32 %v2380, %v2488
    %2493 = vrot.lane.b32.xlu0 %v2489, 127
    %v2494 = vpop.permute.xlu0 %2493
    %2495 = vrot.lane.b32.xlu0 %v2490, 127
    %v2496 = vpop.permute.xlu0 %2495
    %v2499 = vadd.f32 %v2415, %v2494
    %v2500 = vadd.f32 %v2416, %v2496
    %s2501 = sld [smem:[#allocation6 + $0x8]]
    %v2502 = vstv %s2501
    %v2503 = vmul.f32 %v2379, %v2502
    %v2504 = vmul.f32 %v2380, %v2502
    %2507 = vrot.lane.b32.xlu0 %v2503, 126
    %v2508 = vpop.permute.xlu0 %2507
    %2509 = vrot.lane.b32.xlu0 %v2504, 126
    %v2510 = vpop.permute.xlu0 %2509
    %v2513 = vadd.f32 %v2429, %v2508
    %v2514 = vadd.f32 %v2430, %v2510
    %s2515 = sld [smem:[#allocation6 + $0x23]]
    %v2516 = vstv %s2515
    %v2517 = vmul.f32 %v2379, %v2516
    %v2518 = vmul.f32 %v2380, %v2516
    %2521 = vrot.lane.b32.xlu0 %v2517, 126
    %v2522 = vpop.permute.xlu0 %2521
    %2523 = vrot.lane.b32.xlu0 %v2518, 126
    %v2524 = vpop.permute.xlu0 %2523
    %v2527 = vadd.f32 %v2443, %v2522
    %v2528 = vadd.f32 %v2444, %v2524
    %s2529 = sld [smem:[#allocation6 + $0x3e]]
    %v2530 = vstv %s2529
    %v2531 = vmul.f32 %v2379, %v2530
    %v2532 = vmul.f32 %v2380, %v2530
    %2535 = vrot.lane.b32.xlu0 %v2531, 126
    %v2536 = vpop.permute.xlu0 %2535
    %2537 = vrot.lane.b32.xlu0 %v2532, 126
    %v2538 = vpop.permute.xlu0 %2537
    %v2541 = vadd.f32 %v2457, %v2536
    %v2542 = vadd.f32 %v2458, %v2538
    %s2543 = sld [smem:[#allocation6 + $0x59]]
    %v2544 = vstv %s2543
    %v2545 = vmul.f32 %v2379, %v2544
    %v2546 = vmul.f32 %v2380, %v2544
    %2549 = vrot.lane.b32.xlu0 %v2545, 126
    %v2550 = vpop.permute.xlu0 %2549
    %2551 = vrot.lane.b32.xlu0 %v2546, 126
    %v2552 = vpop.permute.xlu0 %2551
    %v2555 = vadd.f32 %v2471, %v2550
    %v2556 = vadd.f32 %v2472, %v2552
    %s2557 = sld [smem:[#allocation6 + $0x74]]
    %v2558 = vstv %s2557
    %v2559 = vmul.f32 %v2379, %v2558
    %v2560 = vmul.f32 %v2380, %v2558
    %2563 = vrot.lane.b32.xlu0 %v2559, 126
    %v2564 = vpop.permute.xlu0 %2563
    %2565 = vrot.lane.b32.xlu0 %v2560, 126
    %v2566 = vpop.permute.xlu0 %2565
    %v2569 = vadd.f32 %v2485, %v2564
    %v2570 = vadd.f32 %v2486, %v2566
    %s2571 = sld [smem:[#allocation6 + $0x8f]]
    %v2572 = vstv %s2571
    %v2573 = vmul.f32 %v2379, %v2572
    %v2574 = vmul.f32 %v2380, %v2572
    %2577 = vrot.lane.b32.xlu0 %v2573, 126
    %v2578 = vpop.permute.xlu0 %2577
    %2579 = vrot.lane.b32.xlu0 %v2574, 126
    %v2580 = vpop.permute.xlu0 %2579
    %v2583 = vadd.f32 %v2499, %v2578
    %v2584 = vadd.f32 %v2500, %v2580
    %s2585 = scalar_lea.vmem [#allocation2], 64
    %v2586 = vld [vmem:[%s2585] sm:$0xff]
    %v2587 = vld [vmem:[%s2585 + $0x8] sm:$0x3f]
    %s2588 = sld [smem:[#allocation6 + $0x9]]
    %v2589 = vstv %s2588
    %v2590 = vmul.f32 %v2586, %v2589
    %v2591 = vmul.f32 %v2587, %v2589
    %v2592 = vadd.f32 %v2513, %v2590
    %v2593 = vadd.f32 %v2514, %v2591
    %s2594 = sld [smem:[#allocation6 + $0x24]]
    %v2595 = vstv %s2594
    %v2596 = vmul.f32 %v2586, %v2595
    %v2597 = vmul.f32 %v2587, %v2595
    %v2598 = vadd.f32 %v2527, %v2596
    %v2599 = vadd.f32 %v2528, %v2597
    %s2600 = sld [smem:[#allocation6 + $0x3f]]
    %v2601 = vstv %s2600
    %v2602 = vmul.f32 %v2586, %v2601
    %v2603 = vmul.f32 %v2587, %v2601
    %v2604 = vadd.f32 %v2541, %v2602
    %v2605 = vadd.f32 %v2542, %v2603
    %s2606 = sld [smem:[#allocation6 + $0x5a]]
    %v2607 = vstv %s2606
    %v2608 = vmul.f32 %v2586, %v2607
    %v2609 = vmul.f32 %v2587, %v2607
    %v2610 = vadd.f32 %v2555, %v2608
    %v2611 = vadd.f32 %v2556, %v2609
    %s2612 = sld [smem:[#allocation6 + $0x75]]
    %v2613 = vstv %s2612
    %v2614 = vmul.f32 %v2586, %v2613
    %v2615 = vmul.f32 %v2587, %v2613
    %v2616 = vadd.f32 %v2569, %v2614
    %v2617 = vadd.f32 %v2570, %v2615
    %s2618 = sld [smem:[#allocation6 + $0x90]]
    %v2619 = vstv %s2618
    %v2620 = vmul.f32 %v2586, %v2619
    %v2621 = vmul.f32 %v2587, %v2619
    %v2622 = vadd.f32 %v2583, %v2620
    %v2623 = vadd.f32 %v2584, %v2621
    %s2624 = sld [smem:[#allocation6 + $0xa]]
    %v2625 = vstv %s2624
    %v2626 = vmul.f32 %v2586, %v2625
    %v2627 = vmul.f32 %v2587, %v2625
    %2630 = vrot.lane.b32.xlu0 %v2626, 127
    %v2631 = vpop.permute.xlu0 %2630
    %2632 = vrot.lane.b32.xlu0 %v2627, 127
    %v2633 = vpop.permute.xlu0 %2632
    %v2636 = vadd.f32 %v2592, %v2631
    %v2637 = vadd.f32 %v2593, %v2633
    %s2638 = sld [smem:[#allocation6 + $0x25]]
    %v2639 = vstv %s2638
    %v2640 = vmul.f32 %v2586, %v2639
    %v2641 = vmul.f32 %v2587, %v2639
    %2644 = vrot.lane.b32.xlu0 %v2640, 127
    %v2645 = vpop.permute.xlu0 %2644
    %2646 = vrot.lane.b32.xlu0 %v2641, 127
    %v2647 = vpop.permute.xlu0 %2646
    %v2650 = vadd.f32 %v2598, %v2645
    %v2651 = vadd.f32 %v2599, %v2647
    %s2652 = sld [smem:[#allocation6 + $0x40]]
    %v2653 = vstv %s2652
    %v2654 = vmul.f32 %v2586, %v2653
    %v2655 = vmul.f32 %v2587, %v2653
    %2658 = vrot.lane.b32.xlu0 %v2654, 127
    %v2659 = vpop.permute.xlu0 %2658
    %2660 = vrot.lane.b32.xlu0 %v2655, 127
    %v2661 = vpop.permute.xlu0 %2660
    %v2664 = vadd.f32 %v2604, %v2659
    %v2665 = vadd.f32 %v2605, %v2661
    %s2666 = sld [smem:[#allocation6 + $0x5b]]
    %v2667 = vstv %s2666
    %v2668 = vmul.f32 %v2586, %v2667
    %v2669 = vmul.f32 %v2587, %v2667
    %2672 = vrot.lane.b32.xlu0 %v2668, 127
    %v2673 = vpop.permute.xlu0 %2672
    %2674 = vrot.lane.b32.xlu0 %v2669, 127
    %v2675 = vpop.permute.xlu0 %2674
    %v2678 = vadd.f32 %v2610, %v2673
    %v2679 = vadd.f32 %v2611, %v2675
    %s2680 = sld [smem:[#allocation6 + $0x76]]
    %v2681 = vstv %s2680
    %v2682 = vmul.f32 %v2586, %v2681
    %v2683 = vmul.f32 %v2587, %v2681
    %2686 = vrot.lane.b32.xlu0 %v2682, 127
    %v2687 = vpop.permute.xlu0 %2686
    %2688 = vrot.lane.b32.xlu0 %v2683, 127
    %v2689 = vpop.permute.xlu0 %2688
    %v2692 = vadd.f32 %v2616, %v2687
    %v2693 = vadd.f32 %v2617, %v2689
    %s2694 = sld [smem:[#allocation6 + $0x91]]
    %v2695 = vstv %s2694
    %v2696 = vmul.f32 %v2586, %v2695
    %v2697 = vmul.f32 %v2587, %v2695
    %2700 = vrot.lane.b32.xlu0 %v2696, 127
    %v2701 = vpop.permute.xlu0 %2700
    %2702 = vrot.lane.b32.xlu0 %v2697, 127
    %v2703 = vpop.permute.xlu0 %2702
    %v2706 = vadd.f32 %v2622, %v2701
    %v2707 = vadd.f32 %v2623, %v2703
    %s2708 = sld [smem:[#allocation6 + $0xb]]
    %v2709 = vstv %s2708
    %v2710 = vmul.f32 %v2586, %v2709
    %v2711 = vmul.f32 %v2587, %v2709
    %2714 = vrot.lane.b32.xlu0 %v2710, 126
    %v2715 = vpop.permute.xlu0 %2714
    %2716 = vrot.lane.b32.xlu0 %v2711, 126
    %v2717 = vpop.permute.xlu0 %2716
    %v2720 = vadd.f32 %v2636, %v2715
    %v2721 = vadd.f32 %v2637, %v2717
    %s2722 = sld [smem:[#allocation6 + $0x26]]
    %v2723 = vstv %s2722
    %v2724 = vmul.f32 %v2586, %v2723
    %v2725 = vmul.f32 %v2587, %v2723
    %2728 = vrot.lane.b32.xlu0 %v2724, 126
    %v2729 = vpop.permute.xlu0 %2728
    %2730 = vrot.lane.b32.xlu0 %v2725, 126
    %v2731 = vpop.permute.xlu0 %2730
    %v2734 = vadd.f32 %v2650, %v2729
    %v2735 = vadd.f32 %v2651, %v2731
    %s2736 = sld [smem:[#allocation6 + $0x41]]
    %v2737 = vstv %s2736
    %v2738 = vmul.f32 %v2586, %v2737
    %v2739 = vmul.f32 %v2587, %v2737
    %2742 = vrot.lane.b32.xlu0 %v2738, 126
    %v2743 = vpop.permute.xlu0 %2742
    %2744 = vrot.lane.b32.xlu0 %v2739, 126
    %v2745 = vpop.permute.xlu0 %2744
    %v2748 = vadd.f32 %v2664, %v2743
    %v2749 = vadd.f32 %v2665, %v2745
    %s2750 = sld [smem:[#allocation6 + $0x5c]]
    %v2751 = vstv %s2750
    %v2752 = vmul.f32 %v2586, %v2751
    %v2753 = vmul.f32 %v2587, %v2751
    %2756 = vrot.lane.b32.xlu0 %v2752, 126
    %v2757 = vpop.permute.xlu0 %2756
    %2758 = vrot.lane.b32.xlu0 %v2753, 126
    %v2759 = vpop.permute.xlu0 %2758
    %v2762 = vadd.f32 %v2678, %v2757
    %v2763 = vadd.f32 %v2679, %v2759
    %s2764 = sld [smem:[#allocation6 + $0x77]]
    %v2765 = vstv %s2764
    %v2766 = vmul.f32 %v2586, %v2765
    %v2767 = vmul.f32 %v2587, %v2765
    %2770 = vrot.lane.b32.xlu0 %v2766, 126
    %v2771 = vpop.permute.xlu0 %2770
    %2772 = vrot.lane.b32.xlu0 %v2767, 126
    %v2773 = vpop.permute.xlu0 %2772
    %v2776 = vadd.f32 %v2692, %v2771
    %v2777 = vadd.f32 %v2693, %v2773
    %s2778 = sld [smem:[#allocation6 + $0x92]]
    %v2779 = vstv %s2778
    %v2780 = vmul.f32 %v2586, %v2779
    %v2781 = vmul.f32 %v2587, %v2779
    %2784 = vrot.lane.b32.xlu0 %v2780, 126
    %v2785 = vpop.permute.xlu0 %2784
    %2786 = vrot.lane.b32.xlu0 %v2781, 126
    %v2787 = vpop.permute.xlu0 %2786
    %v2790 = vadd.f32 %v2706, %v2785
    %v2791 = vadd.f32 %v2707, %v2787
    %v2792 = vld [vmem:[%s2585 + $0x1] sm:$0xff]
    %v2793 = vld [vmem:[%s2585 + $0x9] sm:$0x3f]
    %s2794 = sld [smem:[#allocation6 + $0xc]]
    %v2795 = vstv %s2794
    %v2796 = vmul.f32 %v2792, %v2795
    %v2797 = vmul.f32 %v2793, %v2795
    %v2798 = vadd.f32 %v2720, %v2796
    %v2799 = vadd.f32 %v2721, %v2797
    %s2800 = sld [smem:[#allocation6 + $0x27]]
    %v2801 = vstv %s2800
    %v2802 = vmul.f32 %v2792, %v2801
    %v2803 = vmul.f32 %v2793, %v2801
    %v2804 = vadd.f32 %v2734, %v2802
    %v2805 = vadd.f32 %v2735, %v2803
    %s2806 = sld [smem:[#allocation6 + $0x42]]
    %v2807 = vstv %s2806
    %v2808 = vmul.f32 %v2792, %v2807
    %v2809 = vmul.f32 %v2793, %v2807
    %v2810 = vadd.f32 %v2748, %v2808
    %v2811 = vadd.f32 %v2749, %v2809
    %s2812 = sld [smem:[#allocation6 + $0x5d]]
    %v2813 = vstv %s2812
    %v2814 = vmul.f32 %v2792, %v2813
    %v2815 = vmul.f32 %v2793, %v2813
    %v2816 = vadd.f32 %v2762, %v2814
    %v2817 = vadd.f32 %v2763, %v2815
    %s2818 = sld [smem:[#allocation6 + $0x78]]
    %v2819 = vstv %s2818
    %v2820 = vmul.f32 %v2792, %v2819
    %v2821 = vmul.f32 %v2793, %v2819
    %v2822 = vadd.f32 %v2776, %v2820
    %v2823 = vadd.f32 %v2777, %v2821
    %s2824 = sld [smem:[#allocation6 + $0x93]]
    %v2825 = vstv %s2824
    %v2826 = vmul.f32 %v2792, %v2825
    %v2827 = vmul.f32 %v2793, %v2825
    %v2828 = vadd.f32 %v2790, %v2826
    %v2829 = vadd.f32 %v2791, %v2827
    %s2830 = sld [smem:[#allocation6 + $0xd]]
    %v2831 = vstv %s2830
    %v2832 = vmul.f32 %v2792, %v2831
    %v2833 = vmul.f32 %v2793, %v2831
    %2836 = vrot.lane.b32.xlu0 %v2832, 127
    %v2837 = vpop.permute.xlu0 %2836
    %2838 = vrot.lane.b32.xlu0 %v2833, 127
    %v2839 = vpop.permute.xlu0 %2838
    %v2842 = vadd.f32 %v2798, %v2837
    %v2843 = vadd.f32 %v2799, %v2839
    %s2844 = sld [smem:[#allocation6 + $0x28]]
    %v2845 = vstv %s2844
    %v2846 = vmul.f32 %v2792, %v2845
    %v2847 = vmul.f32 %v2793, %v2845
    %2850 = vrot.lane.b32.xlu0 %v2846, 127
    %v2851 = vpop.permute.xlu0 %2850
    %2852 = vrot.lane.b32.xlu0 %v2847, 127
    %v2853 = vpop.permute.xlu0 %2852
    %v2856 = vadd.f32 %v2804, %v2851
    %v2857 = vadd.f32 %v2805, %v2853
    %s2858 = sld [smem:[#allocation6 + $0x43]]
    %v2859 = vstv %s2858
    %v2860 = vmul.f32 %v2792, %v2859
    %v2861 = vmul.f32 %v2793, %v2859
    %2864 = vrot.lane.b32.xlu0 %v2860, 127
    %v2865 = vpop.permute.xlu0 %2864
    %2866 = vrot.lane.b32.xlu0 %v2861, 127
    %v2867 = vpop.permute.xlu0 %2866
    %v2870 = vadd.f32 %v2810, %v2865
    %v2871 = vadd.f32 %v2811, %v2867
    %s2872 = sld [smem:[#allocation6 + $0x5e]]
    %v2873 = vstv %s2872
    %v2874 = vmul.f32 %v2792, %v2873
    %v2875 = vmul.f32 %v2793, %v2873
    %2878 = vrot.lane.b32.xlu0 %v2874, 127
    %v2879 = vpop.permute.xlu0 %2878
    %2880 = vrot.lane.b32.xlu0 %v2875, 127
    %v2881 = vpop.permute.xlu0 %2880
    %v2884 = vadd.f32 %v2816, %v2879
    %v2885 = vadd.f32 %v2817, %v2881
    %s2886 = sld [smem:[#allocation6 + $0x79]]
    %v2887 = vstv %s2886
    %v2888 = vmul.f32 %v2792, %v2887
    %v2889 = vmul.f32 %v2793, %v2887
    %2892 = vrot.lane.b32.xlu0 %v2888, 127
    %v2893 = vpop.permute.xlu0 %2892
    %2894 = vrot.lane.b32.xlu0 %v2889, 127
    %v2895 = vpop.permute.xlu0 %2894
    %v2898 = vadd.f32 %v2822, %v2893
    %v2899 = vadd.f32 %v2823, %v2895
    %s2900 = sld [smem:[#allocation6 + $0x94]]
    %v2901 = vstv %s2900
    %v2902 = vmul.f32 %v2792, %v2901
    %v2903 = vmul.f32 %v2793, %v2901
    %2906 = vrot.lane.b32.xlu0 %v2902, 127
    %v2907 = vpop.permute.xlu0 %2906
    %2908 = vrot.lane.b32.xlu0 %v2903, 127
    %v2909 = vpop.permute.xlu0 %2908
    %v2912 = vadd.f32 %v2828, %v2907
    %v2913 = vadd.f32 %v2829, %v2909
    %s2914 = sld [smem:[#allocation6 + $0xe]]
    %v2915 = vstv %s2914
    %v2916 = vmul.f32 %v2792, %v2915
    %v2917 = vmul.f32 %v2793, %v2915
    %2920 = vrot.lane.b32.xlu0 %v2916, 126
    %v2921 = vpop.permute.xlu0 %2920
    %2922 = vrot.lane.b32.xlu0 %v2917, 126
    %v2923 = vpop.permute.xlu0 %2922
    %v2926 = vadd.f32 %v2842, %v2921
    %v2927 = vadd.f32 %v2843, %v2923
    %s2928 = sld [smem:[#allocation6 + $0x29]]
    %v2929 = vstv %s2928
    %v2930 = vmul.f32 %v2792, %v2929
    %v2931 = vmul.f32 %v2793, %v2929
    %2934 = vrot.lane.b32.xlu0 %v2930, 126
    %v2935 = vpop.permute.xlu0 %2934
    %2936 = vrot.lane.b32.xlu0 %v2931, 126
    %v2937 = vpop.permute.xlu0 %2936
    %v2940 = vadd.f32 %v2856, %v2935
    %v2941 = vadd.f32 %v2857, %v2937
    %s2942 = sld [smem:[#allocation6 + $0x44]]
    %v2943 = vstv %s2942
    %v2944 = vmul.f32 %v2792, %v2943
    %v2945 = vmul.f32 %v2793, %v2943
    %2948 = vrot.lane.b32.xlu0 %v2944, 126
    %v2949 = vpop.permute.xlu0 %2948
    %2950 = vrot.lane.b32.xlu0 %v2945, 126
    %v2951 = vpop.permute.xlu0 %2950
    %v2954 = vadd.f32 %v2870, %v2949
    %v2955 = vadd.f32 %v2871, %v2951
    %s2956 = sld [smem:[#allocation6 + $0x5f]]
    %v2957 = vstv %s2956
    %v2958 = vmul.f32 %v2792, %v2957
    %v2959 = vmul.f32 %v2793, %v2957
    %2962 = vrot.lane.b32.xlu0 %v2958, 126
    %v2963 = vpop.permute.xlu0 %2962
    %2964 = vrot.lane.b32.xlu0 %v2959, 126
    %v2965 = vpop.permute.xlu0 %2964
    %v2968 = vadd.f32 %v2884, %v2963
    %v2969 = vadd.f32 %v2885, %v2965
    %s2970 = sld [smem:[#allocation6 + $0x7a]]
    %v2971 = vstv %s2970
    %v2972 = vmul.f32 %v2792, %v2971
    %v2973 = vmul.f32 %v2793, %v2971
    %2976 = vrot.lane.b32.xlu0 %v2972, 126
    %v2977 = vpop.permute.xlu0 %2976
    %2978 = vrot.lane.b32.xlu0 %v2973, 126
    %v2979 = vpop.permute.xlu0 %2978
    %v2982 = vadd.f32 %v2898, %v2977
    %v2983 = vadd.f32 %v2899, %v2979
    %s2984 = sld [smem:[#allocation6 + $0x95]]
    %v2985 = vstv %s2984
    %v2986 = vmul.f32 %v2792, %v2985
    %v2987 = vmul.f32 %v2793, %v2985
    %2990 = vrot.lane.b32.xlu0 %v2986, 126
    %v2991 = vpop.permute.xlu0 %2990
    %2992 = vrot.lane.b32.xlu0 %v2987, 126
    %v2993 = vpop.permute.xlu0 %2992
    %v2996 = vadd.f32 %v2912, %v2991
    %v2997 = vadd.f32 %v2913, %v2993
    %v2998 = vld [vmem:[%s2585 + $0x2] sm:$0xff]
    %v2999 = vld [vmem:[%s2585 + $0xa] sm:$0x3f]
    %s3000 = sld [smem:[#allocation6 + $0xf]]
    %v3001 = vstv %s3000
    %v3002 = vmul.f32 %v2998, %v3001
    %v3003 = vmul.f32 %v2999, %v3001
    %v3004 = vadd.f32 %v2926, %v3002
    %v3005 = vadd.f32 %v2927, %v3003
    %s3006 = sld [smem:[#allocation6 + $0x2a]]
    %v3007 = vstv %s3006
    %v3008 = vmul.f32 %v2998, %v3007
    %v3009 = vmul.f32 %v2999, %v3007
    %v3010 = vadd.f32 %v2940, %v3008
    %v3011 = vadd.f32 %v2941, %v3009
    %s3012 = sld [smem:[#allocation6 + $0x45]]
    %v3013 = vstv %s3012
    %v3014 = vmul.f32 %v2998, %v3013
    %v3015 = vmul.f32 %v2999, %v3013
    %v3016 = vadd.f32 %v2954, %v3014
    %v3017 = vadd.f32 %v2955, %v3015
    %s3018 = sld [smem:[#allocation6 + $0x60]]
    %v3019 = vstv %s3018
    %v3020 = vmul.f32 %v2998, %v3019
    %v3021 = vmul.f32 %v2999, %v3019
    %v3022 = vadd.f32 %v2968, %v3020
    %v3023 = vadd.f32 %v2969, %v3021
    %s3024 = sld [smem:[#allocation6 + $0x7b]]
    %v3025 = vstv %s3024
    %v3026 = vmul.f32 %v2998, %v3025
    %v3027 = vmul.f32 %v2999, %v3025
    %v3028 = vadd.f32 %v2982, %v3026
    %v3029 = vadd.f32 %v2983, %v3027
    %s3030 = sld [smem:[#allocation6 + $0x96]]
    %v3031 = vstv %s3030
    %v3032 = vmul.f32 %v2998, %v3031
    %v3033 = vmul.f32 %v2999, %v3031
    %v3034 = vadd.f32 %v2996, %v3032
    %v3035 = vadd.f32 %v2997, %v3033
    %s3036 = sld [smem:[#allocation6 + $0x10]]
    %v3037 = vstv %s3036
    %v3038 = vmul.f32 %v2998, %v3037
    %v3039 = vmul.f32 %v2999, %v3037
    %3042 = vrot.lane.b32.xlu0 %v3038, 127
    %v3043 = vpop.permute.xlu0 %3042
    %3044 = vrot.lane.b32.xlu0 %v3039, 127
    %v3045 = vpop.permute.xlu0 %3044
    %v3048 = vadd.f32 %v3004, %v3043
    %v3049 = vadd.f32 %v3005, %v3045
    %s3050 = sld [smem:[#allocation6 + $0x2b]]
    %v3051 = vstv %s3050
    %v3052 = vmul.f32 %v2998, %v3051
    %v3053 = vmul.f32 %v2999, %v3051
    %3056 = vrot.lane.b32.xlu0 %v3052, 127
    %v3057 = vpop.permute.xlu0 %3056
    %3058 = vrot.lane.b32.xlu0 %v3053, 127
    %v3059 = vpop.permute.xlu0 %3058
    %v3062 = vadd.f32 %v3010, %v3057
    %v3063 = vadd.f32 %v3011, %v3059
    %s3064 = sld [smem:[#allocation6 + $0x46]]
    %v3065 = vstv %s3064
    %v3066 = vmul.f32 %v2998, %v3065
    %v3067 = vmul.f32 %v2999, %v3065
    %3070 = vrot.lane.b32.xlu0 %v3066, 127
    %v3071 = vpop.permute.xlu0 %3070
    %3072 = vrot.lane.b32.xlu0 %v3067, 127
    %v3073 = vpop.permute.xlu0 %3072
    %v3076 = vadd.f32 %v3016, %v3071
    %v3077 = vadd.f32 %v3017, %v3073
    %s3078 = sld [smem:[#allocation6 + $0x61]]
    %v3079 = vstv %s3078
    %v3080 = vmul.f32 %v2998, %v3079
    %v3081 = vmul.f32 %v2999, %v3079
    %3084 = vrot.lane.b32.xlu0 %v3080, 127
    %v3085 = vpop.permute.xlu0 %3084
    %3086 = vrot.lane.b32.xlu0 %v3081, 127
    %v3087 = vpop.permute.xlu0 %3086
    %v3090 = vadd.f32 %v3022, %v3085
    %v3091 = vadd.f32 %v3023, %v3087
    %s3092 = sld [smem:[#allocation6 + $0x7c]]
    %v3093 = vstv %s3092
    %v3094 = vmul.f32 %v2998, %v3093
    %v3095 = vmul.f32 %v2999, %v3093
    %3098 = vrot.lane.b32.xlu0 %v3094, 127
    %v3099 = vpop.permute.xlu0 %3098
    %3100 = vrot.lane.b32.xlu0 %v3095, 127
    %v3101 = vpop.permute.xlu0 %3100
    %v3104 = vadd.f32 %v3028, %v3099
    %v3105 = vadd.f32 %v3029, %v3101
    %s3106 = sld [smem:[#allocation6 + $0x97]]
    %v3107 = vstv %s3106
    %v3108 = vmul.f32 %v2998, %v3107
    %v3109 = vmul.f32 %v2999, %v3107
    %3112 = vrot.lane.b32.xlu0 %v3108, 127
    %v3113 = vpop.permute.xlu0 %3112
    %3114 = vrot.lane.b32.xlu0 %v3109, 127
    %v3115 = vpop.permute.xlu0 %3114
    %v3118 = vadd.f32 %v3034, %v3113
    %v3119 = vadd.f32 %v3035, %v3115
    %s3120 = sld [smem:[#allocation6 + $0x11]]
    %v3121 = vstv %s3120
    %v3122 = vmul.f32 %v2998, %v3121
    %v3123 = vmul.f32 %v2999, %v3121
    %3126 = vrot.lane.b32.xlu0 %v3122, 126
    %v3127 = vpop.permute.xlu0 %3126
    %3128 = vrot.lane.b32.xlu0 %v3123, 126
    %v3129 = vpop.permute.xlu0 %3128
    %v3132 = vadd.f32 %v3048, %v3127
    %v3133 = vadd.f32 %v3049, %v3129
    %s3134 = sld [smem:[#allocation6 + $0x2c]]
    %v3135 = vstv %s3134
    %v3136 = vmul.f32 %v2998, %v3135
    %v3137 = vmul.f32 %v2999, %v3135
    %3140 = vrot.lane.b32.xlu0 %v3136, 126
    %v3141 = vpop.permute.xlu0 %3140
    %3142 = vrot.lane.b32.xlu0 %v3137, 126
    %v3143 = vpop.permute.xlu0 %3142
    %v3146 = vadd.f32 %v3062, %v3141
    %v3147 = vadd.f32 %v3063, %v3143
    %s3148 = sld [smem:[#allocation6 + $0x47]]
    %v3149 = vstv %s3148
    %v3150 = vmul.f32 %v2998, %v3149
    %v3151 = vmul.f32 %v2999, %v3149
    %3154 = vrot.lane.b32.xlu0 %v3150, 126
    %v3155 = vpop.permute.xlu0 %3154
    %3156 = vrot.lane.b32.xlu0 %v3151, 126
    %v3157 = vpop.permute.xlu0 %3156
    %v3160 = vadd.f32 %v3076, %v3155
    %v3161 = vadd.f32 %v3077, %v3157
    %s3162 = sld [smem:[#allocation6 + $0x62]]
    %v3163 = vstv %s3162
    %v3164 = vmul.f32 %v2998, %v3163
    %v3165 = vmul.f32 %v2999, %v3163
    %3168 = vrot.lane.b32.xlu0 %v3164, 126
    %v3169 = vpop.permute.xlu0 %3168
    %3170 = vrot.lane.b32.xlu0 %v3165, 126
    %v3171 = vpop.permute.xlu0 %3170
    %v3174 = vadd.f32 %v3090, %v3169
    %v3175 = vadd.f32 %v3091, %v3171
    %s3176 = sld [smem:[#allocation6 + $0x7d]]
    %v3177 = vstv %s3176
    %v3178 = vmul.f32 %v2998, %v3177
    %v3179 = vmul.f32 %v2999, %v3177
    %3182 = vrot.lane.b32.xlu0 %v3178, 126
    %v3183 = vpop.permute.xlu0 %3182
    %3184 = vrot.lane.b32.xlu0 %v3179, 126
    %v3185 = vpop.permute.xlu0 %3184
    %v3188 = vadd.f32 %v3104, %v3183
    %v3189 = vadd.f32 %v3105, %v3185
    %s3190 = sld [smem:[#allocation6 + $0x98]]
    %v3191 = vstv %s3190
    %v3192 = vmul.f32 %v2998, %v3191
    %v3193 = vmul.f32 %v2999, %v3191
    %3196 = vrot.lane.b32.xlu0 %v3192, 126
    %v3197 = vpop.permute.xlu0 %3196
    %3198 = vrot.lane.b32.xlu0 %v3193, 126
    %v3199 = vpop.permute.xlu0 %3198
    %v3202 = vadd.f32 %v3118, %v3197
    %v3203 = vadd.f32 %v3119, %v3199
    %s3204 = scalar_lea.vmem [#allocation2], 80
    %v3205 = vld [vmem:[%s3204] sm:$0xff]
    %v3206 = vld [vmem:[%s3204 + $0x8] sm:$0x3f]
    %s3207 = sld [smem:[#allocation6 + $0x12]]
    %v3208 = vstv %s3207
    %v3209 = vmul.f32 %v3205, %v3208
    %v3210 = vmul.f32 %v3206, %v3208
    %v3211 = vadd.f32 %v3132, %v3209
    %v3212 = vadd.f32 %v3133, %v3210
    %s3213 = sld [smem:[#allocation6 + $0x2d]]
    %v3214 = vstv %s3213
    %v3215 = vmul.f32 %v3205, %v3214
    %v3216 = vmul.f32 %v3206, %v3214
    %v3217 = vadd.f32 %v3146, %v3215
    %v3218 = vadd.f32 %v3147, %v3216
    %s3219 = sld [smem:[#allocation6 + $0x48]]
    %v3220 = vstv %s3219
    %v3221 = vmul.f32 %v3205, %v3220
    %v3222 = vmul.f32 %v3206, %v3220
    %v3223 = vadd.f32 %v3160, %v3221
    %v3224 = vadd.f32 %v3161, %v3222
    %s3225 = sld [smem:[#allocation6 + $0x63]]
    %v3226 = vstv %s3225
    %v3227 = vmul.f32 %v3205, %v3226
    %v3228 = vmul.f32 %v3206, %v3226
    %v3229 = vadd.f32 %v3174, %v3227
    %v3230 = vadd.f32 %v3175, %v3228
    %s3231 = sld [smem:[#allocation6 + $0x7e]]
    %v3232 = vstv %s3231
    %v3233 = vmul.f32 %v3205, %v3232
    %v3234 = vmul.f32 %v3206, %v3232
    %v3235 = vadd.f32 %v3188, %v3233
    %v3236 = vadd.f32 %v3189, %v3234
    %s3237 = sld [smem:[#allocation6 + $0x99]]
    %v3238 = vstv %s3237
    %v3239 = vmul.f32 %v3205, %v3238
    %v3240 = vmul.f32 %v3206, %v3238
    %v3241 = vadd.f32 %v3202, %v3239
    %v3242 = vadd.f32 %v3203, %v3240
    %s3243 = sld [smem:[#allocation6 + $0x13]]
    %v3244 = vstv %s3243
    %v3245 = vmul.f32 %v3205, %v3244
    %v3246 = vmul.f32 %v3206, %v3244
    %3249 = vrot.lane.b32.xlu0 %v3245, 127
    %v3250 = vpop.permute.xlu0 %3249
    %3251 = vrot.lane.b32.xlu0 %v3246, 127
    %v3252 = vpop.permute.xlu0 %3251
    %v3255 = vadd.f32 %v3211, %v3250
    %v3256 = vadd.f32 %v3212, %v3252
    %s3257 = sld [smem:[#allocation6 + $0x2e]]
    %v3258 = vstv %s3257
    %v3259 = vmul.f32 %v3205, %v3258
    %v3260 = vmul.f32 %v3206, %v3258
    %3263 = vrot.lane.b32.xlu0 %v3259, 127
    %v3264 = vpop.permute.xlu0 %3263
    %3265 = vrot.lane.b32.xlu0 %v3260, 127
    %v3266 = vpop.permute.xlu0 %3265
    %v3269 = vadd.f32 %v3217, %v3264
    %v3270 = vadd.f32 %v3218, %v3266
    %s3271 = sld [smem:[#allocation6 + $0x49]]
    %v3272 = vstv %s3271
    %v3273 = vmul.f32 %v3205, %v3272
    %v3274 = vmul.f32 %v3206, %v3272
    %3277 = vrot.lane.b32.xlu0 %v3273, 127
    %v3278 = vpop.permute.xlu0 %3277
    %3279 = vrot.lane.b32.xlu0 %v3274, 127
    %v3280 = vpop.permute.xlu0 %3279
    %v3283 = vadd.f32 %v3223, %v3278
    %v3284 = vadd.f32 %v3224, %v3280
    %s3285 = sld [smem:[#allocation6 + $0x64]]
    %v3286 = vstv %s3285
    %v3287 = vmul.f32 %v3205, %v3286
    %v3288 = vmul.f32 %v3206, %v3286
    %3291 = vrot.lane.b32.xlu0 %v3287, 127
    %v3292 = vpop.permute.xlu0 %3291
    %3293 = vrot.lane.b32.xlu0 %v3288, 127
    %v3294 = vpop.permute.xlu0 %3293
    %v3297 = vadd.f32 %v3229, %v3292
    %v3298 = vadd.f32 %v3230, %v3294
    %s3299 = sld [smem:[#allocation6 + $0x7f]]
    %v3300 = vstv %s3299
    %v3301 = vmul.f32 %v3205, %v3300
    %v3302 = vmul.f32 %v3206, %v3300
    %3305 = vrot.lane.b32.xlu0 %v3301, 127
    %v3306 = vpop.permute.xlu0 %3305
    %3307 = vrot.lane.b32.xlu0 %v3302, 127
    %v3308 = vpop.permute.xlu0 %3307
    %v3311 = vadd.f32 %v3235, %v3306
    %v3312 = vadd.f32 %v3236, %v3308
    %s3313 = sld [smem:[#allocation6 + $0x9a]]
    %v3314 = vstv %s3313
    %v3315 = vmul.f32 %v3205, %v3314
    %v3316 = vmul.f32 %v3206, %v3314
    %3319 = vrot.lane.b32.xlu0 %v3315, 127
    %v3320 = vpop.permute.xlu0 %3319
    %3321 = vrot.lane.b32.xlu0 %v3316, 127
    %v3322 = vpop.permute.xlu0 %3321
    %v3325 = vadd.f32 %v3241, %v3320
    %v3326 = vadd.f32 %v3242, %v3322
    %s3327 = sld [smem:[#allocation6 + $0x14]]
    %v3328 = vstv %s3327
    %v3329 = vmul.f32 %v3205, %v3328
    %v3330 = vmul.f32 %v3206, %v3328
    %3333 = vrot.lane.b32.xlu0 %v3329, 126
    %v3334 = vpop.permute.xlu0 %3333
    %3335 = vrot.lane.b32.xlu0 %v3330, 126
    %v3336 = vpop.permute.xlu0 %3335
    %v3339 = vadd.f32 %v3255, %v3334
    %v3340 = vadd.f32 %v3256, %v3336
    %s3341 = sld [smem:[#allocation6 + $0x2f]]
    %v3342 = vstv %s3341
    %v3343 = vmul.f32 %v3205, %v3342
    %v3344 = vmul.f32 %v3206, %v3342
    %3347 = vrot.lane.b32.xlu0 %v3343, 126
    %v3348 = vpop.permute.xlu0 %3347
    %3349 = vrot.lane.b32.xlu0 %v3344, 126
    %v3350 = vpop.permute.xlu0 %3349
    %v3353 = vadd.f32 %v3269, %v3348
    %v3354 = vadd.f32 %v3270, %v3350
    %s3355 = sld [smem:[#allocation6 + $0x4a]]
    %v3356 = vstv %s3355
    %v3357 = vmul.f32 %v3205, %v3356
    %v3358 = vmul.f32 %v3206, %v3356
    %3361 = vrot.lane.b32.xlu0 %v3357, 126
    %v3362 = vpop.permute.xlu0 %3361
    %3363 = vrot.lane.b32.xlu0 %v3358, 126
    %v3364 = vpop.permute.xlu0 %3363
    %v3367 = vadd.f32 %v3283, %v3362
    %v3368 = vadd.f32 %v3284, %v3364
    %s3369 = sld [smem:[#allocation6 + $0x65]]
    %v3370 = vstv %s3369
    %v3371 = vmul.f32 %v3205, %v3370
    %v3372 = vmul.f32 %v3206, %v3370
    %3375 = vrot.lane.b32.xlu0 %v3371, 126
    %v3376 = vpop.permute.xlu0 %3375
    %3377 = vrot.lane.b32.xlu0 %v3372, 126
    %v3378 = vpop.permute.xlu0 %3377
    %v3381 = vadd.f32 %v3297, %v3376
    %v3382 = vadd.f32 %v3298, %v3378
    %s3383 = sld [smem:[#allocation6 + $0x80]]
    %v3384 = vstv %s3383
    %v3385 = vmul.f32 %v3205, %v3384
    %v3386 = vmul.f32 %v3206, %v3384
    %3389 = vrot.lane.b32.xlu0 %v3385, 126
    %v3390 = vpop.permute.xlu0 %3389
    %3391 = vrot.lane.b32.xlu0 %v3386, 126
    %v3392 = vpop.permute.xlu0 %3391
    %v3395 = vadd.f32 %v3311, %v3390
    %v3396 = vadd.f32 %v3312, %v3392
    %s3397 = sld [smem:[#allocation6 + $0x9b]]
    %v3398 = vstv %s3397
    %v3399 = vmul.f32 %v3205, %v3398
    %v3400 = vmul.f32 %v3206, %v3398
    %3403 = vrot.lane.b32.xlu0 %v3399, 126
    %v3404 = vpop.permute.xlu0 %3403
    %3405 = vrot.lane.b32.xlu0 %v3400, 126
    %v3406 = vpop.permute.xlu0 %3405
    %v3409 = vadd.f32 %v3325, %v3404
    %v3410 = vadd.f32 %v3326, %v3406
    %v3411 = vld [vmem:[%s3204 + $0x1] sm:$0xff]
    %v3412 = vld [vmem:[%s3204 + $0x9] sm:$0x3f]
    %s3413 = sld [smem:[#allocation6 + $0x15]]
    %v3414 = vstv %s3413
    %v3415 = vmul.f32 %v3411, %v3414
    %v3416 = vmul.f32 %v3412, %v3414
    %v3417 = vadd.f32 %v3339, %v3415
    %v3418 = vadd.f32 %v3340, %v3416
    %s3419 = sld [smem:[#allocation6 + $0x30]]
    %v3420 = vstv %s3419
    %v3421 = vmul.f32 %v3411, %v3420
    %v3422 = vmul.f32 %v3412, %v3420
    %v3423 = vadd.f32 %v3353, %v3421
    %v3424 = vadd.f32 %v3354, %v3422
    %s3425 = sld [smem:[#allocation6 + $0x4b]]
    %v3426 = vstv %s3425
    %v3427 = vmul.f32 %v3411, %v3426
    %v3428 = vmul.f32 %v3412, %v3426
    %v3429 = vadd.f32 %v3367, %v3427
    %v3430 = vadd.f32 %v3368, %v3428
    %s3431 = sld [smem:[#allocation6 + $0x66]]
    %v3432 = vstv %s3431
    %v3433 = vmul.f32 %v3411, %v3432
    %v3434 = vmul.f32 %v3412, %v3432
    %v3435 = vadd.f32 %v3381, %v3433
    %v3436 = vadd.f32 %v3382, %v3434
    %s3437 = sld [smem:[#allocation6 + $0x81]]
    %v3438 = vstv %s3437
    %v3439 = vmul.f32 %v3411, %v3438
    %v3440 = vmul.f32 %v3412, %v3438
    %v3441 = vadd.f32 %v3395, %v3439
    %v3442 = vadd.f32 %v3396, %v3440
    %s3443 = sld [smem:[#allocation6 + $0x9c]]
    %v3444 = vstv %s3443
    %v3445 = vmul.f32 %v3411, %v3444
    %v3446 = vmul.f32 %v3412, %v3444
    %v3447 = vadd.f32 %v3409, %v3445
    %v3448 = vadd.f32 %v3410, %v3446
    %s3449 = sld [smem:[#allocation6 + $0x16]]
    %v3450 = vstv %s3449
    %v3451 = vmul.f32 %v3411, %v3450
    %v3452 = vmul.f32 %v3412, %v3450
    %3455 = vrot.lane.b32.xlu0 %v3451, 127
    %v3456 = vpop.permute.xlu0 %3455
    %3457 = vrot.lane.b32.xlu0 %v3452, 127
    %v3458 = vpop.permute.xlu0 %3457
    %v3461 = vadd.f32 %v3417, %v3456
    %v3462 = vadd.f32 %v3418, %v3458
    %s3463 = sld [smem:[#allocation6 + $0x31]]
    %v3464 = vstv %s3463
    %v3465 = vmul.f32 %v3411, %v3464
    %v3466 = vmul.f32 %v3412, %v3464
    %3469 = vrot.lane.b32.xlu0 %v3465, 127
    %v3470 = vpop.permute.xlu0 %3469
    %3471 = vrot.lane.b32.xlu0 %v3466, 127
    %v3472 = vpop.permute.xlu0 %3471
    %v3475 = vadd.f32 %v3423, %v3470
    %v3476 = vadd.f32 %v3424, %v3472
    %s3477 = sld [smem:[#allocation6 + $0x4c]]
    %v3478 = vstv %s3477
    %v3479 = vmul.f32 %v3411, %v3478
    %v3480 = vmul.f32 %v3412, %v3478
    %3483 = vrot.lane.b32.xlu0 %v3479, 127
    %v3484 = vpop.permute.xlu0 %3483
    %3485 = vrot.lane.b32.xlu0 %v3480, 127
    %v3486 = vpop.permute.xlu0 %3485
    %v3489 = vadd.f32 %v3429, %v3484
    %v3490 = vadd.f32 %v3430, %v3486
    %s3491 = sld [smem:[#allocation6 + $0x67]]
    %v3492 = vstv %s3491
    %v3493 = vmul.f32 %v3411, %v3492
    %v3494 = vmul.f32 %v3412, %v3492
    %3497 = vrot.lane.b32.xlu0 %v3493, 127
    %v3498 = vpop.permute.xlu0 %3497
    %3499 = vrot.lane.b32.xlu0 %v3494, 127
    %v3500 = vpop.permute.xlu0 %3499
    %v3503 = vadd.f32 %v3435, %v3498
    %v3504 = vadd.f32 %v3436, %v3500
    %s3505 = sld [smem:[#allocation6 + $0x82]]
    %v3506 = vstv %s3505
    %v3507 = vmul.f32 %v3411, %v3506
    %v3508 = vmul.f32 %v3412, %v3506
    %3511 = vrot.lane.b32.xlu0 %v3507, 127
    %v3512 = vpop.permute.xlu0 %3511
    %3513 = vrot.lane.b32.xlu0 %v3508, 127
    %v3514 = vpop.permute.xlu0 %3513
    %v3517 = vadd.f32 %v3441, %v3512
    %v3518 = vadd.f32 %v3442, %v3514
    %s3519 = sld [smem:[#allocation6 + $0x9d]]
    %v3520 = vstv %s3519
    %v3521 = vmul.f32 %v3411, %v3520
    %v3522 = vmul.f32 %v3412, %v3520
    %3525 = vrot.lane.b32.xlu0 %v3521, 127
    %v3526 = vpop.permute.xlu0 %3525
    %3527 = vrot.lane.b32.xlu0 %v3522, 127
    %v3528 = vpop.permute.xlu0 %3527
    %v3531 = vadd.f32 %v3447, %v3526
    %v3532 = vadd.f32 %v3448, %v3528
    %s3533 = sld [smem:[#allocation6 + $0x17]]
    %v3534 = vstv %s3533
    %v3535 = vmul.f32 %v3411, %v3534
    %v3536 = vmul.f32 %v3412, %v3534
    %3539 = vrot.lane.b32.xlu0 %v3535, 126
    %v3540 = vpop.permute.xlu0 %3539
    %3541 = vrot.lane.b32.xlu0 %v3536, 126
    %v3542 = vpop.permute.xlu0 %3541
    %v3545 = vadd.f32 %v3461, %v3540
    %v3546 = vadd.f32 %v3462, %v3542
    %s3547 = sld [smem:[#allocation6 + $0x32]]
    %v3548 = vstv %s3547
    %v3549 = vmul.f32 %v3411, %v3548
    %v3550 = vmul.f32 %v3412, %v3548
    %3553 = vrot.lane.b32.xlu0 %v3549, 126
    %v3554 = vpop.permute.xlu0 %3553
    %3555 = vrot.lane.b32.xlu0 %v3550, 126
    %v3556 = vpop.permute.xlu0 %3555
    %v3559 = vadd.f32 %v3475, %v3554
    %v3560 = vadd.f32 %v3476, %v3556
    %s3561 = sld [smem:[#allocation6 + $0x4d]]
    %v3562 = vstv %s3561
    %v3563 = vmul.f32 %v3411, %v3562
    %v3564 = vmul.f32 %v3412, %v3562
    %3567 = vrot.lane.b32.xlu0 %v3563, 126
    %v3568 = vpop.permute.xlu0 %3567
    %3569 = vrot.lane.b32.xlu0 %v3564, 126
    %v3570 = vpop.permute.xlu0 %3569
    %v3573 = vadd.f32 %v3489, %v3568
    %v3574 = vadd.f32 %v3490, %v3570
    %s3575 = sld [smem:[#allocation6 + $0x68]]
    %v3576 = vstv %s3575
    %v3577 = vmul.f32 %v3411, %v3576
    %v3578 = vmul.f32 %v3412, %v3576
    %3581 = vrot.lane.b32.xlu0 %v3577, 126
    %v3582 = vpop.permute.xlu0 %3581
    %3583 = vrot.lane.b32.xlu0 %v3578, 126
    %v3584 = vpop.permute.xlu0 %3583
    %v3587 = vadd.f32 %v3503, %v3582
    %v3588 = vadd.f32 %v3504, %v3584
    %s3589 = sld [smem:[#allocation6 + $0x83]]
    %v3590 = vstv %s3589
    %v3591 = vmul.f32 %v3411, %v3590
    %v3592 = vmul.f32 %v3412, %v3590
    %3595 = vrot.lane.b32.xlu0 %v3591, 126
    %v3596 = vpop.permute.xlu0 %3595
    %3597 = vrot.lane.b32.xlu0 %v3592, 126
    %v3598 = vpop.permute.xlu0 %3597
    %v3601 = vadd.f32 %v3517, %v3596
    %v3602 = vadd.f32 %v3518, %v3598
    %s3603 = sld [smem:[#allocation6 + $0x9e]]
    %v3604 = vstv %s3603
    %v3605 = vmul.f32 %v3411, %v3604
    %v3606 = vmul.f32 %v3412, %v3604
    %3609 = vrot.lane.b32.xlu0 %v3605, 126
    %v3610 = vpop.permute.xlu0 %3609
    %3611 = vrot.lane.b32.xlu0 %v3606, 126
    %v3612 = vpop.permute.xlu0 %3611
    %v3615 = vadd.f32 %v3531, %v3610
    %v3616 = vadd.f32 %v3532, %v3612
    %v3617 = vld [vmem:[%s3204 + $0x2] sm:$0xff]
    %v3618 = vld [vmem:[%s3204 + $0xa] sm:$0x3f]
    %s3619 = sld [smem:[#allocation6 + $0x18]]
    %v3620 = vstv %s3619
    %v3621 = vmul.f32 %v3617, %v3620
    %v3622 = vmul.f32 %v3618, %v3620
    %v3623 = vadd.f32 %v3545, %v3621
    %v3624 = vadd.f32 %v3546, %v3622
    %s3625 = sld [smem:[#allocation6 + $0x33]]
    %v3626 = vstv %s3625
    %v3627 = vmul.f32 %v3617, %v3626
    %v3628 = vmul.f32 %v3618, %v3626
    %v3629 = vadd.f32 %v3559, %v3627
    %v3630 = vadd.f32 %v3560, %v3628
    %s3631 = sld [smem:[#allocation6 + $0x4e]]
    %v3632 = vstv %s3631
    %v3633 = vmul.f32 %v3617, %v3632
    %v3634 = vmul.f32 %v3618, %v3632
    %v3635 = vadd.f32 %v3573, %v3633
    %v3636 = vadd.f32 %v3574, %v3634
    %s3637 = sld [smem:[#allocation6 + $0x69]]
    %v3638 = vstv %s3637
    %v3639 = vmul.f32 %v3617, %v3638
    %v3640 = vmul.f32 %v3618, %v3638
    %v3641 = vadd.f32 %v3587, %v3639
    %v3642 = vadd.f32 %v3588, %v3640
    %s3643 = sld [smem:[#allocation6 + $0x84]]
    %v3644 = vstv %s3643
    %v3645 = vmul.f32 %v3617, %v3644
    %v3646 = vmul.f32 %v3618, %v3644
    %v3647 = vadd.f32 %v3601, %v3645
    %v3648 = vadd.f32 %v3602, %v3646
    %s3649 = sld [smem:[#allocation6 + $0x9f]]
    %v3650 = vstv %s3649
    %v3651 = vmul.f32 %v3617, %v3650
    %v3652 = vmul.f32 %v3618, %v3650
    %v3653 = vadd.f32 %v3615, %v3651
    %v3654 = vadd.f32 %v3616, %v3652
    %s3655 = sld [smem:[#allocation6 + $0x19]]
    %v3656 = vstv %s3655
    %v3657 = vmul.f32 %v3617, %v3656
    %v3658 = vmul.f32 %v3618, %v3656
    %3661 = vrot.lane.b32.xlu0 %v3657, 127
    %v3662 = vpop.permute.xlu0 %3661
    %3663 = vrot.lane.b32.xlu0 %v3658, 127
    %v3664 = vpop.permute.xlu0 %3663
    %v3667 = vadd.f32 %v3623, %v3662
    %v3668 = vadd.f32 %v3624, %v3664
    %s3669 = sld [smem:[#allocation6 + $0x34]]
    %v3670 = vstv %s3669
    %v3671 = vmul.f32 %v3617, %v3670
    %v3672 = vmul.f32 %v3618, %v3670
    %3675 = vrot.lane.b32.xlu0 %v3671, 127
    %v3676 = vpop.permute.xlu0 %3675
    %3677 = vrot.lane.b32.xlu0 %v3672, 127
    %v3678 = vpop.permute.xlu0 %3677
    %v3681 = vadd.f32 %v3629, %v3676
    %v3682 = vadd.f32 %v3630, %v3678
    %s3683 = sld [smem:[#allocation6 + $0x4f]]
    %v3684 = vstv %s3683
    %v3685 = vmul.f32 %v3617, %v3684
    %v3686 = vmul.f32 %v3618, %v3684
    %3689 = vrot.lane.b32.xlu0 %v3685, 127
    %v3690 = vpop.permute.xlu0 %3689
    %3691 = vrot.lane.b32.xlu0 %v3686, 127
    %v3692 = vpop.permute.xlu0 %3691
    %v3695 = vadd.f32 %v3635, %v3690
    %v3696 = vadd.f32 %v3636, %v3692
    %s3697 = sld [smem:[#allocation6 + $0x6a]]
    %v3698 = vstv %s3697
    %v3699 = vmul.f32 %v3617, %v3698
    %v3700 = vmul.f32 %v3618, %v3698
    %3703 = vrot.lane.b32.xlu0 %v3699, 127
    %v3704 = vpop.permute.xlu0 %3703
    %3705 = vrot.lane.b32.xlu0 %v3700, 127
    %v3706 = vpop.permute.xlu0 %3705
    %v3709 = vadd.f32 %v3641, %v3704
    %v3710 = vadd.f32 %v3642, %v3706
    %s3711 = sld [smem:[#allocation6 + $0x85]]
    %v3712 = vstv %s3711
    %v3713 = vmul.f32 %v3617, %v3712
    %v3714 = vmul.f32 %v3618, %v3712
    %3717 = vrot.lane.b32.xlu0 %v3713, 127
    %v3718 = vpop.permute.xlu0 %3717
    %3719 = vrot.lane.b32.xlu0 %v3714, 127
    %v3720 = vpop.permute.xlu0 %3719
    %v3723 = vadd.f32 %v3647, %v3718
    %v3724 = vadd.f32 %v3648, %v3720
    %s3725 = sld [smem:[#allocation6 + $0xa0]]
    %v3726 = vstv %s3725
    %v3727 = vmul.f32 %v3617, %v3726
    %v3728 = vmul.f32 %v3618, %v3726
    %3731 = vrot.lane.b32.xlu0 %v3727, 127
    %v3732 = vpop.permute.xlu0 %3731
    %3733 = vrot.lane.b32.xlu0 %v3728, 127
    %v3734 = vpop.permute.xlu0 %3733
    %v3737 = vadd.f32 %v3653, %v3732
    %v3738 = vadd.f32 %v3654, %v3734
    %s3739 = sld [smem:[#allocation6 + $0x1a]]
    %v3740 = vstv %s3739
    %v3741 = vmul.f32 %v3617, %v3740
    %v3742 = vmul.f32 %v3618, %v3740
    %3745 = vrot.lane.b32.xlu0 %v3741, 126
    %v3746 = vpop.permute.xlu0 %3745
    %3747 = vrot.lane.b32.xlu0 %v3742, 126
    %v3748 = vpop.permute.xlu0 %3747
    %v3751 = vadd.f32 %v3667, %v3746
    %v3752 = vadd.f32 %v3668, %v3748
    %s3753 = sld [smem:[#allocation6 + $0x35]]
    %v3754 = vstv %s3753
    %v3755 = vmul.f32 %v3617, %v3754
    %v3756 = vmul.f32 %v3618, %v3754
    %3759 = vrot.lane.b32.xlu0 %v3755, 126
    %v3760 = vpop.permute.xlu0 %3759
    %3761 = vrot.lane.b32.xlu0 %v3756, 126
    %v3762 = vpop.permute.xlu0 %3761
    %v3765 = vadd.f32 %v3681, %v3760
    %v3766 = vadd.f32 %v3682, %v3762
    %s3767 = sld [smem:[#allocation6 + $0x50]]
    %v3768 = vstv %s3767
    %v3769 = vmul.f32 %v3617, %v3768
    %v3770 = vmul.f32 %v3618, %v3768
    %3773 = vrot.lane.b32.xlu0 %v3769, 126
    %v3774 = vpop.permute.xlu0 %3773
    %3775 = vrot.lane.b32.xlu0 %v3770, 126
    %v3776 = vpop.permute.xlu0 %3775
    %v3779 = vadd.f32 %v3695, %v3774
    %v3780 = vadd.f32 %v3696, %v3776
    %s3781 = sld [smem:[#allocation6 + $0x6b]]
    %v3782 = vstv %s3781
    %v3783 = vmul.f32 %v3617, %v3782
    %v3784 = vmul.f32 %v3618, %v3782
    %3787 = vrot.lane.b32.xlu0 %v3783, 126
    %v3788 = vpop.permute.xlu0 %3787
    %3789 = vrot.lane.b32.xlu0 %v3784, 126
    %v3790 = vpop.permute.xlu0 %3789
    %v3793 = vadd.f32 %v3709, %v3788
    %v3794 = vadd.f32 %v3710, %v3790
    %s3795 = sld [smem:[#allocation6 + $0x86]]
    %v3796 = vstv %s3795
    %v3797 = vmul.f32 %v3617, %v3796
    %v3798 = vmul.f32 %v3618, %v3796
    %3801 = vrot.lane.b32.xlu0 %v3797, 126
    %v3802 = vpop.permute.xlu0 %3801
    %3803 = vrot.lane.b32.xlu0 %v3798, 126
    %v3804 = vpop.permute.xlu0 %3803
    %v3807 = vadd.f32 %v3723, %v3802
    %v3808 = vadd.f32 %v3724, %v3804
    %s3809 = sld [smem:[#allocation6 + $0xa1]]
    %v3810 = vstv %s3809
    %v3811 = vmul.f32 %v3617, %v3810
    %v3812 = vmul.f32 %v3618, %v3810
    %3815 = vrot.lane.b32.xlu0 %v3811, 126
    %v3816 = vpop.permute.xlu0 %3815
    %3817 = vrot.lane.b32.xlu0 %v3812, 126
    %v3818 = vpop.permute.xlu0 %3817
    %v3821 = vadd.f32 %v3737, %v3816
    %v3822 = vadd.f32 %v3738, %v3818
    %s3823 = scalar_lea.vmem %s3, 96
    %3824 = vst.msk [vmem:[%s3823] sm:$0xff] %vm1929, %v3751
    %3825 = vst.msk [vmem:[%s3823 + $0x8] sm:$0x3f] %vm1931, %v3752
    %s3826 = scalar_lea.vmem %s3, 112
    %3827 = vst.msk [vmem:[%s3826] sm:$0xff] %vm1929, %v3765
    %3828 = vst.msk [vmem:[%s3826 + $0x8] sm:$0x3f] %vm1931, %v3766
    %s3829 = scalar_lea.vmem %s3, 128
    %3830 = vst.msk [vmem:[%s3829] sm:$0xff] %vm1929, %v3779
    %3831 = vst.msk [vmem:[%s3829 + $0x8] sm:$0x3f] %vm1931, %v3780
    %s3832 = scalar_lea.vmem %s3, 144
    %3833 = vst.msk [vmem:[%s3832] sm:$0xff] %vm1929, %v3793
    %3834 = vst.msk [vmem:[%s3832 + $0x8] sm:$0x3f] %vm1931, %v3794
    %s3835 = scalar_lea.vmem %s3, 160
    %3836 = vst.msk [vmem:[%s3835] sm:$0xff] %vm1929, %v3807
    %3837 = vst.msk [vmem:[%s3835 + $0x8] sm:$0x3f] %vm1931, %v3808
    %s3838 = scalar_lea.vmem %s3, 176
    %3839 = vst.msk [vmem:[%s3838] sm:$0xff] %vm1929, %v3821
    %3840 = vst.msk [vmem:[%s3838 + $0x8] sm:$0x3f] %vm1931, %v3822
    // Predicated region
    $region26: #{tpu_custom_call.1} parent=1 // pred_check
      _
    $region27: #{tpu_custom_call.1} parent=1 // pred_check_branch
      %3842 = sbr.rel (0) target = $region29
    $region28: #{tpu_custom_call.1} parent=1 // pred_region
      _
    $region29: #{tpu_custom_call.1} parent=1 // pred_fallthru
      _
    // Predicated region
    $region30: #{tpu_custom_call.1} parent=1 // pred_check
      _
    $region31: #{tpu_custom_call.1} parent=1 // pred_check_branch
      %3844 = sbr.rel (0) target = $region33
    $region32: #{tpu_custom_call.1} parent=1 // pred_region
      _
    $region33: #{tpu_custom_call.1} parent=1 // pred_fallthru
      _
    %3845 = vsyncpa [#allocation3], 1
    %3846 = vsyncpa [#allocation4], 1
    %3847 = vsyncpa [#allocation5], 1

</llo_original>
